<compile_context>
chip_gen: v7x
topology: tpu7x:2x2x1
jax: 0.10.0
libtpu: 0.0.40
codegen_flags: <defaults>
</compile_context>

<pallas_src>
import functools

import jax
import jax.numpy as jnp
import numpy as np
from jax.experimental import pallas as pl
from jax.experimental.pallas import tpu as pltpu

VMEM_SPEC = pl.BlockSpec(memory_space=pltpu.MemorySpace.VMEM)
SMEM_SPEC = pl.BlockSpec(memory_space=pltpu.MemorySpace.SMEM)
BN_EPS = 1e-5
LANE = 128
BF16_SUBLANE = 16


def _ceil_to(v, m):
    return ((v + m - 1) // m) * m


def _pad2(a, rows, cols, dtype=None):
    out = jnp.pad(a, ((0, rows - a.shape[0]), (0, cols - a.shape[1])))
    return out if dtype is None else out.astype(dtype)


# ---------------------------------------------------------------------------
# Fused Pallas kernel: all GINE layers + FC head + per-graph softmax
# ---------------------------------------------------------------------------
def actor_fused_kernel(scal_ref, x_ref, ea_ref, src_idx_ref, tgt_idx_ref,
                       batch_ref, we_ref, be_ref, w1_ref, b1_ref, gamma_ref,
                       beta_ref, w2_ref, b2_ref, wfc1_ref, wfc2_ref, out_ref,
                       *, n_graphs_pad):
    f32, bf16 = jnp.float32, jnp.bfloat16
    n_valid = scal_ref[0]          # real node count   (SMEM scalar -> no recompile)
    n_actions = scal_ref[1]        # real action count (SMEM scalar)

    x = x_ref[...]                 # [Np, FP]  f32 (zero-padded rows/cols)
    ea = ea_ref[...]               # [Ep, EDP] bf16
    np_ = x.shape[0]
    ep = ea.shape[0]

    # One-hots built in-kernel (VPU iota-compare, hides under MXU) and kept bf16
    # so the gather / scatter run as native bf16 x bf16 -> f32 MXU matmuls.
    # Padded edges / nodes carry index -1 -> never match -> all-zero rows.
    edge_node_iota = jax.lax.broadcasted_iota(jnp.int32, (ep, np_), 1)
    src_oh = jnp.where(edge_node_iota == src_idx_ref[...], 1.0, 0.0).astype(bf16)
    tgt_oh = jnp.where(edge_node_iota == tgt_idx_ref[...], 1.0, 0.0).astype(bf16)

    node_mask = (jax.lax.broadcasted_iota(jnp.int32, (np_, 1), 0)
                 < n_valid).astype(f32)                               # [Np, 1]
    inv_n = 1.0 / n_valid.astype(f32)

    n_layers = we_ref.shape[0]
    # --- GINE layers (short static unroll; weight stacks indexed statically) ---
    for l in range(n_layers):
        # edge feature projection (GINEConv.lin): bf16 MXU, f32 accumulate
        e_t = jnp.dot(ea, we_ref[l], preferred_element_type=f32) + be_ref[l]
        # gather source node features (exact one-hot, bf16-rounded x)
        x_j = jnp.dot(src_oh, x.astype(bf16), preferred_element_type=f32)
        msg = jnp.maximum(x_j + e_t, 0.0)
        # scatter-add to target nodes: contract over E, MXU does the transpose
        agg = jax.lax.dot_general(tgt_oh, msg.astype(bf16),
                                  (((0,), (0,)), ((), ())),
                                  preferred_element_type=f32)         # [Np, FP]
        h = x + agg                                                   # (1+eps)*x, eps=0

        # MLP: Linear -> BatchNorm1d (single-pass masked stats, f32) -> ReLU -> Linear
        h1 = (jnp.dot(h.astype(bf16), w1_ref[l], preferred_element_type=f32)
              + b1_ref[l])                                            # [Np, FP]
        hm = h1 * node_mask
        mean = jnp.sum(hm, axis=0, keepdims=True) * inv_n
        msq = jnp.sum(hm * h1, axis=0, keepdims=True) * inv_n
        var = jnp.maximum(msq - mean * mean, 0.0)
        scale = gamma_ref[l] * jax.lax.rsqrt(var + BN_EPS)
        shift = beta_ref[l] - mean * scale
        hr = jnp.maximum(h1 * scale + shift, 0.0)
        h2 = (jnp.dot(hr.astype(bf16), w2_ref[l], preferred_element_type=f32)
              + b2_ref[l])
        x = jnp.maximum(h2, 0.0)                                      # outer F.relu

    # --- head: fc1 -> relu -> fc2 -> relu -> per-graph softmax over (node, action) ---
    h1 = jnp.maximum(jnp.dot(x.astype(bf16), wfc1_ref[...],
                             preferred_element_type=f32), 0.0)
    logits = jnp.maximum(jnp.dot(h1.astype(bf16), wfc2_ref[...],
                                 preferred_element_type=f32), 0.0)

    # mask off padded action lanes; per-node graph one-hot (padded nodes -> zero row)
    amask = (jax.lax.broadcasted_iota(jnp.int32, logits.shape, 1)
             < n_actions).astype(f32)
    goh = jnp.where(jax.lax.broadcasted_iota(jnp.int32, (np_, n_graphs_pad), 1)
                    == batch_ref[...], 1.0, 0.0)                      # [Np, Gp] f32

    # per-graph max (valid because logits >= 0 after the final ReLU)
    node_max = jnp.max(logits, axis=1, keepdims=True)                 # [Np, 1]
    graph_max = jnp.max(goh * node_max, axis=0, keepdims=True)        # [1, Gp]
    node_gmax = jnp.sum(goh * graph_max, axis=1, keepdims=True)       # [Np, 1]

    # shifted logits are <= 0 for valid entries; clamp protects padded rows only
    ex = jnp.exp(jnp.minimum(logits - node_gmax, 0.0)) * amask        # [Np, AP]
    node_sum = jnp.sum(ex, axis=1, keepdims=True)                     # [Np, 1]
    graph_sum = jnp.sum(goh * node_sum, axis=0, keepdims=True)        # [1, Gp]
    node_denom = jnp.sum(goh * graph_sum, axis=1, keepdims=True)      # [Np, 1]
    node_denom = jnp.where(node_denom > 0.0, node_denom, 1.0)         # guard padded rows

    out_ref[...] = ex / node_denom                                    # lane-dense store


# ---------------------------------------------------------------------------
# Wrapper: padding / packing glue in JAX, hot path in a single pallas_call
# ---------------------------------------------------------------------------
def actor_net_forward(x, edge_index, edge_attr, batch, params, num_graphs):
    n_nodes, in_size = x.shape
    n_edges = edge_index.shape[1]
    edge_dim = edge_attr.shape[1]
    layers = params["gin_layers"]
    hidden_sizes = [p["w1"].shape[1] for p in layers]
    hide_fc = params["wfc1"].shape[1]
    out_size = params["wfc2"].shape[1]

    # padded dims: 128-lane features; node dim to 128 (one-hot lane / contraction
    # dim), edge dim to 16 (bf16 sublane packing), graph dim bucketed to 128.
    fp = _ceil_to(max([in_size] + hidden_sizes), LANE)
    edp = _ceil_to(edge_dim, LANE)
    hfcp = _ceil_to(hide_fc, LANE)
    ap = _ceil_to(out_size, LANE)
    np_ = _ceil_to(n_nodes, LANE)
    ep = _ceil_to(n_edges, BF16_SUBLANE)
    gp = _ceil_to(num_graphs, LANE)

    # node features (f32, zero padded); edge attrs go straight in as bf16
    x_pad = _pad2(x.astype(jnp.float32), np_, fp)
    ea_pad = _pad2(edge_attr, ep, edp, jnp.bfloat16)

    # small int32 index vectors; padded entries get -1 -> zero one-hot rows in-kernel
    src_idx = jnp.pad(edge_index[0], (0, ep - n_edges),
                      constant_values=-1).astype(jnp.int32)[:, None]
    tgt_idx = jnp.pad(edge_index[1], (0, ep - n_edges),
                      constant_values=-1).astype(jnp.int32)[:, None]
    batch_pad = jnp.pad(batch, (0, np_ - n_nodes),
                        constant_values=-1).astype(jnp.int32)[:, None]

    # stacked zero-padded layer weights: matmul operands bf16, bias/affine f32
    we_s = jnp.stack([_pad2(p["we"], edp, fp, jnp.bfloat16) for p in layers])
    be_s = jnp.stack([_pad2(p["be"], 1, fp) for p in layers])
    w1_s = jnp.stack([_pad2(p["w1"], fp, fp, jnp.bfloat16) for p in layers])
    b1_s = jnp.stack([_pad2(p["b1"], 1, fp) for p in layers])
    gamma_s = jnp.stack([_pad2(p["gamma"], 1, fp) for p in layers])
    beta_s = jnp.stack([_pad2(p["beta"], 1, fp) for p in layers])
    w2_s = jnp.stack([_pad2(p["w2"], fp, fp, jnp.bfloat16) for p in layers])
    b2_s = jnp.stack([_pad2(p["b2"], 1, fp) for p in layers])
    wfc1_pad = _pad2(params["wfc1"], fp, hfcp, jnp.bfloat16)
    wfc2_pad = _pad2(params["wfc2"], hfcp, ap, jnp.bfloat16)

    # real counts as SMEM scalars -> same compiled kernel for any count in a bucket
    scal = jnp.array([n_nodes, out_size], jnp.int32)

    kernel = functools.partial(actor_fused_kernel, n_graphs_pad=gp)
    out_pad = pl.pallas_call(
        kernel,
        out_shape=jax.ShapeDtypeStruct((np_, ap), jnp.float32),
        in_specs=[SMEM_SPEC] + [VMEM_SPEC] * 15,
        out_specs=VMEM_SPEC,
        compiler_params=pltpu.CompilerParams(vmem_limit_bytes=32 * 1024 * 1024),
    )(scal, x_pad, ea_pad, src_idx, tgt_idx, batch_pad,
      we_s, be_s, w1_s, b1_s, gamma_s, beta_s, w2_s, b2_s, wfc1_pad, wfc2_pad)

    return out_pad[:n_nodes, :out_size]


# ---------------------------------------------------------------------------
# Pure-JAX reference (same math, f32 everywhere) for a sanity check
# ---------------------------------------------------------------------------
def reference_forward(x, edge_index, edge_attr, batch, params, num_graphs):
    n_nodes = x.shape[0]
    src_oh = jax.nn.one_hot(edge_index[0], n_nodes, dtype=jnp.float32)
    tgt_oh = jax.nn.one_hot(edge_index[1], n_nodes, dtype=jnp.float32)
    h = x
    for p in params["gin_layers"]:
        e_t = edge_attr @ p["we"] + p["be"]
        x_j = src_oh @ h
        msg = jnp.maximum(x_j + e_t, 0.0)
        agg = tgt_oh.T @ msg
        z = h + agg
        h1 = z @ p["w1"] + p["b1"]
        mean = jnp.mean(h1, axis=0, keepdims=True)
        var = jnp.mean((h1 - mean) ** 2, axis=0, keepdims=True)
        hb = (h1 - mean) / jnp.sqrt(var + BN_EPS) * p["gamma"] + p["beta"]
        h = jnp.maximum(jnp.maximum(hb, 0.0) @ p["w2"] + p["b2"], 0.0)
    h1 = jnp.maximum(h @ params["wfc1"], 0.0)
    logits = jnp.maximum(h1 @ params["wfc2"], 0.0)
    node_max = jnp.max(logits, axis=1)
    graph_max = jax.ops.segment_max(node_max, batch, num_segments=num_graphs)
    ex = jnp.exp(logits - graph_max[batch][:, None])
    denom = jax.ops.segment_sum(jnp.sum(ex, axis=1), batch, num_segments=num_graphs)
    return ex / denom[batch][:, None]


# ---------------------------------------------------------------------------
# Deterministic parameter / input construction
# ---------------------------------------------------------------------------
def make_params(key, in_size, hide_size_list, hide_size_fc, out_size, edge_dim):
    sizes = [in_size] + list(hide_size_list)
    params = {"gin_layers": []}
    for i in range(len(hide_size_list)):
        fi, fo = sizes[i], sizes[i + 1]
        keys = jax.random.split(jax.random.fold_in(key, i), 6)
        params["gin_layers"].append({
            "we": 0.2 * jax.random.normal(keys[0], (edge_dim, fi), jnp.float32),
            "be": 0.1 * jax.random.normal(keys[1], (1, fi), jnp.float32),
            "w1": 0.2 * jax.random.normal(keys[2], (fi, fo), jnp.float32),
            "b1": 0.1 * jax.random.normal(keys[3], (1, fo), jnp.float32),
            "gamma": jnp.ones((1, fo), jnp.float32),
            "beta": jnp.zeros((1, fo), jnp.float32),
            "w2": 0.2 * jax.random.normal(keys[4], (fo, fo), jnp.float32),
            "b2": 0.1 * jax.random.normal(keys[5], (1, fo), jnp.float32),
        })
    k1, k2 = jax.random.split(jax.random.fold_in(key, 1000))
    params["wfc1"] = 0.2 * jax.random.normal(k1, (sizes[-1], hide_size_fc), jnp.float32)
    params["wfc2"] = 0.2 * jax.random.normal(k2, (hide_size_fc, out_size), jnp.float32)
    return params


if __name__ == "__main__":
    key = jax.random.PRNGKey(0)

    # Small synthetic problem: 2 graphs x 8 nodes, 32 directed edges.
    # TODO(synk): real RL inference should batch many more graphs/nodes per call
    # so the matmul M-dim is >=256 and the pallas_call overhead amortizes.
    N_NODES, N_EDGES, N_GRAPHS = 16, 32, 2
    IN_SIZE, HIDE_LIST, HIDE_FC, OUT_SIZE, EDGE_DIM = 8, [16, 16], 32, 4, 6

    kx, ke, ks, kt, kp = jax.random.split(key, 5)
    x = jax.random.normal(kx, (N_NODES, IN_SIZE), jnp.float32)
    edge_attr = jax.random.normal(ke, (N_EDGES, EDGE_DIM), jnp.float32)

    # edges stay inside each graph (graph g owns nodes [8g, 8g+8))
    per_graph = N_EDGES // N_GRAPHS
    src = jax.random.randint(ks, (N_EDGES,), 0, 8)
    tgt = jax.random.randint(kt, (N_EDGES,), 0, 8)
    offs = jnp.repeat(jnp.arange(N_GRAPHS) * 8, per_graph)
    edge_index = jnp.stack([src + offs, tgt + offs]).astype(jnp.int32)   # [2, E]
    batch = jnp.repeat(jnp.arange(N_GRAPHS), N_NODES // N_GRAPHS).astype(jnp.int32)

    params = make_params(kp, IN_SIZE, HIDE_LIST, HIDE_FC, OUT_SIZE, EDGE_DIM)

    action_prob = actor_net_forward(x, edge_index, edge_attr, batch, params, N_GRAPHS)
    action_prob = jax.block_until_ready(action_prob)

    ref = reference_forward(x, edge_index, edge_attr, batch, params, N_GRAPHS)
    # bf16 MXU matmuls with f32 accumulation -> slightly looser tolerance than f32.
    np.testing.assert_allclose(np.asarray(action_prob), np.asarray(ref),
                               rtol=5e-2, atol=2e-3)
    # per-graph probabilities sum to 1
    sums = jax.ops.segment_sum(jnp.sum(action_prob, axis=1), batch, num_segments=N_GRAPHS)
    np.testing.assert_allclose(np.asarray(sums), np.ones(N_GRAPHS), rtol=1e-3, atol=1e-3)

    print("KERNEL_OK")
</pallas_src>

<mosaic_0001>
module attributes {stable_mosaic.version = 11 : i64} {
  func.func @actor_fused_kernel(%arg0: memref<2xi32, #tpu.memory_space<smem>>, %arg1: memref<128x128xf32, #tpu.memory_space<vmem>>, %arg2: memref<32x128xbf16, #tpu.memory_space<vmem>>, %arg3: memref<32x1xi32, #tpu.memory_space<vmem>>, %arg4: memref<32x1xi32, #tpu.memory_space<vmem>>, %arg5: memref<128x1xi32, #tpu.memory_space<vmem>>, %arg6: memref<2x128x128xbf16, #tpu.memory_space<vmem>>, %arg7: memref<2x1x128xf32, #tpu.memory_space<vmem>>, %arg8: memref<2x128x128xbf16, #tpu.memory_space<vmem>>, %arg9: memref<2x1x128xf32, #tpu.memory_space<vmem>>, %arg10: memref<2x1x128xf32, #tpu.memory_space<vmem>>, %arg11: memref<2x1x128xf32, #tpu.memory_space<vmem>>, %arg12: memref<2x128x128xbf16, #tpu.memory_space<vmem>>, %arg13: memref<2x1x128xf32, #tpu.memory_space<vmem>>, %arg14: memref<128x128xbf16, #tpu.memory_space<vmem>>, %arg15: memref<128x128xbf16, #tpu.memory_space<vmem>>, %arg16: memref<128x128xf32, #tpu.memory_space<vmem>>) attributes {dimension_semantics = [], scalar_prefetch = 0 : i64, scratch_operands = 0 : i64, tpu.core_type = #tpu.core_type<tc>} {
    %c0 = arith.constant 0 : index
    %0 = memref.load %arg0[%c0] : memref<2xi32, #tpu.memory_space<smem>>
    %c1 = arith.constant 1 : index
    %1 = memref.load %arg0[%c1] : memref<2xi32, #tpu.memory_space<smem>>
    %c0_0 = arith.constant 0 : index
    %c0_1 = arith.constant 0 : index
    %2 = vector.load %arg1[%c0_0, %c0_1] : memref<128x128xf32, #tpu.memory_space<vmem>>, vector<128x128xf32>
    %c0_2 = arith.constant 0 : index
    %c0_3 = arith.constant 0 : index
    %3 = vector.load %arg2[%c0_2, %c0_3] : memref<32x128xbf16, #tpu.memory_space<vmem>>, vector<32x128xbf16>
    %4 = tpu.iota {dimensions = array<i32: 1>} : vector<32x128xi32>
    %c0_4 = arith.constant 0 : index
    %c0_5 = arith.constant 0 : index
    %5 = vector.load %arg3[%c0_4, %c0_5] : memref<32x1xi32, #tpu.memory_space<vmem>>, vector<32x1xi32>
    %6 = vector.broadcast %5 : vector<32x1xi32> to vector<32x128xi32>
    %7 = arith.cmpi eq, %4, %6 : vector<32x128xi32>
    %cst = arith.constant 1.000000e+00 : f32
    %cst_6 = arith.constant 0.000000e+00 : f32
    %8 = vector.broadcast %cst : f32 to vector<32x128xf32>
    %9 = vector.broadcast %cst_6 : f32 to vector<32x128xf32>
    %10 = arith.select %7, %8, %9 : vector<32x128xi1>, vector<32x128xf32>
    %11 = arith.truncf %10 : vector<32x128xf32> to vector<32x128xbf16>
    %c0_7 = arith.constant 0 : index
    %c0_8 = arith.constant 0 : index
    %12 = vector.load %arg4[%c0_7, %c0_8] : memref<32x1xi32, #tpu.memory_space<vmem>>, vector<32x1xi32>
    %13 = vector.broadcast %12 : vector<32x1xi32> to vector<32x128xi32>
    %14 = arith.cmpi eq, %4, %13 : vector<32x128xi32>
    %cst_9 = arith.constant 1.000000e+00 : f32
    %cst_10 = arith.constant 0.000000e+00 : f32
    %15 = vector.broadcast %cst_9 : f32 to vector<32x128xf32>
    %16 = vector.broadcast %cst_10 : f32 to vector<32x128xf32>
    %17 = arith.select %14, %15, %16 : vector<32x128xi1>, vector<32x128xf32>
    %18 = arith.truncf %17 : vector<32x128xf32> to vector<32x128xbf16>
    %19 = tpu.iota {dimensions = array<i32: 0>} : vector<128x1xi32>
    %20 = vector.broadcast %0 : i32 to vector<128x1xi32>
    %21 = arith.cmpi slt, %19, %20 : vector<128x1xi32>
    %22 = arith.extui %21 : vector<128x1xi1> to vector<128x1xi32>
    %23 = arith.sitofp %22 : vector<128x1xi32> to vector<128x1xf32>
    %24 = arith.sitofp %0 : i32 to f32
    %cst_11 = arith.constant 1.000000e+00 : f32
    %25 = arith.divf %cst_11, %24 : f32
    %c0_12 = arith.constant 0 : index
    %c0_13 = arith.constant 0 : index
    %c0_14 = arith.constant 0 : index
    %26 = vector.load %arg6[%c0_12, %c0_13, %c0_14] : memref<2x128x128xbf16, #tpu.memory_space<vmem>>, vector<1x128x128xbf16>
    %27 = vector.shape_cast %26 : vector<1x128x128xbf16> to vector<128x128xbf16>
    %cst_15 = arith.constant dense<0.000000e+00> : vector<32x128xf32>
    %28 = tpu.matmul %3, %27, %cst_15 {dimension_numbers = #tpu.dot_dimension_numbers<[1], [0], [0], [1], [0, 0, 1, 1], [], []>} : vector<32x128xbf16>, vector<128x128xbf16>, vector<32x128xf32> -> vector<32x128xf32>
    %c0_16 = arith.constant 0 : index
    %c0_17 = arith.constant 0 : index
    %c0_18 = arith.constant 0 : index
    %29 = vector.load %arg7[%c0_16, %c0_17, %c0_18] : memref<2x1x128xf32, #tpu.memory_space<vmem>>, vector<1x1x128xf32>
    %30 = vector.shape_cast %29 : vector<1x1x128xf32> to vector<1x128xf32>
    %31 = vector.broadcast %30 : vector<1x128xf32> to vector<32x128xf32>
    %32 = arith.addf %28, %31 : vector<32x128xf32>
    %33 = arith.truncf %2 : vector<128x128xf32> to vector<128x128xbf16>
    %cst_19 = arith.constant dense<0.000000e+00> : vector<32x128xf32>
    %34 = tpu.matmul %11, %33, %cst_19 {dimension_numbers = #tpu.dot_dimension_numbers<[1], [0], [0], [1], [0, 0, 1, 1], [], []>} : vector<32x128xbf16>, vector<128x128xbf16>, vector<32x128xf32> -> vector<32x128xf32>
    %35 = arith.addf %34, %32 : vector<32x128xf32>
    %cst_20 = arith.constant 0.000000e+00 : f32
    %36 = vector.broadcast %cst_20 : f32 to vector<32x128xf32>
    %37 = arith.maximumf %35, %36 : vector<32x128xf32>
    %38 = arith.truncf %37 : vector<32x128xf32> to vector<32x128xbf16>
    %cst_21 = arith.constant dense<0.000000e+00> : vector<128x128xf32>
    %39 = tpu.matmul %18, %38, %cst_21 {dimension_numbers = #tpu.dot_dimension_numbers<[0], [0], [1], [1], [0, 1, 1, 1], [], []>} : vector<32x128xbf16>, vector<32x128xbf16>, vector<128x128xf32> -> vector<128x128xf32>
    %40 = arith.addf %2, %39 : vector<128x128xf32>
    %41 = arith.truncf %40 : vector<128x128xf32> to vector<128x128xbf16>
    %c0_22 = arith.constant 0 : index
    %c0_23 = arith.constant 0 : index
    %c0_24 = arith.constant 0 : index
    %42 = vector.load %arg8[%c0_22, %c0_23, %c0_24] : memref<2x128x128xbf16, #tpu.memory_space<vmem>>, vector<1x128x128xbf16>
    %43 = vector.shape_cast %42 : vector<1x128x128xbf16> to vector<128x128xbf16>
    %cst_25 = arith.constant dense<0.000000e+00> : vector<128x128xf32>
    %44 = tpu.matmul %41, %43, %cst_25 {dimension_numbers = #tpu.dot_dimension_numbers<[1], [0], [0], [1], [0, 0, 1, 1], [], []>} : vector<128x128xbf16>, vector<128x128xbf16>, vector<128x128xf32> -> vector<128x128xf32>
    %c0_26 = arith.constant 0 : index
    %c0_27 = arith.constant 0 : index
    %c0_28 = arith.constant 0 : index
    %45 = vector.load %arg9[%c0_26, %c0_27, %c0_28] : memref<2x1x128xf32, #tpu.memory_space<vmem>>, vector<1x1x128xf32>
    %46 = vector.shape_cast %45 : vector<1x1x128xf32> to vector<1x128xf32>
    %47 = vector.broadcast %46 : vector<1x128xf32> to vector<128x128xf32>
    %48 = arith.addf %44, %47 : vector<128x128xf32>
    %49 = vector.broadcast %23 : vector<128x1xf32> to vector<128x128xf32>
    %50 = arith.mulf %48, %49 : vector<128x128xf32>
    %cst_29 = arith.constant dense<0.000000e+00> : vector<128xf32>
    %51 = vector.multi_reduction <add>, %50, %cst_29 [0] : vector<128x128xf32> to vector<128xf32>
    %52 = vector.shape_cast %51 : vector<128xf32> to vector<1x128xf32>
    %53 = vector.broadcast %25 : f32 to vector<1x128xf32>
    %54 = arith.mulf %52, %53 : vector<1x128xf32>
    %55 = arith.mulf %50, %48 : vector<128x128xf32>
    %cst_30 = arith.constant dense<0.000000e+00> : vector<128xf32>
    %56 = vector.multi_reduction <add>, %55, %cst_30 [0] : vector<128x128xf32> to vector<128xf32>
    %57 = vector.shape_cast %56 : vector<128xf32> to vector<1x128xf32>
    %58 = vector.broadcast %25 : f32 to vector<1x128xf32>
    %59 = arith.mulf %57, %58 : vector<1x128xf32>
    %60 = arith.mulf %54, %54 : vector<1x128xf32>
    %61 = arith.subf %59, %60 : vector<1x128xf32>
    %cst_31 = arith.constant 0.000000e+00 : f32
    %62 = vector.broadcast %cst_31 : f32 to vector<1x128xf32>
    %63 = arith.maximumf %61, %62 : vector<1x128xf32>
    %c0_32 = arith.constant 0 : index
    %c0_33 = arith.constant 0 : index
    %c0_34 = arith.constant 0 : index
    %64 = vector.load %arg10[%c0_32, %c0_33, %c0_34] : memref<2x1x128xf32, #tpu.memory_space<vmem>>, vector<1x1x128xf32>
    %65 = vector.shape_cast %64 : vector<1x1x128xf32> to vector<1x128xf32>
    %cst_35 = arith.constant 9.99999974E-6 : f32
    %66 = vector.broadcast %cst_35 : f32 to vector<1x128xf32>
    %67 = arith.addf %63, %66 : vector<1x128xf32>
    %68 = math.rsqrt %67 : vector<1x128xf32>
    %69 = arith.mulf %65, %68 : vector<1x128xf32>
    %c0_36 = arith.constant 0 : index
    %c0_37 = arith.constant 0 : index
    %c0_38 = arith.constant 0 : index
    %70 = vector.load %arg11[%c0_36, %c0_37, %c0_38] : memref<2x1x128xf32, #tpu.memory_space<vmem>>, vector<1x1x128xf32>
    %71 = vector.shape_cast %70 : vector<1x1x128xf32> to vector<1x128xf32>
    %72 = arith.mulf %54, %69 : vector<1x128xf32>
    %73 = arith.subf %71, %72 : vector<1x128xf32>
    %74 = vector.broadcast %69 : vector<1x128xf32> to vector<128x128xf32>
    %75 = arith.mulf %48, %74 : vector<128x128xf32>
    %76 = vector.broadcast %73 : vector<1x128xf32> to vector<128x128xf32>
    %77 = arith.addf %75, %76 : vector<128x128xf32>
    %cst_39 = arith.constant 0.000000e+00 : f32
    %78 = vector.broadcast %cst_39 : f32 to vector<128x128xf32>
    %79 = arith.maximumf %77, %78 : vector<128x128xf32>
    %80 = arith.truncf %79 : vector<128x128xf32> to vector<128x128xbf16>
    %c0_40 = arith.constant 0 : index
    %c0_41 = arith.constant 0 : index
    %c0_42 = arith.constant 0 : index
    %81 = vector.load %arg12[%c0_40, %c0_41, %c0_42] : memref<2x128x128xbf16, #tpu.memory_space<vmem>>, vector<1x128x128xbf16>
    %82 = vector.shape_cast %81 : vector<1x128x128xbf16> to vector<128x128xbf16>
    %cst_43 = arith.constant dense<0.000000e+00> : vector<128x128xf32>
    %83 = tpu.matmul %80, %82, %cst_43 {dimension_numbers = #tpu.dot_dimension_numbers<[1], [0], [0], [1], [0, 0, 1, 1], [], []>} : vector<128x128xbf16>, vector<128x128xbf16>, vector<128x128xf32> -> vector<128x128xf32>
    %c0_44 = arith.constant 0 : index
    %c0_45 = arith.constant 0 : index
    %c0_46 = arith.constant 0 : index
    %84 = vector.load %arg13[%c0_44, %c0_45, %c0_46] : memref<2x1x128xf32, #tpu.memory_space<vmem>>, vector<1x1x128xf32>
    %85 = vector.shape_cast %84 : vector<1x1x128xf32> to vector<1x128xf32>
    %86 = vector.broadcast %85 : vector<1x128xf32> to vector<128x128xf32>
    %87 = arith.addf %83, %86 : vector<128x128xf32>
    %cst_47 = arith.constant 0.000000e+00 : f32
    %88 = vector.broadcast %cst_47 : f32 to vector<128x128xf32>
    %89 = arith.maximumf %87, %88 : vector<128x128xf32>
    %c1_48 = arith.constant 1 : index
    %c0_49 = arith.constant 0 : index
    %c0_50 = arith.constant 0 : index
    %90 = vector.load %arg6[%c1_48, %c0_49, %c0_50] : memref<2x128x128xbf16, #tpu.memory_space<vmem>>, vector<1x128x128xbf16>
    %91 = vector.shape_cast %90 : vector<1x128x128xbf16> to vector<128x128xbf16>
    %cst_51 = arith.constant dense<0.000000e+00> : vector<32x128xf32>
    %92 = tpu.matmul %3, %91, %cst_51 {dimension_numbers = #tpu.dot_dimension_numbers<[1], [0], [0], [1], [0, 0, 1, 1], [], []>} : vector<32x128xbf16>, vector<128x128xbf16>, vector<32x128xf32> -> vector<32x128xf32>
    %c1_52 = arith.constant 1 : index
    %c0_53 = arith.constant 0 : index
    %c0_54 = arith.constant 0 : index
    %93 = vector.load %arg7[%c1_52, %c0_53, %c0_54] : memref<2x1x128xf32, #tpu.memory_space<vmem>>, vector<1x1x128xf32>
    %94 = vector.shape_cast %93 : vector<1x1x128xf32> to vector<1x128xf32>
    %95 = vector.broadcast %94 : vector<1x128xf32> to vector<32x128xf32>
    %96 = arith.addf %92, %95 : vector<32x128xf32>
    %97 = arith.truncf %89 : vector<128x128xf32> to vector<128x128xbf16>
    %cst_55 = arith.constant dense<0.000000e+00> : vector<32x128xf32>
    %98 = tpu.matmul %11, %97, %cst_55 {dimension_numbers = #tpu.dot_dimension_numbers<[1], [0], [0], [1], [0, 0, 1, 1], [], []>} : vector<32x128xbf16>, vector<128x128xbf16>, vector<32x128xf32> -> vector<32x128xf32>
    %99 = arith.addf %98, %96 : vector<32x128xf32>
    %cst_56 = arith.constant 0.000000e+00 : f32
    %100 = vector.broadcast %cst_56 : f32 to vector<32x128xf32>
    %101 = arith.maximumf %99, %100 : vector<32x128xf32>
    %102 = arith.truncf %101 : vector<32x128xf32> to vector<32x128xbf16>
    %cst_57 = arith.constant dense<0.000000e+00> : vector<128x128xf32>
    %103 = tpu.matmul %18, %102, %cst_57 {dimension_numbers = #tpu.dot_dimension_numbers<[0], [0], [1], [1], [0, 1, 1, 1], [], []>} : vector<32x128xbf16>, vector<32x128xbf16>, vector<128x128xf32> -> vector<128x128xf32>
    %104 = arith.addf %89, %103 : vector<128x128xf32>
    %105 = arith.truncf %104 : vector<128x128xf32> to vector<128x128xbf16>
    %c1_58 = arith.constant 1 : index
    %c0_59 = arith.constant 0 : index
    %c0_60 = arith.constant 0 : index
    %106 = vector.load %arg8[%c1_58, %c0_59, %c0_60] : memref<2x128x128xbf16, #tpu.memory_space<vmem>>, vector<1x128x128xbf16>
    %107 = vector.shape_cast %106 : vector<1x128x128xbf16> to vector<128x128xbf16>
    %cst_61 = arith.constant dense<0.000000e+00> : vector<128x128xf32>
    %108 = tpu.matmul %105, %107, %cst_61 {dimension_numbers = #tpu.dot_dimension_numbers<[1], [0], [0], [1], [0, 0, 1, 1], [], []>} : vector<128x128xbf16>, vector<128x128xbf16>, vector<128x128xf32> -> vector<128x128xf32>
    %c1_62 = arith.constant 1 : index
    %c0_63 = arith.constant 0 : index
    %c0_64 = arith.constant 0 : index
    %109 = vector.load %arg9[%c1_62, %c0_63, %c0_64] : memref<2x1x128xf32, #tpu.memory_space<vmem>>, vector<1x1x128xf32>
    %110 = vector.shape_cast %109 : vector<1x1x128xf32> to vector<1x128xf32>
    %111 = vector.broadcast %110 : vector<1x128xf32> to vector<128x128xf32>
    %112 = arith.addf %108, %111 : vector<128x128xf32>
    %113 = vector.broadcast %23 : vector<128x1xf32> to vector<128x128xf32>
    %114 = arith.mulf %112, %113 : vector<128x128xf32>
    %cst_65 = arith.constant dense<0.000000e+00> : vector<128xf32>
    %115 = vector.multi_reduction <add>, %114, %cst_65 [0] : vector<128x128xf32> to vector<128xf32>
    %116 = vector.shape_cast %115 : vector<128xf32> to vector<1x128xf32>
    %117 = vector.broadcast %25 : f32 to vector<1x128xf32>
    %118 = arith.mulf %116, %117 : vector<1x128xf32>
    %119 = arith.mulf %114, %112 : vector<128x128xf32>
    %cst_66 = arith.constant dense<0.000000e+00> : vector<128xf32>
    %120 = vector.multi_reduction <add>, %119, %cst_66 [0] : vector<128x128xf32> to vector<128xf32>
    %121 = vector.shape_cast %120 : vector<128xf32> to vector<1x128xf32>
    %122 = vector.broadcast %25 : f32 to vector<1x128xf32>
    %123 = arith.mulf %121, %122 : vector<1x128xf32>
    %124 = arith.mulf %118, %118 : vector<1x128xf32>
    %125 = arith.subf %123, %124 : vector<1x128xf32>
    %cst_67 = arith.constant 0.000000e+00 : f32
    %126 = vector.broadcast %cst_67 : f32 to vector<1x128xf32>
    %127 = arith.maximumf %125, %126 : vector<1x128xf32>
    %c1_68 = arith.constant 1 : index
    %c0_69 = arith.constant 0 : index
    %c0_70 = arith.constant 0 : index
    %128 = vector.load %arg10[%c1_68, %c0_69, %c0_70] : memref<2x1x128xf32, #tpu.memory_space<vmem>>, vector<1x1x128xf32>
    %129 = vector.shape_cast %128 : vector<1x1x128xf32> to vector<1x128xf32>
    %cst_71 = arith.constant 9.99999974E-6 : f32
    %130 = vector.broadcast %cst_71 : f32 to vector<1x128xf32>
    %131 = arith.addf %127, %130 : vector<1x128xf32>
    %132 = math.rsqrt %131 : vector<1x128xf32>
    %133 = arith.mulf %129, %132 : vector<1x128xf32>
    %c1_72 = arith.constant 1 : index
    %c0_73 = arith.constant 0 : index
    %c0_74 = arith.constant 0 : index
    %134 = vector.load %arg11[%c1_72, %c0_73, %c0_74] : memref<2x1x128xf32, #tpu.memory_space<vmem>>, vector<1x1x128xf32>
    %135 = vector.shape_cast %134 : vector<1x1x128xf32> to vector<1x128xf32>
    %136 = arith.mulf %118, %133 : vector<1x128xf32>
    %137 = arith.subf %135, %136 : vector<1x128xf32>
    %138 = vector.broadcast %133 : vector<1x128xf32> to vector<128x128xf32>
    %139 = arith.mulf %112, %138 : vector<128x128xf32>
    %140 = vector.broadcast %137 : vector<1x128xf32> to vector<128x128xf32>
    %141 = arith.addf %139, %140 : vector<128x128xf32>
    %cst_75 = arith.constant 0.000000e+00 : f32
    %142 = vector.broadcast %cst_75 : f32 to vector<128x128xf32>
    %143 = arith.maximumf %141, %142 : vector<128x128xf32>
    %144 = arith.truncf %143 : vector<128x128xf32> to vector<128x128xbf16>
    %c1_76 = arith.constant 1 : index
    %c0_77 = arith.constant 0 : index
    %c0_78 = arith.constant 0 : index
    %145 = vector.load %arg12[%c1_76, %c0_77, %c0_78] : memref<2x128x128xbf16, #tpu.memory_space<vmem>>, vector<1x128x128xbf16>
    %146 = vector.shape_cast %145 : vector<1x128x128xbf16> to vector<128x128xbf16>
    %cst_79 = arith.constant dense<0.000000e+00> : vector<128x128xf32>
    %147 = tpu.matmul %144, %146, %cst_79 {dimension_numbers = #tpu.dot_dimension_numbers<[1], [0], [0], [1], [0, 0, 1, 1], [], []>} : vector<128x128xbf16>, vector<128x128xbf16>, vector<128x128xf32> -> vector<128x128xf32>
    %c1_80 = arith.constant 1 : index
    %c0_81 = arith.constant 0 : index
    %c0_82 = arith.constant 0 : index
    %148 = vector.load %arg13[%c1_80, %c0_81, %c0_82] : memref<2x1x128xf32, #tpu.memory_space<vmem>>, vector<1x1x128xf32>
    %149 = vector.shape_cast %148 : vector<1x1x128xf32> to vector<1x128xf32>
    %150 = vector.broadcast %149 : vector<1x128xf32> to vector<128x128xf32>
    %151 = arith.addf %147, %150 : vector<128x128xf32>
    %cst_83 = arith.constant 0.000000e+00 : f32
    %152 = vector.broadcast %cst_83 : f32 to vector<128x128xf32>
    %153 = arith.maximumf %151, %152 : vector<128x128xf32>
    %154 = arith.truncf %153 : vector<128x128xf32> to vector<128x128xbf16>
    %c0_84 = arith.constant 0 : index
    %c0_85 = arith.constant 0 : index
    %155 = vector.load %arg14[%c0_84, %c0_85] : memref<128x128xbf16, #tpu.memory_space<vmem>>, vector<128x128xbf16>
    %cst_86 = arith.constant dense<0.000000e+00> : vector<128x128xf32>
    %156 = tpu.matmul %154, %155, %cst_86 {dimension_numbers = #tpu.dot_dimension_numbers<[1], [0], [0], [1], [0, 0, 1, 1], [], []>} : vector<128x128xbf16>, vector<128x128xbf16>, vector<128x128xf32> -> vector<128x128xf32>
    %cst_87 = arith.constant 0.000000e+00 : f32
    %157 = vector.broadcast %cst_87 : f32 to vector<128x128xf32>
    %158 = arith.maximumf %156, %157 : vector<128x128xf32>
    %159 = arith.truncf %158 : vector<128x128xf32> to vector<128x128xbf16>
    %c0_88 = arith.constant 0 : index
    %c0_89 = arith.constant 0 : index
    %160 = vector.load %arg15[%c0_88, %c0_89] : memref<128x128xbf16, #tpu.memory_space<vmem>>, vector<128x128xbf16>
    %cst_90 = arith.constant dense<0.000000e+00> : vector<128x128xf32>
    %161 = tpu.matmul %159, %160, %cst_90 {dimension_numbers = #tpu.dot_dimension_numbers<[1], [0], [0], [1], [0, 0, 1, 1], [], []>} : vector<128x128xbf16>, vector<128x128xbf16>, vector<128x128xf32> -> vector<128x128xf32>
    %cst_91 = arith.constant 0.000000e+00 : f32
    %162 = vector.broadcast %cst_91 : f32 to vector<128x128xf32>
    %163 = arith.maximumf %161, %162 : vector<128x128xf32>
    %164 = tpu.iota {dimensions = array<i32: 1>} : vector<128x128xi32>
    %165 = vector.broadcast %1 : i32 to vector<128x128xi32>
    %166 = arith.cmpi slt, %164, %165 : vector<128x128xi32>
    %167 = arith.extui %166 : vector<128x128xi1> to vector<128x128xi32>
    %168 = arith.sitofp %167 : vector<128x128xi32> to vector<128x128xf32>
    %169 = tpu.iota {dimensions = array<i32: 1>} : vector<128x128xi32>
    %c0_92 = arith.constant 0 : index
    %c0_93 = arith.constant 0 : index
    %170 = vector.load %arg5[%c0_92, %c0_93] : memref<128x1xi32, #tpu.memory_space<vmem>>, vector<128x1xi32>
    %171 = vector.broadcast %170 : vector<128x1xi32> to vector<128x128xi32>
    %172 = arith.cmpi eq, %169, %171 : vector<128x128xi32>
    %cst_94 = arith.constant 1.000000e+00 : f32
    %cst_95 = arith.constant 0.000000e+00 : f32
    %173 = vector.broadcast %cst_94 : f32 to vector<128x128xf32>
    %174 = vector.broadcast %cst_95 : f32 to vector<128x128xf32>
    %175 = arith.select %172, %173, %174 : vector<128x128xi1>, vector<128x128xf32>
    %cst_96 = arith.constant dense<0xFF800000> : vector<128xf32>
    %176 = vector.multi_reduction <maximumf>, %163, %cst_96 [1] : vector<128x128xf32> to vector<128xf32>
    %177 = vector.shape_cast %176 : vector<128xf32> to vector<128x1xf32>
    %178 = vector.broadcast %177 : vector<128x1xf32> to vector<128x128xf32>
    %179 = arith.mulf %175, %178 : vector<128x128xf32>
    %cst_97 = arith.constant dense<0xFF800000> : vector<128xf32>
    %180 = vector.multi_reduction <maximumf>, %179, %cst_97 [0] : vector<128x128xf32> to vector<128xf32>
    %181 = vector.shape_cast %180 : vector<128xf32> to vector<1x128xf32>
    %182 = vector.broadcast %181 : vector<1x128xf32> to vector<128x128xf32>
    %183 = arith.mulf %175, %182 : vector<128x128xf32>
    %cst_98 = arith.constant dense<0.000000e+00> : vector<128xf32>
    %184 = vector.multi_reduction <add>, %183, %cst_98 [1] : vector<128x128xf32> to vector<128xf32>
    %185 = vector.shape_cast %184 : vector<128xf32> to vector<128x1xf32>
    %186 = vector.broadcast %185 : vector<128x1xf32> to vector<128x128xf32>
    %187 = arith.subf %163, %186 : vector<128x128xf32>
    %cst_99 = arith.constant 0.000000e+00 : f32
    %188 = vector.broadcast %cst_99 : f32 to vector<128x128xf32>
    %189 = arith.minimumf %187, %188 : vector<128x128xf32>
    %190 = math.exp %189 : vector<128x128xf32>
    %191 = arith.mulf %190, %168 : vector<128x128xf32>
    %cst_100 = arith.constant dense<0.000000e+00> : vector<128xf32>
    %192 = vector.multi_reduction <add>, %191, %cst_100 [1] : vector<128x128xf32> to vector<128xf32>
    %193 = vector.shape_cast %192 : vector<128xf32> to vector<128x1xf32>
    %194 = vector.broadcast %193 : vector<128x1xf32> to vector<128x128xf32>
    %195 = arith.mulf %175, %194 : vector<128x128xf32>
    %cst_101 = arith.constant dense<0.000000e+00> : vector<128xf32>
    %196 = vector.multi_reduction <add>, %195, %cst_101 [0] : vector<128x128xf32> to vector<128xf32>
    %197 = vector.shape_cast %196 : vector<128xf32> to vector<1x128xf32>
    %198 = vector.broadcast %197 : vector<1x128xf32> to vector<128x128xf32>
    %199 = arith.mulf %175, %198 : vector<128x128xf32>
    %cst_102 = arith.constant dense<0.000000e+00> : vector<128xf32>
    %200 = vector.multi_reduction <add>, %199, %cst_102 [1] : vector<128x128xf32> to vector<128xf32>
    %201 = vector.shape_cast %200 : vector<128xf32> to vector<128x1xf32>
    %cst_103 = arith.constant 0.000000e+00 : f32
    %202 = vector.broadcast %cst_103 : f32 to vector<128x1xf32>
    %203 = arith.cmpf ogt, %201, %202 : vector<128x1xf32>
    %cst_104 = arith.constant 1.000000e+00 : f32
    %204 = vector.broadcast %cst_104 : f32 to vector<128x1xf32>
    %205 = arith.select %203, %201, %204 : vector<128x1xi1>, vector<128x1xf32>
    %206 = vector.broadcast %205 : vector<128x1xf32> to vector<128x128xf32>
    %207 = arith.divf %191, %206 : vector<128x128xf32>
    %c0_105 = arith.constant 0 : index
    %c0_106 = arith.constant 0 : index
    %208 = vector.load %arg16[%c0_105, %c0_106] : memref<128x128xf32, #tpu.memory_space<vmem>>, vector<128x128xf32>
    tpu.vector_store %arg16[%c0_105, %c0_106], %207 {strides = array<i32>} : memref<128x128xf32, #tpu.memory_space<vmem>>, vector<128x128xf32>,
    return
  }
}

</mosaic_0001>

<llo_original>
// kernel: tpu_custom_call.1
$region0: #{tpu_custom_call.1}
  #allocation0 [shape = 'u32[]', space=smem, size = 0x4, offset = 0x4, fixed_abs, tag = 'smem constant byte address 0x4 - core index']
  #allocation1 [shape = 'u32[144,128]{1,0:T(1,128)}', space=vmem, size = 0x12000, scoped, tag = 'internal scratch']
  %s0 = inlined_call_operand.hbm [shape: s32[2], index: 0, kind: input, shape index: {}]
  %s1 = inlined_call_operand.vmem [shape: f32[128,128], index: 1, kind: input, shape index: {}]
  %s2 = inlined_call_operand.hbm [shape: bf16[32,128], index: 2, kind: input, shape index: {}]
  %s3 = inlined_call_operand.vmem [shape: s32[32,1], index: 3, kind: input, shape index: {}]
  %s4 = inlined_call_operand.vmem [shape: s32[32,1], index: 4, kind: input, shape index: {}]
  %s5 = inlined_call_operand.vmem [shape: s32[128,1], index: 5, kind: input, shape index: {}]
  %s6 = inlined_call_operand.hbm [shape: bf16[2,128,128], index: 6, kind: input, shape index: {}]
  %s7 = inlined_call_operand.vmem [shape: f32[2,1,128], index: 7, kind: input, shape index: {}]
  %s8 = inlined_call_operand.hbm [shape: bf16[2,128,128], index: 8, kind: input, shape index: {}]
  %s9 = inlined_call_operand.vmem [shape: f32[2,1,128], index: 9, kind: input, shape index: {}]
  %s10 = inlined_call_operand.vmem [shape: f32[2,1,128], index: 10, kind: input, shape index: {}]
  %s11 = inlined_call_operand.vmem [shape: f32[2,1,128], index: 11, kind: input, shape index: {}]
  %s12 = inlined_call_operand.hbm [shape: bf16[2,128,128], index: 12, kind: input, shape index: {}]
  %s13 = inlined_call_operand.vmem [shape: f32[2,1,128], index: 13, kind: input, shape index: {}]
  %s14 = inlined_call_operand.vmem [shape: bf16[128,128], index: 14, kind: input, shape index: {}]
  %s15 = inlined_call_operand.hbm [shape: bf16[128,128], index: 15, kind: input, shape index: {}]
  %s16 = inlined_call_operand.hbm [shape: f32[128,128], index: 16, kind: output, shape index: {}]
  %s17 = sld [smem:[#allocation0]]
  $region98: #{tpu_custom_call.1} parent=0
    _
  %s19 = ssub.s32 1, %s17
  %s20 = scalar_select 0, %s19, %s17
  $region1: #{tpu_custom_call.1} parent=0
    #allocation2 [shape = 'u8[512]{0}', space=smem, size = 0x200, scoped, tag = 'input window, operand 0, single buffered']
    #allocation3 [shape = 's32[1]{0}', space=sflag, size = 0x4, scoped, tag = 'scoped memory for tpu_custom_call.1']
    #allocation4 [shape = 's32[1]{0}', space=sflag, size = 0x4, scoped, tag = 'scoped memory for tpu_custom_call.1']
    #allocation5 [shape = 's32[1]{0}', space=sflag, size = 0x4, scoped, tag = 'scoped memory for tpu_custom_call.1']
    #allocation6 [shape = 'u8[8192]{0}', space=vmem, size = 0x2000, scoped, tag = 'input window, operand 2, single buffered']
    #allocation7 [shape = 'u8[65536]{0}', space=vmem, size = 0x10000, scoped, tag = 'input window, operand 6, single buffered']
    #allocation8 [shape = 's32[1]{0}', space=sflag, size = 0x4, scoped, tag = 'scoped memory for tpu_custom_call.1']
    #allocation9 [shape = 'u8[65536]{0}', space=vmem, size = 0x10000, scoped, tag = 'input window, operand 8, single buffered']
    #allocation10 [shape = 'u8[65536]{0}', space=vmem, size = 0x10000, scoped, tag = 'input window, operand 12, single buffered']
    #allocation11 [shape = 's32[1]{0}', space=sflag, size = 0x4, scoped, tag = 'scoped memory for tpu_custom_call.1']
    #allocation12 [shape = 'u8[32768]{0}', space=vmem, size = 0x8000, scoped, tag = 'input window, operand 15, single buffered']
    #allocation13 [shape = 'u8[65536]{0}', space=vmem, size = 0x10000, scoped, tag = 'output window, operand 0, single buffered']
    %21 = vsyncpa [#allocation5], 0
    %22 = vsyncpa [#allocation3], 0
    %23 = vsyncpa [#allocation8], 0
    %24 = vsyncpa [#allocation11], 0
    %25 = vsyncpa [#allocation4], 0
    // Predicated region
    $region2: #{tpu_custom_call.1} parent=1 // pred_check
      _
    $region3: #{tpu_custom_call.1} parent=1 // pred_check_branch
      %27 = sbr.rel (0) target = $region5
    $region4: #{tpu_custom_call.1} parent=1 // pred_region
      %s29 = ssub.s32 16, 16
      %30 = vsyncadd [#allocation5], %s29
      %33 = dma.hbm_to_smem %s0, 16, [#allocation2], [#allocation5]
    $region5: #{tpu_custom_call.1} parent=1 // pred_fallthru
      _
    // Predicated region
    $region6: #{tpu_custom_call.1} parent=1 // pred_check
      _
    $region7: #{tpu_custom_call.1} parent=1 // pred_check_branch
      %35 = sbr.rel (0) target = $region9
    $region8: #{tpu_custom_call.1} parent=1 // pred_region
      _
    $region9: #{tpu_custom_call.1} parent=1 // pred_fallthru
      _
    // Predicated region
    $region10: #{tpu_custom_call.1} parent=1 // pred_check
      _
    $region11: #{tpu_custom_call.1} parent=1 // pred_check_branch
      %37 = sbr.rel (0) target = $region13
    $region12: #{tpu_custom_call.1} parent=1 // pred_region
      %s39 = ssub.s32 256, 256
      %40 = vsyncadd [#allocation3], %s39
      %s41 = sshll.u32 [#allocation6], 4
      %s42 = int_to_ptr.vmem [resolvable:$true] %s41
      %47 = dma.hbm_to_vmem [thread:$0]  %s2, 256, %s42, [#allocation3], 64, 64, 4
    $region13: #{tpu_custom_call.1} parent=1 // pred_fallthru
      _
    // Predicated region
    $region14: #{tpu_custom_call.1} parent=1 // pred_check
      _
    $region15: #{tpu_custom_call.1} parent=1 // pred_check_branch
      %49 = sbr.rel (0) target = $region17
    $region16: #{tpu_custom_call.1} parent=1 // pred_region
      _
    $region17: #{tpu_custom_call.1} parent=1 // pred_fallthru
      _
    // Predicated region
    $region18: #{tpu_custom_call.1} parent=1 // pred_check
      _
    $region19: #{tpu_custom_call.1} parent=1 // pred_check_branch
      %51 = sbr.rel (0) target = $region21
    $region20: #{tpu_custom_call.1} parent=1 // pred_region
      _
    $region21: #{tpu_custom_call.1} parent=1 // pred_fallthru
      _
    // Predicated region
    $region22: #{tpu_custom_call.1} parent=1 // pred_check
      _
    $region23: #{tpu_custom_call.1} parent=1 // pred_check_branch
      %53 = sbr.rel (0) target = $region25
    $region24: #{tpu_custom_call.1} parent=1 // pred_region
      _
    $region25: #{tpu_custom_call.1} parent=1 // pred_fallthru
      _
    // Predicated region
    $region26: #{tpu_custom_call.1} parent=1 // pred_check
      _
    $region27: #{tpu_custom_call.1} parent=1 // pred_check_branch
      %55 = sbr.rel (0) target = $region29
    $region28: #{tpu_custom_call.1} parent=1 // pred_region
      %s57 = ssub.s32 2048, 2048
      %58 = vsyncadd [#allocation8], %s57
      %s59 = sshll.u32 [#allocation7], 4
      %s60 = int_to_ptr.vmem [resolvable:$true] %s59
      %65 = dma.hbm_to_vmem [thread:$0]  %s6, 2048, %s60, [#allocation8], 64, 64, 4
    $region29: #{tpu_custom_call.1} parent=1 // pred_fallthru
      _
    // Predicated region
    $region30: #{tpu_custom_call.1} parent=1 // pred_check
      _
    $region31: #{tpu_custom_call.1} parent=1 // pred_check_branch
      %67 = sbr.rel (0) target = $region33
    $region32: #{tpu_custom_call.1} parent=1 // pred_region
      _
    $region33: #{tpu_custom_call.1} parent=1 // pred_fallthru
      _
    // Predicated region
    $region34: #{tpu_custom_call.1} parent=1 // pred_check
      _
    $region35: #{tpu_custom_call.1} parent=1 // pred_check_branch
      %69 = sbr.rel (0) target = $region37
    $region36: #{tpu_custom_call.1} parent=1 // pred_region
      %s71 = ssub.s32 2048, 2048
      %72 = vsyncadd [#allocation8], %s71
      %s73 = sshll.u32 [#allocation9], 4
      %s74 = int_to_ptr.vmem [resolvable:$true] %s73
      %79 = dma.hbm_to_vmem [thread:$0]  %s8, 2048, %s74, [#allocation8], 64, 64, 4
    $region37: #{tpu_custom_call.1} parent=1 // pred_fallthru
      _
    // Predicated region
    $region38: #{tpu_custom_call.1} parent=1 // pred_check
      _
    $region39: #{tpu_custom_call.1} parent=1 // pred_check_branch
      %81 = sbr.rel (0) target = $region41
    $region40: #{tpu_custom_call.1} parent=1 // pred_region
      _
    $region41: #{tpu_custom_call.1} parent=1 // pred_fallthru
      _
    // Predicated region
    $region42: #{tpu_custom_call.1} parent=1 // pred_check
      _
    $region43: #{tpu_custom_call.1} parent=1 // pred_check_branch
      %83 = sbr.rel (0) target = $region45
    $region44: #{tpu_custom_call.1} parent=1 // pred_region
      _
    $region45: #{tpu_custom_call.1} parent=1 // pred_fallthru
      _
    // Predicated region
    $region46: #{tpu_custom_call.1} parent=1 // pred_check
      _
    $region47: #{tpu_custom_call.1} parent=1 // pred_check_branch
      %85 = sbr.rel (0) target = $region49
    $region48: #{tpu_custom_call.1} parent=1 // pred_region
      _
    $region49: #{tpu_custom_call.1} parent=1 // pred_fallthru
      _
    // Predicated region
    $region50: #{tpu_custom_call.1} parent=1 // pred_check
      _
    $region51: #{tpu_custom_call.1} parent=1 // pred_check_branch
      %87 = sbr.rel (0) target = $region53
    $region52: #{tpu_custom_call.1} parent=1 // pred_region
      %s89 = ssub.s32 2048, 2048
      %90 = vsyncadd [#allocation11], %s89
      %s91 = sshll.u32 [#allocation10], 4
      %s92 = int_to_ptr.vmem [resolvable:$true] %s91
      %97 = dma.hbm_to_vmem [thread:$0]  %s12, 2048, %s92, [#allocation11], 64, 64, 4
    $region53: #{tpu_custom_call.1} parent=1 // pred_fallthru
      _
    // Predicated region
    $region54: #{tpu_custom_call.1} parent=1 // pred_check
      _
    $region55: #{tpu_custom_call.1} parent=1 // pred_check_branch
      %99 = sbr.rel (0) target = $region57
    $region56: #{tpu_custom_call.1} parent=1 // pred_region
      _
    $region57: #{tpu_custom_call.1} parent=1 // pred_fallthru
      _
    // Predicated region
    $region58: #{tpu_custom_call.1} parent=1 // pred_check
      _
    $region59: #{tpu_custom_call.1} parent=1 // pred_check_branch
      %101 = sbr.rel (0) target = $region61
    $region60: #{tpu_custom_call.1} parent=1 // pred_region
      _
    $region61: #{tpu_custom_call.1} parent=1 // pred_fallthru
      _
    // Predicated region
    $region62: #{tpu_custom_call.1} parent=1 // pred_check
      _
    $region63: #{tpu_custom_call.1} parent=1 // pred_check_branch
      %103 = sbr.rel (0) target = $region65
    $region64: #{tpu_custom_call.1} parent=1 // pred_region
      %s105 = ssub.s32 1024, 1024
      %106 = vsyncadd [#allocation11], %s105
      %s107 = sshll.u32 [#allocation12], 4
      %s108 = int_to_ptr.vmem [resolvable:$true] %s107
      %113 = dma.hbm_to_vmem [thread:$0]  %s15, 1024, %s108, [#allocation11], 64, 64, 4
    $region65: #{tpu_custom_call.1} parent=1 // pred_fallthru
      _
    // Predicated region
    $region66: #{tpu_custom_call.1} parent=1 // pred_check
      _
    $region67: #{tpu_custom_call.1} parent=1 // pred_check_branch
      %115 = sbr.rel (0) target = $region69
    $region68: #{tpu_custom_call.1} parent=1 // pred_region
      %116 = dma.done [#allocation5], 16
    $region69: #{tpu_custom_call.1} parent=1 // pred_fallthru
      _
    // Predicated region
    $region70: #{tpu_custom_call.1} parent=1 // pred_check
      _
    $region71: #{tpu_custom_call.1} parent=1 // pred_check_branch
      %118 = sbr.rel (0) target = $region73
    $region72: #{tpu_custom_call.1} parent=1 // pred_region
      %119 = dma.done [#allocation3], 256
    $region73: #{tpu_custom_call.1} parent=1 // pred_fallthru
      _
    // Predicated region
    $region74: #{tpu_custom_call.1} parent=1 // pred_check
      _
    $region75: #{tpu_custom_call.1} parent=1 // pred_check_branch
      %121 = sbr.rel (0) target = $region77
    $region76: #{tpu_custom_call.1} parent=1 // pred_region
      %122 = dma.done [#allocation8], 2048
    $region77: #{tpu_custom_call.1} parent=1 // pred_fallthru
      _
    // Predicated region
    $region78: #{tpu_custom_call.1} parent=1 // pred_check
      _
    $region79: #{tpu_custom_call.1} parent=1 // pred_check_branch
      %124 = sbr.rel (0) target = $region81
    $region80: #{tpu_custom_call.1} parent=1 // pred_region
      %125 = dma.done [#allocation8], 2048
    $region81: #{tpu_custom_call.1} parent=1 // pred_fallthru
      _
    // Predicated region
    $region82: #{tpu_custom_call.1} parent=1 // pred_check
      _
    $region83: #{tpu_custom_call.1} parent=1 // pred_check_branch
      %127 = sbr.rel (0) target = $region85
    $region84: #{tpu_custom_call.1} parent=1 // pred_region
      %128 = dma.done [#allocation11], 2048
    $region85: #{tpu_custom_call.1} parent=1 // pred_fallthru
      _
    // Predicated region
    $region86: #{tpu_custom_call.1} parent=1 // pred_check
      _
    $region87: #{tpu_custom_call.1} parent=1 // pred_check_branch
      %130 = sbr.rel (0) target = $region89
    $region88: #{tpu_custom_call.1} parent=1 // pred_region
      %131 = dma.done [#allocation11], 1024
    $region89: #{tpu_custom_call.1} parent=1 // pred_fallthru
      _
    %132 = sfence
    %s134 = sld [smem:[#allocation2]]
    %s135 = sld [smem:[#allocation2 + $0x1]]
    %v136 = vld [vmem:[%s1] sm:$0xff]
    %v137 = vld [vmem:[%s1 + $0x8] sm:$0xff]
    %v138 = vld [vmem:[%s1 + $0x10] sm:$0xff]
    %v139 = vld [vmem:[%s1 + $0x18] sm:$0xff]
    %v140 = vld [vmem:[%s1 + $0x20] sm:$0xff]
    %v141 = vld [vmem:[%s1 + $0x28] sm:$0xff]
    %v142 = vld [vmem:[%s1 + $0x30] sm:$0xff]
    %v143 = vld [vmem:[%s1 + $0x38] sm:$0xff]
    %v144 = vld [vmem:[%s1 + $0x40] sm:$0xff]
    %v145 = vld [vmem:[%s1 + $0x48] sm:$0xff]
    %v146 = vld [vmem:[%s1 + $0x50] sm:$0xff]
    %v147 = vld [vmem:[%s1 + $0x58] sm:$0xff]
    %v148 = vld [vmem:[%s1 + $0x60] sm:$0xff]
    %v149 = vld [vmem:[%s1 + $0x68] sm:$0xff]
    %v150 = vld [vmem:[%s1 + $0x70] sm:$0xff]
    %v151 = vld [vmem:[%s1 + $0x78] sm:$0xff]
    %v152 = vld [vmem:[#allocation6] sm:$0xf]
    %v153 = vld [vmem:[#allocation6 + $0x4] sm:$0xf]
    %v154 = vld [vmem:[#allocation6 + $0x8] sm:$0xf]
    %v155 = vld [vmem:[#allocation6 + $0xc] sm:$0xf]
    %v156 = vlaneseq
    %v157 = vand.u32 %v156, 127
    %v158 = vld [vmem:[%s3] sm:$0xff]
    %v159 = vld [vmem:[%s3 + $0x8] sm:$0xff]
    %v160 = vld [vmem:[%s3 + $0x10] sm:$0xff]
    %v161 = vld [vmem:[%s3 + $0x18] sm:$0xff]
    %162 = vset.pattern.permute.xlu0 0
    %163 = vperm.xlu0 %162, %v158
    %v164 = vpop.permute.xlu0 %163
    %165 = vset.pattern.permute.xlu0 0
    %166 = vperm.xlu0 %165, %v159
    %v167 = vpop.permute.xlu0 %166
    %168 = vset.pattern.permute.xlu0 0
    %169 = vperm.xlu0 %168, %v160
    %v170 = vpop.permute.xlu0 %169
    %171 = vset.pattern.permute.xlu0 0
    %172 = vperm.xlu0 %171, %v161
    %v173 = vpop.permute.xlu0 %172
    %vm174 = vcmp.eq.s32.totalorder %v157, %v164
    %vm175 = vcmp.eq.s32.totalorder %v157, %v167
    %vm176 = vcmp.eq.s32.totalorder %v157, %v170
    %vm177 = vcmp.eq.s32.totalorder %v157, %v173
    %v178 = vsel %vm174, 1.0, 0.0
    %v179 = vsel %vm175, 1.0, 0.0
    %v180 = vsel %vm176, 1.0, 0.0
    %v181 = vsel %vm177, 1.0, 0.0
    %v182 = vpack.c.bf16 %v179, %v178
    %v183 = vpack.c.bf16 %v181, %v180
    %v184 = vld [vmem:[%s4] sm:$0xff]
    %v185 = vld [vmem:[%s4 + $0x8] sm:$0xff]
    %v186 = vld [vmem:[%s4 + $0x10] sm:$0xff]
    %v187 = vld [vmem:[%s4 + $0x18] sm:$0xff]
    %188 = vset.pattern.permute.xlu0 0
    %189 = vperm.xlu0 %188, %v184
    %v190 = vpop.permute.xlu0 %189
    %191 = vset.pattern.permute.xlu0 0
    %192 = vperm.xlu0 %191, %v185
    %v193 = vpop.permute.xlu0 %192
    %194 = vset.pattern.permute.xlu0 0
    %195 = vperm.xlu0 %194, %v186
    %v196 = vpop.permute.xlu0 %195
    %197 = vset.pattern.permute.xlu0 0
    %198 = vperm.xlu0 %197, %v187
    %v199 = vpop.permute.xlu0 %198
    %vm200 = vcmp.eq.s32.totalorder %v157, %v190
    %vm201 = vcmp.eq.s32.totalorder %v157, %v193
    %vm202 = vcmp.eq.s32.totalorder %v157, %v196
    %vm203 = vcmp.eq.s32.totalorder %v157, %v199
    %v204 = vsel %vm200, 1.0, 0.0
    %v205 = vsel %vm201, 1.0, 0.0
    %v206 = vsel %vm202, 1.0, 0.0
    %v207 = vsel %vm203, 1.0, 0.0
    %v208 = vpack.c.bf16 %v205, %v204
    %v209 = vpack.c.bf16 %v207, %v206
    %v210 = vlaneseq
    %v211 = vshrl.u32 %v210, 7
    %v212 = vadd.s32 %v211, 8
    %v213 = vadd.s32 %v211, 16
    %v214 = vadd.s32 %v211, 24
    %v215 = vadd.s32 %v211, 32
    %v216 = vadd.s32 %v211, 40
    %v217 = vadd.s32 %v211, 48
    %v218 = vadd.s32 %v211, 56
    %v219 = vadd.s32 %v211, 64
    %v220 = vadd.s32 %v211, 72
    %v221 = vadd.s32 %v211, 80
    %v222 = vadd.s32 %v211, 88
    %v223 = vadd.s32 %v211, 96
    %v224 = vadd.s32 %v211, 104
    %v225 = vadd.s32 %v211, 112
    %v226 = vadd.s32 %v211, 120
    %v227 = vstv %s134
    %vm228 = vcmp.lt.s32.totalorder %v211, %v227
    %vm229 = vcmp.lt.s32.totalorder %v212, %v227
    %vm230 = vcmp.lt.s32.totalorder %v213, %v227
    %vm231 = vcmp.lt.s32.totalorder %v214, %v227
    %vm232 = vcmp.lt.s32.totalorder %v215, %v227
    %vm233 = vcmp.lt.s32.totalorder %v216, %v227
    %vm234 = vcmp.lt.s32.totalorder %v217, %v227
    %vm235 = vcmp.lt.s32.totalorder %v218, %v227
    %vm236 = vcmp.lt.s32.totalorder %v219, %v227
    %vm237 = vcmp.lt.s32.totalorder %v220, %v227
    %vm238 = vcmp.lt.s32.totalorder %v221, %v227
    %vm239 = vcmp.lt.s32.totalorder %v222, %v227
    %vm240 = vcmp.lt.s32.totalorder %v223, %v227
    %vm241 = vcmp.lt.s32.totalorder %v224, %v227
    %vm242 = vcmp.lt.s32.totalorder %v225, %v227
    %vm243 = vcmp.lt.s32.totalorder %v226, %v227
    %v244 = vsel %vm228, 1, 0
    %v245 = vsel %vm229, 1, 0
    %v246 = vsel %vm230, 1, 0
    %v247 = vsel %vm231, 1, 0
    %v248 = vsel %vm232, 1, 0
    %v249 = vsel %vm233, 1, 0
    %v250 = vsel %vm234, 1, 0
    %v251 = vsel %vm235, 1, 0
    %v252 = vsel %vm236, 1, 0
    %v253 = vsel %vm237, 1, 0
    %v254 = vsel %vm238, 1, 0
    %v255 = vsel %vm239, 1, 0
    %v256 = vsel %vm240, 1, 0
    %v257 = vsel %vm241, 1, 0
    %v258 = vsel %vm242, 1, 0
    %v259 = vsel %vm243, 1, 0
    %v260 = vcvt.s32.f32 %v244
    %v261 = vcvt.s32.f32 %v245
    %v262 = vcvt.s32.f32 %v246
    %v263 = vcvt.s32.f32 %v247
    %v264 = vcvt.s32.f32 %v248
    %v265 = vcvt.s32.f32 %v249
    %v266 = vcvt.s32.f32 %v250
    %v267 = vcvt.s32.f32 %v251
    %v268 = vcvt.s32.f32 %v252
    %v269 = vcvt.s32.f32 %v253
    %v270 = vcvt.s32.f32 %v254
    %v271 = vcvt.s32.f32 %v255
    %v272 = vcvt.s32.f32 %v256
    %v273 = vcvt.s32.f32 %v257
    %v274 = vcvt.s32.f32 %v258
    %v275 = vcvt.s32.f32 %v259
    %s276 = scvt.s32.f32 %s134
    %v277 = vstv %s276
    %v278 = vrcp.pop %v277
    %s279 = vtos %v278
    %v280 = vld [vmem:[#allocation7] sm:$0xf]
    %v281 = vld [vmem:[#allocation7 + $0x4] sm:$0xf]
    %v282 = vld [vmem:[#allocation7 + $0x8] sm:$0xf]
    %v283 = vld [vmem:[#allocation7 + $0xc] sm:$0xf]
    %v284 = vld [vmem:[#allocation7 + $0x10] sm:$0xf]
    %v285 = vld [vmem:[#allocation7 + $0x14] sm:$0xf]
    %v286 = vld [vmem:[#allocation7 + $0x18] sm:$0xf]
    %v287 = vld [vmem:[#allocation7 + $0x1c] sm:$0xf]
    %v288 = vld [vmem:[#allocation7 + $0x20] sm:$0xf]
    %v289 = vld [vmem:[#allocation7 + $0x24] sm:$0xf]
    %v290 = vld [vmem:[#allocation7 + $0x28] sm:$0xf]
    %v291 = vld [vmem:[#allocation7 + $0x2c] sm:$0xf]
    %v292 = vld [vmem:[#allocation7 + $0x30] sm:$0xf]
    %v293 = vld [vmem:[#allocation7 + $0x34] sm:$0xf]
    %v294 = vld [vmem:[#allocation7 + $0x38] sm:$0xf]
    %v295 = vld [vmem:[#allocation7 + $0x3c] sm:$0xf]
    %v296 = vld [vmem:[%s7] sm:$0x1]
    %v298 = vlaneseq
    %v299 = vshrl.u32 %v298, 7
    %v300 = vsub.s32 0, %v299
    %v301 = vrot.slane %v296, %v300
    %v307 = vunpack.c.l.b16 %v152
    %v308 = vunpack.c.l.b16 %v153
    %v309 = vunpack.c.l.b16 %v154
    %v310 = vunpack.c.l.b16 %v155
    %v311 = vpack.c.b16 %v308, %v307
    %v312 = vpack.c.b16 %v310, %v309
    %v331 = vunpack.c.l.b16 %v280
    %v332 = vunpack.c.l.b16 %v281
    %v333 = vunpack.c.l.b16 %v282
    %v334 = vunpack.c.l.b16 %v283
    %v335 = vunpack.c.l.b16 %v284
    %v336 = vunpack.c.l.b16 %v285
    %v337 = vunpack.c.l.b16 %v286
    %v338 = vunpack.c.l.b16 %v287
    %v339 = vunpack.c.l.b16 %v288
    %v340 = vunpack.c.l.b16 %v289
    %v341 = vunpack.c.l.b16 %v290
    %v342 = vunpack.c.l.b16 %v291
    %v343 = vunpack.c.l.b16 %v292
    %v344 = vunpack.c.l.b16 %v293
    %v345 = vunpack.c.l.b16 %v294
    %v346 = vunpack.c.l.b16 %v295
    %v347 = vpack.c.b16 %v332, %v331
    %v348 = vpack.c.b16 %v334, %v333
    %v349 = vpack.c.b16 %v336, %v335
    %v350 = vpack.c.b16 %v338, %v337
    %v351 = vpack.c.b16 %v340, %v339
    %v352 = vpack.c.b16 %v342, %v341
    %v353 = vpack.c.b16 %v344, %v343
    %v354 = vpack.c.b16 %v346, %v345
    %363 = vmatprep.subr.bf16.mxu0 0
    %364 = vmatpush1.bf16.msra.mxu0 %v347
    %365 = vmatprep.subr.bf16.mxu0 0
    %366 = vmatpush1.bf16.msra.mxu0 %v348
    %367 = vmatprep.subr.bf16.mxu0 0
    %368 = vmatpush1.bf16.msra.mxu0 %v349
    %369 = vmatprep.subr.bf16.mxu0 0
    %370 = vmatpush1.bf16.msra.mxu0 %v350
    %371 = vmatprep.subr.bf16.mxu0 0
    %372 = vmatpush1.bf16.msra.mxu0 %v351
    %373 = vmatprep.subr.bf16.mxu0 0
    %374 = vmatpush1.bf16.msra.mxu0 %v352
    %375 = vmatprep.subr.bf16.mxu0 0
    %376 = vmatpush1.bf16.msra.mxu0 %v353
    %377 = vmatprep.subr.bf16.mxu0 0
    %378 = vmatpush1.bf16.msra.mxu0 %v354
    %379 = vmatprep.subr.bf16.mxu0 0
    %380 = vmatpush1.bf16.msra.mxu0 0
    %381 = vmatprep.subr.bf16.mxu0 0
    %382 = vmatpush1.bf16.msra.mxu0 0
    %383 = vmatprep.subr.bf16.mxu0 0
    %384 = vmatpush1.bf16.msra.mxu0 0
    %385 = vmatprep.subr.bf16.mxu0 0
    %386 = vmatpush1.bf16.msra.mxu0 0
    %387 = vmatprep.subr.bf16.mxu0 0
    %388 = vmatpush1.bf16.msra.mxu0 0
    %389 = vmatprep.subr.bf16.mxu0 0
    %390 = vmatpush1.bf16.msra.mxu0 0
    %391 = vmatprep.subr.bf16.mxu0 0
    %392 = vmatpush1.bf16.msra.mxu0 0
    %393 = vmatprep.subr.bf16.mxu0 0
    %394 = vmatpush1.bf16.msra.mxu0 0
    %395 = vmatprep.mubr.bf16.mxu0 0
    %396 = vmatmul.mubr.bf16.gmra.mrb[0].mxu0 %v311
    %v397 = vpop.f32.mrb[0].mxu0
    %v398 = vadd.f32 %v301, %v397
    %v399 = vpop.f32.mrb[0].mxu0
    %v400 = vpop.f32.mrb[0].mxu0
    %v401 = vadd.f32 %v301, %v400
    %v402 = vpop.f32.mrb[0].mxu0
    %403 = vmatprep.mubr.bf16.mxu0 0
    %404 = vmatmul.mubr.bf16.gmra.mrb[0].mxu0 %v312
    %v405 = vpop.f32.mrb[0].mxu0
    %v406 = vadd.f32 %v301, %v405
    %v407 = vpop.f32.mrb[0].mxu0
    %v408 = vpop.f32.mrb[0].mxu0
    %v409 = vadd.f32 %v301, %v408
    %v410 = vpop.f32.mrb[0].mxu0
    %411 = vdwg.mxu0
    %v412 = vpack.c.bf16 %v137, %v136
    %v413 = vpack.c.bf16 %v139, %v138
    %v414 = vpack.c.bf16 %v141, %v140
    %v415 = vpack.c.bf16 %v143, %v142
    %v416 = vpack.c.bf16 %v145, %v144
    %v417 = vpack.c.bf16 %v147, %v146
    %v418 = vpack.c.bf16 %v149, %v148
    %v419 = vpack.c.bf16 %v151, %v150
    %420 = vmatprep.subr.bf16.mxu0 0
    %421 = vmatpush1.bf16.msra.mxu0 %v412
    %422 = vmatprep.subr.bf16.mxu0 0
    %423 = vmatpush1.bf16.msra.mxu0 %v413
    %424 = vmatprep.subr.bf16.mxu0 0
    %425 = vmatpush1.bf16.msra.mxu0 %v414
    %426 = vmatprep.subr.bf16.mxu0 0
    %427 = vmatpush1.bf16.msra.mxu0 %v415
    %428 = vmatprep.subr.bf16.mxu0 0
    %429 = vmatpush1.bf16.msra.mxu0 %v416
    %430 = vmatprep.subr.bf16.mxu0 0
    %431 = vmatpush1.bf16.msra.mxu0 %v417
    %432 = vmatprep.subr.bf16.mxu0 0
    %433 = vmatpush1.bf16.msra.mxu0 %v418
    %434 = vmatprep.subr.bf16.mxu0 0
    %435 = vmatpush1.bf16.msra.mxu0 %v419
    %436 = vmatprep.subr.bf16.mxu0 0
    %437 = vmatpush1.bf16.msra.mxu0 0
    %438 = vmatprep.subr.bf16.mxu0 0
    %439 = vmatpush1.bf16.msra.mxu0 0
    %440 = vmatprep.subr.bf16.mxu0 0
    %441 = vmatpush1.bf16.msra.mxu0 0
    %442 = vmatprep.subr.bf16.mxu0 0
    %443 = vmatpush1.bf16.msra.mxu0 0
    %444 = vmatprep.subr.bf16.mxu0 0
    %445 = vmatpush1.bf16.msra.mxu0 0
    %446 = vmatprep.subr.bf16.mxu0 0
    %447 = vmatpush1.bf16.msra.mxu0 0
    %448 = vmatprep.subr.bf16.mxu0 0
    %449 = vmatpush1.bf16.msra.mxu0 0
    %450 = vmatprep.subr.bf16.mxu0 0
    %451 = vmatpush1.bf16.msra.mxu0 0
    %452 = vmatprep.mubr.bf16.mxu0 0
    %453 = vmatmul.mubr.bf16.gmra.mrb[0].mxu0 %v182
    %v454 = vpop.f32.mrb[0].mxu0
    %v455 = vadd.f32 %v398, %v454
    %v456 = vpop.f32.mrb[0].mxu0
    %v457 = vpop.f32.mrb[0].mxu0
    %v458 = vadd.f32 %v401, %v457
    %v459 = vpop.f32.mrb[0].mxu0
    %460 = vmatprep.mubr.bf16.mxu0 0
    %461 = vmatmul.mubr.bf16.gmra.mrb[0].mxu0 %v183
    %v462 = vpop.f32.mrb[0].mxu0
    %v463 = vadd.f32 %v406, %v462
    %v464 = vpop.f32.mrb[0].mxu0
    %v465 = vpop.f32.mrb[0].mxu0
    %v466 = vadd.f32 %v409, %v465
    %v467 = vpop.f32.mrb[0].mxu0
    %468 = vdwg.mxu0
    %v469 = vmax.f32 %v455, 0.0
    %v470 = vmax.f32 %v458, 0.0
    %v471 = vmax.f32 %v463, 0.0
    %v472 = vmax.f32 %v466, 0.0
    %v473 = vpack.c.bf16 %v470, %v469
    %v474 = vpack.c.bf16 %v472, %v471
    %475 = vxpose.xlu0.c.b16.start [1/8] %v208, 128
    %476 = vxpose.xlu0.c.b16.cont [2/8] %v209, 128
    %477 = vxpose.xlu0.c.b16.cont [3/8] 0, 128
    %478 = vxpose.xlu0.c.b16.cont [4/8] 0, 128
    %479 = vxpose.xlu0.c.b16.cont [5/8] 0, 128
    %480 = vxpose.xlu0.c.b16.cont [6/8] 0, 128
    %481 = vxpose.xlu0.c.b16.cont [7/8] 0, 128
    %482 = vxpose.xlu0.c.b16.end [8/8] 0, 128
    %v483 = vpop.trf.xlu0
    %v484 = vpop.trf.xlu0
    %v485 = vpop.trf.xlu0
    %v486 = vpop.trf.xlu0
    %v487 = vpop.trf.xlu0
    %v488 = vpop.trf.xlu0
    %v489 = vpop.trf.xlu0
    %v490 = vpop.trf.xlu0
    %vm491 = vcmask 261120
    %v493 = vsel %vm491, %v483, 0
    %v496 = vsel %vm491, %v484, 0
    %v499 = vsel %vm491, %v485, 0
    %v502 = vsel %vm491, %v486, 0
    %v505 = vsel %vm491, %v487, 0
    %v508 = vsel %vm491, %v488, 0
    %v511 = vsel %vm491, %v489, 0
    %v514 = vsel %vm491, %v490, 0
    %516 = vmatprep.subr.bf16.mxu0 0
    %517 = vmatpush1.bf16.msra.mxu0 %v473
    %518 = vmatprep.subr.bf16.mxu0 0
    %519 = vmatpush1.bf16.msra.mxu0 %v474
    %520 = vmatprep.subr.bf16.mxu0 0
    %521 = vmatpush1.bf16.msra.mxu0 0
    %522 = vmatprep.subr.bf16.mxu0 0
    %523 = vmatpush1.bf16.msra.mxu0 0
    %524 = vmatprep.subr.bf16.mxu0 0
    %525 = vmatpush1.bf16.msra.mxu0 0
    %526 = vmatprep.subr.bf16.mxu0 0
    %527 = vmatpush1.bf16.msra.mxu0 0
    %528 = vmatprep.subr.bf16.mxu0 0
    %529 = vmatpush1.bf16.msra.mxu0 0
    %530 = vmatprep.subr.bf16.mxu0 0
    %531 = vmatpush1.bf16.msra.mxu0 0
    %532 = vmatprep.subr.bf16.mxu0 0
    %533 = vmatpush1.bf16.msra.mxu0 0
    %534 = vmatprep.subr.bf16.mxu0 0
    %535 = vmatpush1.bf16.msra.mxu0 0
    %536 = vmatprep.subr.bf16.mxu0 0
    %537 = vmatpush1.bf16.msra.mxu0 0
    %538 = vmatprep.subr.bf16.mxu0 0
    %539 = vmatpush1.bf16.msra.mxu0 0
    %540 = vmatprep.subr.bf16.mxu0 0
    %541 = vmatpush1.bf16.msra.mxu0 0
    %542 = vmatprep.subr.bf16.mxu0 0
    %543 = vmatpush1.bf16.msra.mxu0 0
    %544 = vmatprep.subr.bf16.mxu0 0
    %545 = vmatpush1.bf16.msra.mxu0 0
    %546 = vmatprep.subr.bf16.mxu0 0
    %547 = vmatpush1.bf16.msra.mxu0 0
    %548 = vmatprep.mubr.bf16.mxu0 0
    %549 = vmatmul.mubr.bf16.gmra.mrb[0].mxu0 %v493
    %v550 = vpop.f32.mrb[0].mxu0
    %v551 = vadd.f32 0.0, %v550
    %v552 = vpop.f32.mrb[0].mxu0
    %v553 = vpop.f32.mrb[0].mxu0
    %v554 = vadd.f32 0.0, %v553
    %v555 = vpop.f32.mrb[0].mxu0
    %556 = vmatprep.mubr.bf16.mxu0 0
    %557 = vmatmul.mubr.bf16.gmra.mrb[0].mxu0 %v496
    %v558 = vpop.f32.mrb[0].mxu0
    %v559 = vadd.f32 0.0, %v558
    %v560 = vpop.f32.mrb[0].mxu0
    %v561 = vpop.f32.mrb[0].mxu0
    %v562 = vadd.f32 0.0, %v561
    %v563 = vpop.f32.mrb[0].mxu0
    %564 = vmatprep.mubr.bf16.mxu0 0
    %565 = vmatmul.mubr.bf16.gmra.mrb[0].mxu0 %v499
    %v566 = vpop.f32.mrb[0].mxu0
    %v567 = vadd.f32 0.0, %v566
    %v568 = vpop.f32.mrb[0].mxu0
    %v569 = vpop.f32.mrb[0].mxu0
    %v570 = vadd.f32 0.0, %v569
    %v571 = vpop.f32.mrb[0].mxu0
    %572 = vmatprep.mubr.bf16.mxu0 0
    %573 = vmatmul.mubr.bf16.gmra.mrb[0].mxu0 %v502
    %v574 = vpop.f32.mrb[0].mxu0
    %v575 = vadd.f32 0.0, %v574
    %v576 = vpop.f32.mrb[0].mxu0
    %v577 = vpop.f32.mrb[0].mxu0
    %v578 = vadd.f32 0.0, %v577
    %v579 = vpop.f32.mrb[0].mxu0
    %580 = vmatprep.mubr.bf16.mxu0 0
    %581 = vmatmul.mubr.bf16.gmra.mrb[0].mxu0 %v505
    %v582 = vpop.f32.mrb[0].mxu0
    %v583 = vadd.f32 0.0, %v582
    %v584 = vpop.f32.mrb[0].mxu0
    %v585 = vpop.f32.mrb[0].mxu0
    %v586 = vadd.f32 0.0, %v585
    %v587 = vpop.f32.mrb[0].mxu0
    %588 = vmatprep.mubr.bf16.mxu0 0
    %589 = vmatmul.mubr.bf16.gmra.mrb[0].mxu0 %v508
    %v590 = vpop.f32.mrb[0].mxu0
    %v591 = vadd.f32 0.0, %v590
    %v592 = vpop.f32.mrb[0].mxu0
    %v593 = vpop.f32.mrb[0].mxu0
    %v594 = vadd.f32 0.0, %v593
    %v595 = vpop.f32.mrb[0].mxu0
    %596 = vmatprep.mubr.bf16.mxu0 0
    %597 = vmatmul.mubr.bf16.gmra.mrb[0].mxu0 %v511
    %v598 = vpop.f32.mrb[0].mxu0
    %v599 = vadd.f32 0.0, %v598
    %v600 = vpop.f32.mrb[0].mxu0
    %v601 = vpop.f32.mrb[0].mxu0
    %v602 = vadd.f32 0.0, %v601
    %v603 = vpop.f32.mrb[0].mxu0
    %604 = vmatprep.mubr.bf16.mxu0 0
    %605 = vmatmul.mubr.bf16.gmra.mrb[0].mxu0 %v514
    %v606 = vpop.f32.mrb[0].mxu0
    %v607 = vadd.f32 0.0, %v606
    %v608 = vpop.f32.mrb[0].mxu0
    %v609 = vpop.f32.mrb[0].mxu0
    %v610 = vadd.f32 0.0, %v609
    %v611 = vpop.f32.mrb[0].mxu0
    %612 = vdwg.mxu0
    %v613 = vadd.f32 %v136, %v551
    %v614 = vadd.f32 %v137, %v554
    %v615 = vadd.f32 %v138, %v559
    %v616 = vadd.f32 %v139, %v562
    %v617 = vadd.f32 %v140, %v567
    %v618 = vadd.f32 %v141, %v570
    %v619 = vadd.f32 %v142, %v575
    %v620 = vadd.f32 %v143, %v578
    %v621 = vadd.f32 %v144, %v583
    %v622 = vadd.f32 %v145, %v586
    %v623 = vadd.f32 %v146, %v591
    %v624 = vadd.f32 %v147, %v594
    %v625 = vadd.f32 %v148, %v599
    %v626 = vadd.f32 %v149, %v602
    %v627 = vadd.f32 %v150, %v607
    %v628 = vadd.f32 %v151, %v610
    %v629 = vpack.c.bf16 %v614, %v613
    %v630 = vpack.c.bf16 %v616, %v615
    %v631 = vpack.c.bf16 %v618, %v617
    %v632 = vpack.c.bf16 %v620, %v619
    %v633 = vpack.c.bf16 %v622, %v621
    %v634 = vpack.c.bf16 %v624, %v623
    %v635 = vpack.c.bf16 %v626, %v625
    %v636 = vpack.c.bf16 %v628, %v627
    %v637 = vld [vmem:[#allocation9] sm:$0xf]
    %v638 = vld [vmem:[#allocation9 + $0x4] sm:$0xf]
    %v639 = vld [vmem:[#allocation9 + $0x8] sm:$0xf]
    %v640 = vld [vmem:[#allocation9 + $0xc] sm:$0xf]
    %v641 = vld [vmem:[#allocation9 + $0x10] sm:$0xf]
    %v642 = vld [vmem:[#allocation9 + $0x14] sm:$0xf]
    %v643 = vld [vmem:[#allocation9 + $0x18] sm:$0xf]
    %v644 = vld [vmem:[#allocation9 + $0x1c] sm:$0xf]
    %v645 = vld [vmem:[#allocation9 + $0x20] sm:$0xf]
    %v646 = vld [vmem:[#allocation9 + $0x24] sm:$0xf]
    %v647 = vld [vmem:[#allocation9 + $0x28] sm:$0xf]
    %v648 = vld [vmem:[#allocation9 + $0x2c] sm:$0xf]
    %v649 = vld [vmem:[#allocation9 + $0x30] sm:$0xf]
    %v650 = vld [vmem:[#allocation9 + $0x34] sm:$0xf]
    %v651 = vld [vmem:[#allocation9 + $0x38] sm:$0xf]
    %v652 = vld [vmem:[#allocation9 + $0x3c] sm:$0xf]
    %v653 = vld [vmem:[%s9] sm:$0x1]
    %v655 = vlaneseq
    %v656 = vshrl.u32 %v655, 7
    %v657 = vsub.s32 0, %v656
    %v658 = vrot.slane %v653, %v657
    %v676 = vunpack.c.l.b16 %v637
    %v677 = vunpack.c.l.b16 %v638
    %v678 = vunpack.c.l.b16 %v639
    %v679 = vunpack.c.l.b16 %v640
    %v680 = vunpack.c.l.b16 %v641
    %v681 = vunpack.c.l.b16 %v642
    %v682 = vunpack.c.l.b16 %v643
    %v683 = vunpack.c.l.b16 %v644
    %v684 = vunpack.c.l.b16 %v645
    %v685 = vunpack.c.l.b16 %v646
    %v686 = vunpack.c.l.b16 %v647
    %v687 = vunpack.c.l.b16 %v648
    %v688 = vunpack.c.l.b16 %v649
    %v689 = vunpack.c.l.b16 %v650
    %v690 = vunpack.c.l.b16 %v651
    %v691 = vunpack.c.l.b16 %v652
    %v692 = vpack.c.b16 %v677, %v676
    %v693 = vpack.c.b16 %v679, %v678
    %v694 = vpack.c.b16 %v681, %v680
    %v695 = vpack.c.b16 %v683, %v682
    %v696 = vpack.c.b16 %v685, %v684
    %v697 = vpack.c.b16 %v687, %v686
    %v698 = vpack.c.b16 %v689, %v688
    %v699 = vpack.c.b16 %v691, %v690
    %708 = vmatprep.subr.bf16.mxu0 0
    %709 = vmatpush1.bf16.msra.mxu0 %v692
    %710 = vmatprep.subr.bf16.mxu0 0
    %711 = vmatpush1.bf16.msra.mxu0 %v693
    %712 = vmatprep.subr.bf16.mxu0 0
    %713 = vmatpush1.bf16.msra.mxu0 %v694
    %714 = vmatprep.subr.bf16.mxu0 0
    %715 = vmatpush1.bf16.msra.mxu0 %v695
    %716 = vmatprep.subr.bf16.mxu0 0
    %717 = vmatpush1.bf16.msra.mxu0 %v696
    %718 = vmatprep.subr.bf16.mxu0 0
    %719 = vmatpush1.bf16.msra.mxu0 %v697
    %720 = vmatprep.subr.bf16.mxu0 0
    %721 = vmatpush1.bf16.msra.mxu0 %v698
    %722 = vmatprep.subr.bf16.mxu0 0
    %723 = vmatpush1.bf16.msra.mxu0 %v699
    %724 = vmatprep.subr.bf16.mxu0 0
    %725 = vmatpush1.bf16.msra.mxu0 0
    %726 = vmatprep.subr.bf16.mxu0 0
    %727 = vmatpush1.bf16.msra.mxu0 0
    %728 = vmatprep.subr.bf16.mxu0 0
    %729 = vmatpush1.bf16.msra.mxu0 0
    %730 = vmatprep.subr.bf16.mxu0 0
    %731 = vmatpush1.bf16.msra.mxu0 0
    %732 = vmatprep.subr.bf16.mxu0 0
    %733 = vmatpush1.bf16.msra.mxu0 0
    %734 = vmatprep.subr.bf16.mxu0 0
    %735 = vmatpush1.bf16.msra.mxu0 0
    %736 = vmatprep.subr.bf16.mxu0 0
    %737 = vmatpush1.bf16.msra.mxu0 0
    %738 = vmatprep.subr.bf16.mxu0 0
    %739 = vmatpush1.bf16.msra.mxu0 0
    %740 = vmatprep.mubr.bf16.mxu0 0
    %741 = vmatmul.mubr.bf16.gmra.mrb[0].mxu0 %v629
    %v742 = vpop.f32.mrb[0].mxu0
    %v743 = vadd.f32 %v658, %v742
    %v744 = vpop.f32.mrb[0].mxu0
    %v745 = vpop.f32.mrb[0].mxu0
    %v746 = vadd.f32 %v658, %v745
    %v747 = vpop.f32.mrb[0].mxu0
    %748 = vmatprep.mubr.bf16.mxu0 0
    %749 = vmatmul.mubr.bf16.gmra.mrb[0].mxu0 %v630
    %v750 = vpop.f32.mrb[0].mxu0
    %v751 = vadd.f32 %v658, %v750
    %v752 = vpop.f32.mrb[0].mxu0
    %v753 = vpop.f32.mrb[0].mxu0
    %v754 = vadd.f32 %v658, %v753
    %v755 = vpop.f32.mrb[0].mxu0
    %756 = vmatprep.mubr.bf16.mxu0 0
    %757 = vmatmul.mubr.bf16.gmra.mrb[0].mxu0 %v631
    %v758 = vpop.f32.mrb[0].mxu0
    %v759 = vadd.f32 %v658, %v758
    %v760 = vpop.f32.mrb[0].mxu0
    %v761 = vpop.f32.mrb[0].mxu0
    %v762 = vadd.f32 %v658, %v761
    %v763 = vpop.f32.mrb[0].mxu0
    %764 = vmatprep.mubr.bf16.mxu0 0
    %765 = vmatmul.mubr.bf16.gmra.mrb[0].mxu0 %v632
    %v766 = vpop.f32.mrb[0].mxu0
    %v767 = vadd.f32 %v658, %v766
    %v768 = vpop.f32.mrb[0].mxu0
    %v769 = vpop.f32.mrb[0].mxu0
    %v770 = vadd.f32 %v658, %v769
    %v771 = vpop.f32.mrb[0].mxu0
    %772 = vmatprep.mubr.bf16.mxu0 0
    %773 = vmatmul.mubr.bf16.gmra.mrb[0].mxu0 %v633
    %v774 = vpop.f32.mrb[0].mxu0
    %v775 = vadd.f32 %v658, %v774
    %v776 = vpop.f32.mrb[0].mxu0
    %v777 = vpop.f32.mrb[0].mxu0
    %v778 = vadd.f32 %v658, %v777
    %v779 = vpop.f32.mrb[0].mxu0
    %780 = vmatprep.mubr.bf16.mxu0 0
    %781 = vmatmul.mubr.bf16.gmra.mrb[0].mxu0 %v634
    %v782 = vpop.f32.mrb[0].mxu0
    %v783 = vadd.f32 %v658, %v782
    %v784 = vpop.f32.mrb[0].mxu0
    %v785 = vpop.f32.mrb[0].mxu0
    %v786 = vadd.f32 %v658, %v785
    %v787 = vpop.f32.mrb[0].mxu0
    %788 = vmatprep.mubr.bf16.mxu0 0
    %789 = vmatmul.mubr.bf16.gmra.mrb[0].mxu0 %v635
    %v790 = vpop.f32.mrb[0].mxu0
    %v791 = vadd.f32 %v658, %v790
    %v792 = vpop.f32.mrb[0].mxu0
    %v793 = vpop.f32.mrb[0].mxu0
    %v794 = vadd.f32 %v658, %v793
    %v795 = vpop.f32.mrb[0].mxu0
    %796 = vmatprep.mubr.bf16.mxu0 0
    %797 = vmatmul.mubr.bf16.gmra.mrb[0].mxu0 %v636
    %v798 = vpop.f32.mrb[0].mxu0
    %v799 = vadd.f32 %v658, %v798
    %v800 = vpop.f32.mrb[0].mxu0
    %v801 = vpop.f32.mrb[0].mxu0
    %v802 = vadd.f32 %v658, %v801
    %v803 = vpop.f32.mrb[0].mxu0
    %804 = vdwg.mxu0
    %v805 = vmul.f32 %v743, %v260
    %v806 = vmul.f32 %v746, %v261
    %v807 = vmul.f32 %v751, %v262
    %v808 = vmul.f32 %v754, %v263
    %v809 = vmul.f32 %v759, %v264
    %v810 = vmul.f32 %v762, %v265
    %v811 = vmul.f32 %v767, %v266
    %v812 = vmul.f32 %v770, %v267
    %v813 = vmul.f32 %v775, %v268
    %v814 = vmul.f32 %v778, %v269
    %v815 = vmul.f32 %v783, %v270
    %v816 = vmul.f32 %v786, %v271
    %v817 = vmul.f32 %v791, %v272
    %v818 = vmul.f32 %v794, %v273
    %v819 = vmul.f32 %v799, %v274
    %v820 = vmul.f32 %v802, %v275
    %v821 = vadd.f32 %v805, %v806
    %v822 = vadd.f32 %v821, %v807
    %v823 = vadd.f32 %v822, %v808
    %v824 = vadd.f32 %v823, %v809
    %v825 = vadd.f32 %v824, %v810
    %v826 = vadd.f32 %v825, %v811
    %v827 = vadd.f32 %v826, %v812
    %v828 = vadd.f32 %v827, %v813
    %v829 = vadd.f32 %v828, %v814
    %v830 = vadd.f32 %v829, %v815
    %v831 = vadd.f32 %v830, %v816
    %v832 = vadd.f32 %v831, %v817
    %v833 = vadd.f32 %v832, %v818
    %v834 = vadd.f32 %v833, %v819
    %v835 = vadd.f32 %v834, %v820
    %v836 = vrot.slane %v835, 4
    %v837 = vadd.f32 %v835, %v836
    %v838 = vrot.slane %v837, 2
    %v839 = vadd.f32 %v837, %v838
    %v840 = vrot.slane %v839, 1
    %v841 = vadd.f32 %v839, %v840
    %v842 = vstv %s279
    %v843 = vmul.f32 %v841, %v842
    %v844 = vmul.f32 %v805, %v743
    %v845 = vmul.f32 %v806, %v746
    %v846 = vmul.f32 %v807, %v751
    %v847 = vmul.f32 %v808, %v754
    %v848 = vmul.f32 %v809, %v759
    %v849 = vmul.f32 %v810, %v762
    %v850 = vmul.f32 %v811, %v767
    %v851 = vmul.f32 %v812, %v770
    %v852 = vmul.f32 %v813, %v775
    %v853 = vmul.f32 %v814, %v778
    %v854 = vmul.f32 %v815, %v783
    %v855 = vmul.f32 %v816, %v786
    %v856 = vmul.f32 %v817, %v791
    %v857 = vmul.f32 %v818, %v794
    %v858 = vmul.f32 %v819, %v799
    %v859 = vmul.f32 %v820, %v802
    %v860 = vadd.f32 %v844, %v845
    %v861 = vadd.f32 %v860, %v846
    %v862 = vadd.f32 %v861, %v847
    %v863 = vadd.f32 %v862, %v848
    %v864 = vadd.f32 %v863, %v849
    %v865 = vadd.f32 %v864, %v850
    %v866 = vadd.f32 %v865, %v851
    %v867 = vadd.f32 %v866, %v852
    %v868 = vadd.f32 %v867, %v853
    %v869 = vadd.f32 %v868, %v854
    %v870 = vadd.f32 %v869, %v855
    %v871 = vadd.f32 %v870, %v856
    %v872 = vadd.f32 %v871, %v857
    %v873 = vadd.f32 %v872, %v858
    %v874 = vadd.f32 %v873, %v859
    %v875 = vrot.slane %v874, 4
    %v876 = vadd.f32 %v874, %v875
    %v877 = vrot.slane %v876, 2
    %v878 = vadd.f32 %v876, %v877
    %v879 = vrot.slane %v878, 1
    %v880 = vadd.f32 %v878, %v879
    %v881 = vmul.f32 %v880, %v842
    %v882 = vmul.f32 %v843, %v843
    %v883 = vsub.f32 %v881, %v882
    %v884 = vmax.f32 %v883, 0.0
    %v885 = vld [vmem:[%s10] sm:$0x1]
    %v886 = vadd.f32 %v884, 1e-05
    %v887 = vrsqrt.pop %v886
    %v888 = vmul.f32 %v885, %v887
    %v889 = vld [vmem:[%s11] sm:$0x1]
    %v890 = vmul.f32 %v843, %v888
    %v891 = vsub.f32 %v889, %v890
    %v893 = vlaneseq
    %v894 = vshrl.u32 %v893, 7
    %v895 = vsub.s32 0, %v894
    %v896 = vrot.slane %v888, %v895
    %v898 = vmul.f32 %v743, %v896
    %v899 = vmul.f32 %v746, %v896
    %v900 = vmul.f32 %v751, %v896
    %v901 = vmul.f32 %v754, %v896
    %v902 = vmul.f32 %v759, %v896
    %v903 = vmul.f32 %v762, %v896
    %v904 = vmul.f32 %v767, %v896
    %v905 = vmul.f32 %v770, %v896
    %v906 = vmul.f32 %v775, %v896
    %v907 = vmul.f32 %v778, %v896
    %v908 = vmul.f32 %v783, %v896
    %v909 = vmul.f32 %v786, %v896
    %v910 = vmul.f32 %v791, %v896
    %v911 = vmul.f32 %v794, %v896
    %v912 = vmul.f32 %v799, %v896
    %v913 = vmul.f32 %v802, %v896
    %v915 = vlaneseq
    %v916 = vshrl.u32 %v915, 7
    %v917 = vsub.s32 0, %v916
    %v918 = vrot.slane %v891, %v917
    %v920 = vadd.f32 %v898, %v918
    %v921 = vadd.f32 %v899, %v918
    %v922 = vadd.f32 %v900, %v918
    %v923 = vadd.f32 %v901, %v918
    %v924 = vadd.f32 %v902, %v918
    %v925 = vadd.f32 %v903, %v918
    %v926 = vadd.f32 %v904, %v918
    %v927 = vadd.f32 %v905, %v918
    %v928 = vadd.f32 %v906, %v918
    %v929 = vadd.f32 %v907, %v918
    %v930 = vadd.f32 %v908, %v918
    %v931 = vadd.f32 %v909, %v918
    %v932 = vadd.f32 %v910, %v918
    %v933 = vadd.f32 %v911, %v918
    %v934 = vadd.f32 %v912, %v918
    %v935 = vadd.f32 %v913, %v918
    %v936 = vmax.f32 %v920, 0.0
    %v937 = vmax.f32 %v921, 0.0
    %v938 = vmax.f32 %v922, 0.0
    %v939 = vmax.f32 %v923, 0.0
    %v940 = vmax.f32 %v924, 0.0
    %v941 = vmax.f32 %v925, 0.0
    %v942 = vmax.f32 %v926, 0.0
    %v943 = vmax.f32 %v927, 0.0
    %v944 = vmax.f32 %v928, 0.0
    %v945 = vmax.f32 %v929, 0.0
    %v946 = vmax.f32 %v930, 0.0
    %v947 = vmax.f32 %v931, 0.0
    %v948 = vmax.f32 %v932, 0.0
    %v949 = vmax.f32 %v933, 0.0
    %v950 = vmax.f32 %v934, 0.0
    %v951 = vmax.f32 %v935, 0.0
    %v952 = vpack.c.bf16 %v937, %v936
    %v953 = vpack.c.bf16 %v939, %v938
    %v954 = vpack.c.bf16 %v941, %v940
    %v955 = vpack.c.bf16 %v943, %v942
    %v956 = vpack.c.bf16 %v945, %v944
    %v957 = vpack.c.bf16 %v947, %v946
    %v958 = vpack.c.bf16 %v949, %v948
    %v959 = vpack.c.bf16 %v951, %v950
    %v960 = vld [vmem:[#allocation10] sm:$0xf]
    %v961 = vld [vmem:[#allocation10 + $0x4] sm:$0xf]
    %v962 = vld [vmem:[#allocation10 + $0x8] sm:$0xf]
    %v963 = vld [vmem:[#allocation10 + $0xc] sm:$0xf]
    %v964 = vld [vmem:[#allocation10 + $0x10] sm:$0xf]
    %v965 = vld [vmem:[#allocation10 + $0x14] sm:$0xf]
    %v966 = vld [vmem:[#allocation10 + $0x18] sm:$0xf]
    %v967 = vld [vmem:[#allocation10 + $0x1c] sm:$0xf]
    %v968 = vld [vmem:[#allocation10 + $0x20] sm:$0xf]
    %v969 = vld [vmem:[#allocation10 + $0x24] sm:$0xf]
    %v970 = vld [vmem:[#allocation10 + $0x28] sm:$0xf]
    %v971 = vld [vmem:[#allocation10 + $0x2c] sm:$0xf]
    %v972 = vld [vmem:[#allocation10 + $0x30] sm:$0xf]
    %v973 = vld [vmem:[#allocation10 + $0x34] sm:$0xf]
    %v974 = vld [vmem:[#allocation10 + $0x38] sm:$0xf]
    %v975 = vld [vmem:[#allocation10 + $0x3c] sm:$0xf]
    %v976 = vld [vmem:[%s13] sm:$0x1]
    %v978 = vlaneseq
    %v979 = vshrl.u32 %v978, 7
    %v980 = vsub.s32 0, %v979
    %v981 = vrot.slane %v976, %v980
    %v999 = vunpack.c.l.b16 %v960
    %v1000 = vunpack.c.l.b16 %v961
    %v1001 = vunpack.c.l.b16 %v962
    %v1002 = vunpack.c.l.b16 %v963
    %v1003 = vunpack.c.l.b16 %v964
    %v1004 = vunpack.c.l.b16 %v965
    %v1005 = vunpack.c.l.b16 %v966
    %v1006 = vunpack.c.l.b16 %v967
    %v1007 = vunpack.c.l.b16 %v968
    %v1008 = vunpack.c.l.b16 %v969
    %v1009 = vunpack.c.l.b16 %v970
    %v1010 = vunpack.c.l.b16 %v971
    %v1011 = vunpack.c.l.b16 %v972
    %v1012 = vunpack.c.l.b16 %v973
    %v1013 = vunpack.c.l.b16 %v974
    %v1014 = vunpack.c.l.b16 %v975
    %v1015 = vpack.c.b16 %v1000, %v999
    %v1016 = vpack.c.b16 %v1002, %v1001
    %v1017 = vpack.c.b16 %v1004, %v1003
    %v1018 = vpack.c.b16 %v1006, %v1005
    %v1019 = vpack.c.b16 %v1008, %v1007
    %v1020 = vpack.c.b16 %v1010, %v1009
    %v1021 = vpack.c.b16 %v1012, %v1011
    %v1022 = vpack.c.b16 %v1014, %v1013
    %1031 = vmatprep.subr.bf16.mxu0 0
    %1032 = vmatpush1.bf16.msra.mxu0 %v1015
    %1033 = vmatprep.subr.bf16.mxu0 0
    %1034 = vmatpush1.bf16.msra.mxu0 %v1016
    %1035 = vmatprep.subr.bf16.mxu0 0
    %1036 = vmatpush1.bf16.msra.mxu0 %v1017
    %1037 = vmatprep.subr.bf16.mxu0 0
    %1038 = vmatpush1.bf16.msra.mxu0 %v1018
    %1039 = vmatprep.subr.bf16.mxu0 0
    %1040 = vmatpush1.bf16.msra.mxu0 %v1019
    %1041 = vmatprep.subr.bf16.mxu0 0
    %1042 = vmatpush1.bf16.msra.mxu0 %v1020
    %1043 = vmatprep.subr.bf16.mxu0 0
    %1044 = vmatpush1.bf16.msra.mxu0 %v1021
    %1045 = vmatprep.subr.bf16.mxu0 0
    %1046 = vmatpush1.bf16.msra.mxu0 %v1022
    %1047 = vmatprep.subr.bf16.mxu0 0
    %1048 = vmatpush1.bf16.msra.mxu0 0
    %1049 = vmatprep.subr.bf16.mxu0 0
    %1050 = vmatpush1.bf16.msra.mxu0 0
    %1051 = vmatprep.subr.bf16.mxu0 0
    %1052 = vmatpush1.bf16.msra.mxu0 0
    %1053 = vmatprep.subr.bf16.mxu0 0
    %1054 = vmatpush1.bf16.msra.mxu0 0
    %1055 = vmatprep.subr.bf16.mxu0 0
    %1056 = vmatpush1.bf16.msra.mxu0 0
    %1057 = vmatprep.subr.bf16.mxu0 0
    %1058 = vmatpush1.bf16.msra.mxu0 0
    %1059 = vmatprep.subr.bf16.mxu0 0
    %1060 = vmatpush1.bf16.msra.mxu0 0
    %1061 = vmatprep.subr.bf16.mxu0 0
    %1062 = vmatpush1.bf16.msra.mxu0 0
    %1063 = vmatprep.mubr.bf16.mxu0 0
    %1064 = vmatmul.mubr.bf16.gmra.mrb[0].mxu0 %v952
    %v1065 = vpop.f32.mrb[0].mxu0
    %v1066 = vadd.f32 %v981, %v1065
    %v1067 = vpop.f32.mrb[0].mxu0
    %v1068 = vpop.f32.mrb[0].mxu0
    %v1069 = vadd.f32 %v981, %v1068
    %v1070 = vpop.f32.mrb[0].mxu0
    %1071 = vmatprep.mubr.bf16.mxu0 0
    %1072 = vmatmul.mubr.bf16.gmra.mrb[0].mxu0 %v953
    %v1073 = vpop.f32.mrb[0].mxu0
    %v1074 = vadd.f32 %v981, %v1073
    %v1075 = vpop.f32.mrb[0].mxu0
    %v1076 = vpop.f32.mrb[0].mxu0
    %v1077 = vadd.f32 %v981, %v1076
    %v1078 = vpop.f32.mrb[0].mxu0
    %1079 = vmatprep.mubr.bf16.mxu0 0
    %1080 = vmatmul.mubr.bf16.gmra.mrb[0].mxu0 %v954
    %v1081 = vpop.f32.mrb[0].mxu0
    %v1082 = vadd.f32 %v981, %v1081
    %v1083 = vpop.f32.mrb[0].mxu0
    %v1084 = vpop.f32.mrb[0].mxu0
    %v1085 = vadd.f32 %v981, %v1084
    %v1086 = vpop.f32.mrb[0].mxu0
    %1087 = vmatprep.mubr.bf16.mxu0 0
    %1088 = vmatmul.mubr.bf16.gmra.mrb[0].mxu0 %v955
    %v1089 = vpop.f32.mrb[0].mxu0
    %v1090 = vadd.f32 %v981, %v1089
    %v1091 = vpop.f32.mrb[0].mxu0
    %v1092 = vpop.f32.mrb[0].mxu0
    %v1093 = vadd.f32 %v981, %v1092
    %v1094 = vpop.f32.mrb[0].mxu0
    %1095 = vmatprep.mubr.bf16.mxu0 0
    %1096 = vmatmul.mubr.bf16.gmra.mrb[0].mxu0 %v956
    %v1097 = vpop.f32.mrb[0].mxu0
    %v1098 = vadd.f32 %v981, %v1097
    %v1099 = vpop.f32.mrb[0].mxu0
    %v1100 = vpop.f32.mrb[0].mxu0
    %v1101 = vadd.f32 %v981, %v1100
    %v1102 = vpop.f32.mrb[0].mxu0
    %1103 = vmatprep.mubr.bf16.mxu0 0
    %1104 = vmatmul.mubr.bf16.gmra.mrb[0].mxu0 %v957
    %v1105 = vpop.f32.mrb[0].mxu0
    %v1106 = vadd.f32 %v981, %v1105
    %v1107 = vpop.f32.mrb[0].mxu0
    %v1108 = vpop.f32.mrb[0].mxu0
    %v1109 = vadd.f32 %v981, %v1108
    %v1110 = vpop.f32.mrb[0].mxu0
    %1111 = vmatprep.mubr.bf16.mxu0 0
    %1112 = vmatmul.mubr.bf16.gmra.mrb[0].mxu0 %v958
    %v1113 = vpop.f32.mrb[0].mxu0
    %v1114 = vadd.f32 %v981, %v1113
    %v1115 = vpop.f32.mrb[0].mxu0
    %v1116 = vpop.f32.mrb[0].mxu0
    %v1117 = vadd.f32 %v981, %v1116
    %v1118 = vpop.f32.mrb[0].mxu0
    %1119 = vmatprep.mubr.bf16.mxu0 0
    %1120 = vmatmul.mubr.bf16.gmra.mrb[0].mxu0 %v959
    %v1121 = vpop.f32.mrb[0].mxu0
    %v1122 = vadd.f32 %v981, %v1121
    %v1123 = vpop.f32.mrb[0].mxu0
    %v1124 = vpop.f32.mrb[0].mxu0
    %v1125 = vadd.f32 %v981, %v1124
    %v1126 = vpop.f32.mrb[0].mxu0
    %1127 = vdwg.mxu0
    %v1128 = vmax.f32 %v1066, 0.0
    %v1129 = vmax.f32 %v1069, 0.0
    %v1130 = vmax.f32 %v1074, 0.0
    %v1131 = vmax.f32 %v1077, 0.0
    %v1132 = vmax.f32 %v1082, 0.0
    %v1133 = vmax.f32 %v1085, 0.0
    %v1134 = vmax.f32 %v1090, 0.0
    %v1135 = vmax.f32 %v1093, 0.0
    %v1136 = vmax.f32 %v1098, 0.0
    %v1137 = vmax.f32 %v1101, 0.0
    %v1138 = vmax.f32 %v1106, 0.0
    %v1139 = vmax.f32 %v1109, 0.0
    %v1140 = vmax.f32 %v1114, 0.0
    %v1141 = vmax.f32 %v1117, 0.0
    %v1142 = vmax.f32 %v1122, 0.0
    %v1143 = vmax.f32 %v1125, 0.0
    %s1144 = scalar_lea.vmem [#allocation7], 64
    %v1145 = vld [vmem:[%s1144] sm:$0xf]
    %v1146 = vld [vmem:[%s1144 + $0x4] sm:$0xf]
    %v1147 = vld [vmem:[%s1144 + $0x8] sm:$0xf]
    %v1148 = vld [vmem:[%s1144 + $0xc] sm:$0xf]
    %v1149 = vld [vmem:[%s1144 + $0x10] sm:$0xf]
    %v1150 = vld [vmem:[%s1144 + $0x14] sm:$0xf]
    %v1151 = vld [vmem:[%s1144 + $0x18] sm:$0xf]
    %v1152 = vld [vmem:[%s1144 + $0x1c] sm:$0xf]
    %v1153 = vld [vmem:[%s1144 + $0x20] sm:$0xf]
    %v1154 = vld [vmem:[%s1144 + $0x24] sm:$0xf]
    %v1155 = vld [vmem:[%s1144 + $0x28] sm:$0xf]
    %v1156 = vld [vmem:[%s1144 + $0x2c] sm:$0xf]
    %v1157 = vld [vmem:[%s1144 + $0x30] sm:$0xf]
    %v1158 = vld [vmem:[%s1144 + $0x34] sm:$0xf]
    %v1159 = vld [vmem:[%s1144 + $0x38] sm:$0xf]
    %v1160 = vld [vmem:[%s1144 + $0x3c] sm:$0xf]
    %s1161 = scalar_lea.vmem %s7, 1
    %v1162 = vld [vmem:[%s1161] sm:$0x1]
    %v1164 = vlaneseq
    %v1165 = vshrl.u32 %v1164, 7
    %v1166 = vsub.s32 0, %v1165
    %v1167 = vrot.slane %v1162, %v1166
    %v1185 = vunpack.c.l.b16 %v1145
    %v1186 = vunpack.c.l.b16 %v1146
    %v1187 = vunpack.c.l.b16 %v1147
    %v1188 = vunpack.c.l.b16 %v1148
    %v1189 = vunpack.c.l.b16 %v1149
    %v1190 = vunpack.c.l.b16 %v1150
    %v1191 = vunpack.c.l.b16 %v1151
    %v1192 = vunpack.c.l.b16 %v1152
    %v1193 = vunpack.c.l.b16 %v1153
    %v1194 = vunpack.c.l.b16 %v1154
    %v1195 = vunpack.c.l.b16 %v1155
    %v1196 = vunpack.c.l.b16 %v1156
    %v1197 = vunpack.c.l.b16 %v1157
    %v1198 = vunpack.c.l.b16 %v1158
    %v1199 = vunpack.c.l.b16 %v1159
    %v1200 = vunpack.c.l.b16 %v1160
    %v1201 = vpack.c.b16 %v1186, %v1185
    %v1202 = vpack.c.b16 %v1188, %v1187
    %v1203 = vpack.c.b16 %v1190, %v1189
    %v1204 = vpack.c.b16 %v1192, %v1191
    %v1205 = vpack.c.b16 %v1194, %v1193
    %v1206 = vpack.c.b16 %v1196, %v1195
    %v1207 = vpack.c.b16 %v1198, %v1197
    %v1208 = vpack.c.b16 %v1200, %v1199
    %1217 = vmatprep.subr.bf16.mxu0 0
    %1218 = vmatpush1.bf16.msra.mxu0 %v1201
    %1219 = vmatprep.subr.bf16.mxu0 0
    %1220 = vmatpush1.bf16.msra.mxu0 %v1202
    %1221 = vmatprep.subr.bf16.mxu0 0
    %1222 = vmatpush1.bf16.msra.mxu0 %v1203
    %1223 = vmatprep.subr.bf16.mxu0 0
    %1224 = vmatpush1.bf16.msra.mxu0 %v1204
    %1225 = vmatprep.subr.bf16.mxu0 0
    %1226 = vmatpush1.bf16.msra.mxu0 %v1205
    %1227 = vmatprep.subr.bf16.mxu0 0
    %1228 = vmatpush1.bf16.msra.mxu0 %v1206
    %1229 = vmatprep.subr.bf16.mxu0 0
    %1230 = vmatpush1.bf16.msra.mxu0 %v1207
    %1231 = vmatprep.subr.bf16.mxu0 0
    %1232 = vmatpush1.bf16.msra.mxu0 %v1208
    %1233 = vmatprep.subr.bf16.mxu0 0
    %1234 = vmatpush1.bf16.msra.mxu0 0
    %1235 = vmatprep.subr.bf16.mxu0 0
    %1236 = vmatpush1.bf16.msra.mxu0 0
    %1237 = vmatprep.subr.bf16.mxu0 0
    %1238 = vmatpush1.bf16.msra.mxu0 0
    %1239 = vmatprep.subr.bf16.mxu0 0
    %1240 = vmatpush1.bf16.msra.mxu0 0
    %1241 = vmatprep.subr.bf16.mxu0 0
    %1242 = vmatpush1.bf16.msra.mxu0 0
    %1243 = vmatprep.subr.bf16.mxu0 0
    %1244 = vmatpush1.bf16.msra.mxu0 0
    %1245 = vmatprep.subr.bf16.mxu0 0
    %1246 = vmatpush1.bf16.msra.mxu0 0
    %1247 = vmatprep.subr.bf16.mxu0 0
    %1248 = vmatpush1.bf16.msra.mxu0 0
    %1249 = vmatprep.mubr.bf16.mxu0 0
    %1250 = vmatmul.mubr.bf16.gmra.mrb[0].mxu0 %v311
    %v1251 = vpop.f32.mrb[0].mxu0
    %v1252 = vadd.f32 %v1167, %v1251
    %v1253 = vpop.f32.mrb[0].mxu0
    %v1254 = vpop.f32.mrb[0].mxu0
    %v1255 = vadd.f32 %v1167, %v1254
    %v1256 = vpop.f32.mrb[0].mxu0
    %1257 = vmatprep.mubr.bf16.mxu0 0
    %1258 = vmatmul.mubr.bf16.gmra.mrb[0].mxu0 %v312
    %v1259 = vpop.f32.mrb[0].mxu0
    %v1260 = vadd.f32 %v1167, %v1259
    %v1261 = vpop.f32.mrb[0].mxu0
    %v1262 = vpop.f32.mrb[0].mxu0
    %v1263 = vadd.f32 %v1167, %v1262
    %v1264 = vpop.f32.mrb[0].mxu0
    %1265 = vdwg.mxu0
    %v1266 = vpack.c.bf16 %v1129, %v1128
    %v1267 = vpack.c.bf16 %v1131, %v1130
    %v1268 = vpack.c.bf16 %v1133, %v1132
    %v1269 = vpack.c.bf16 %v1135, %v1134
    %v1270 = vpack.c.bf16 %v1137, %v1136
    %v1271 = vpack.c.bf16 %v1139, %v1138
    %v1272 = vpack.c.bf16 %v1141, %v1140
    %v1273 = vpack.c.bf16 %v1143, %v1142
    %1274 = vmatprep.subr.bf16.mxu0 0
    %1275 = vmatpush1.bf16.msra.mxu0 %v1266
    %1276 = vmatprep.subr.bf16.mxu0 0
    %1277 = vmatpush1.bf16.msra.mxu0 %v1267
    %1278 = vmatprep.subr.bf16.mxu0 0
    %1279 = vmatpush1.bf16.msra.mxu0 %v1268
    %1280 = vmatprep.subr.bf16.mxu0 0
    %1281 = vmatpush1.bf16.msra.mxu0 %v1269
    %1282 = vmatprep.subr.bf16.mxu0 0
    %1283 = vmatpush1.bf16.msra.mxu0 %v1270
    %1284 = vmatprep.subr.bf16.mxu0 0
    %1285 = vmatpush1.bf16.msra.mxu0 %v1271
    %1286 = vmatprep.subr.bf16.mxu0 0
    %1287 = vmatpush1.bf16.msra.mxu0 %v1272
    %1288 = vmatprep.subr.bf16.mxu0 0
    %1289 = vmatpush1.bf16.msra.mxu0 %v1273
    %1290 = vmatprep.subr.bf16.mxu0 0
    %1291 = vmatpush1.bf16.msra.mxu0 0
    %1292 = vmatprep.subr.bf16.mxu0 0
    %1293 = vmatpush1.bf16.msra.mxu0 0
    %1294 = vmatprep.subr.bf16.mxu0 0
    %1295 = vmatpush1.bf16.msra.mxu0 0
    %1296 = vmatprep.subr.bf16.mxu0 0
    %1297 = vmatpush1.bf16.msra.mxu0 0
    %1298 = vmatprep.subr.bf16.mxu0 0
    %1299 = vmatpush1.bf16.msra.mxu0 0
    %1300 = vmatprep.subr.bf16.mxu0 0
    %1301 = vmatpush1.bf16.msra.mxu0 0
    %1302 = vmatprep.subr.bf16.mxu0 0
    %1303 = vmatpush1.bf16.msra.mxu0 0
    %1304 = vmatprep.subr.bf16.mxu0 0
    %1305 = vmatpush1.bf16.msra.mxu0 0
    %1306 = vmatprep.mubr.bf16.mxu0 0
    %1307 = vmatmul.mubr.bf16.gmra.mrb[0].mxu0 %v182
    %v1308 = vpop.f32.mrb[0].mxu0
    %v1309 = vadd.f32 %v1252, %v1308
    %v1310 = vpop.f32.mrb[0].mxu0
    %v1311 = vpop.f32.mrb[0].mxu0
    %v1312 = vadd.f32 %v1255, %v1311
    %v1313 = vpop.f32.mrb[0].mxu0
    %1314 = vmatprep.mubr.bf16.mxu0 0
    %1315 = vmatmul.mubr.bf16.gmra.mrb[0].mxu0 %v183
    %v1316 = vpop.f32.mrb[0].mxu0
    %v1317 = vadd.f32 %v1260, %v1316
    %v1318 = vpop.f32.mrb[0].mxu0
    %v1319 = vpop.f32.mrb[0].mxu0
    %v1320 = vadd.f32 %v1263, %v1319
    %v1321 = vpop.f32.mrb[0].mxu0
    %1322 = vdwg.mxu0
    %v1323 = vmax.f32 %v1309, 0.0
    %v1324 = vmax.f32 %v1312, 0.0
    %v1325 = vmax.f32 %v1317, 0.0
    %v1326 = vmax.f32 %v1320, 0.0
    %v1327 = vpack.c.bf16 %v1324, %v1323
    %v1328 = vpack.c.bf16 %v1326, %v1325
    %1329 = vmatprep.subr.bf16.mxu0 0
    %1330 = vmatpush1.bf16.msra.mxu0 %v1327
    %1331 = vmatprep.subr.bf16.mxu0 0
    %1332 = vmatpush1.bf16.msra.mxu0 %v1328
    %1333 = vmatprep.subr.bf16.mxu0 0
    %1334 = vmatpush1.bf16.msra.mxu0 0
    %1335 = vmatprep.subr.bf16.mxu0 0
    %1336 = vmatpush1.bf16.msra.mxu0 0
    %1337 = vmatprep.subr.bf16.mxu0 0
    %1338 = vmatpush1.bf16.msra.mxu0 0
    %1339 = vmatprep.subr.bf16.mxu0 0
    %1340 = vmatpush1.bf16.msra.mxu0 0
    %1341 = vmatprep.subr.bf16.mxu0 0
    %1342 = vmatpush1.bf16.msra.mxu0 0
    %1343 = vmatprep.subr.bf16.mxu0 0
    %1344 = vmatpush1.bf16.msra.mxu0 0
    %1345 = vmatprep.subr.bf16.mxu0 0
    %1346 = vmatpush1.bf16.msra.mxu0 0
    %1347 = vmatprep.subr.bf16.mxu0 0
    %1348 = vmatpush1.bf16.msra.mxu0 0
    %1349 = vmatprep.subr.bf16.mxu0 0
    %1350 = vmatpush1.bf16.msra.mxu0 0
    %1351 = vmatprep.subr.bf16.mxu0 0
    %1352 = vmatpush1.bf16.msra.mxu0 0
    %1353 = vmatprep.subr.bf16.mxu0 0
    %1354 = vmatpush1.bf16.msra.mxu0 0
    %1355 = vmatprep.subr.bf16.mxu0 0
    %1356 = vmatpush1.bf16.msra.mxu0 0
    %1357 = vmatprep.subr.bf16.mxu0 0
    %1358 = vmatpush1.bf16.msra.mxu0 0
    %1359 = vmatprep.subr.bf16.mxu0 0
    %1360 = vmatpush1.bf16.msra.mxu0 0
    %1361 = vmatprep.mubr.bf16.mxu0 0
    %1362 = vmatmul.mubr.bf16.gmra.mrb[0].mxu0 %v493
    %v1363 = vpop.f32.mrb[0].mxu0
    %v1364 = vadd.f32 0.0, %v1363
    %v1365 = vpop.f32.mrb[0].mxu0
    %v1366 = vpop.f32.mrb[0].mxu0
    %v1367 = vadd.f32 0.0, %v1366
    %v1368 = vpop.f32.mrb[0].mxu0
    %1369 = vmatprep.mubr.bf16.mxu0 0
    %1370 = vmatmul.mubr.bf16.gmra.mrb[0].mxu0 %v496
    %v1371 = vpop.f32.mrb[0].mxu0
    %v1372 = vadd.f32 0.0, %v1371
    %v1373 = vpop.f32.mrb[0].mxu0
    %v1374 = vpop.f32.mrb[0].mxu0
    %v1375 = vadd.f32 0.0, %v1374
    %v1376 = vpop.f32.mrb[0].mxu0
    %1377 = vmatprep.mubr.bf16.mxu0 0
    %1378 = vmatmul.mubr.bf16.gmra.mrb[0].mxu0 %v499
    %v1379 = vpop.f32.mrb[0].mxu0
    %v1380 = vadd.f32 0.0, %v1379
    %v1381 = vpop.f32.mrb[0].mxu0
    %v1382 = vpop.f32.mrb[0].mxu0
    %v1383 = vadd.f32 0.0, %v1382
    %v1384 = vpop.f32.mrb[0].mxu0
    %1385 = vmatprep.mubr.bf16.mxu0 0
    %1386 = vmatmul.mubr.bf16.gmra.mrb[0].mxu0 %v502
    %v1387 = vpop.f32.mrb[0].mxu0
    %v1388 = vadd.f32 0.0, %v1387
    %v1389 = vpop.f32.mrb[0].mxu0
    %v1390 = vpop.f32.mrb[0].mxu0
    %v1391 = vadd.f32 0.0, %v1390
    %v1392 = vpop.f32.mrb[0].mxu0
    %1393 = vmatprep.mubr.bf16.mxu0 0
    %1394 = vmatmul.mubr.bf16.gmra.mrb[0].mxu0 %v505
    %v1395 = vpop.f32.mrb[0].mxu0
    %v1396 = vadd.f32 0.0, %v1395
    %v1397 = vpop.f32.mrb[0].mxu0
    %v1398 = vpop.f32.mrb[0].mxu0
    %v1399 = vadd.f32 0.0, %v1398
    %v1400 = vpop.f32.mrb[0].mxu0
    %1401 = vmatprep.mubr.bf16.mxu0 0
    %1402 = vmatmul.mubr.bf16.gmra.mrb[0].mxu0 %v508
    %v1403 = vpop.f32.mrb[0].mxu0
    %v1404 = vadd.f32 0.0, %v1403
    %v1405 = vpop.f32.mrb[0].mxu0
    %v1406 = vpop.f32.mrb[0].mxu0
    %v1407 = vadd.f32 0.0, %v1406
    %v1408 = vpop.f32.mrb[0].mxu0
    %1409 = vmatprep.mubr.bf16.mxu0 0
    %1410 = vmatmul.mubr.bf16.gmra.mrb[0].mxu0 %v511
    %v1411 = vpop.f32.mrb[0].mxu0
    %v1412 = vadd.f32 0.0, %v1411
    %v1413 = vpop.f32.mrb[0].mxu0
    %v1414 = vpop.f32.mrb[0].mxu0
    %v1415 = vadd.f32 0.0, %v1414
    %v1416 = vpop.f32.mrb[0].mxu0
    %1417 = vmatprep.mubr.bf16.mxu0 0
    %1418 = vmatmul.mubr.bf16.gmra.mrb[0].mxu0 %v514
    %v1419 = vpop.f32.mrb[0].mxu0
    %v1420 = vadd.f32 0.0, %v1419
    %v1421 = vpop.f32.mrb[0].mxu0
    %v1422 = vpop.f32.mrb[0].mxu0
    %v1423 = vadd.f32 0.0, %v1422
    %v1424 = vpop.f32.mrb[0].mxu0
    %1425 = vdwg.mxu0
    %v1426 = vadd.f32 %v1128, %v1364
    %v1427 = vadd.f32 %v1129, %v1367
    %v1428 = vadd.f32 %v1130, %v1372
    %v1429 = vadd.f32 %v1131, %v1375
    %v1430 = vadd.f32 %v1132, %v1380
    %v1431 = vadd.f32 %v1133, %v1383
    %v1432 = vadd.f32 %v1134, %v1388
    %v1433 = vadd.f32 %v1135, %v1391
    %v1434 = vadd.f32 %v1136, %v1396
    %v1435 = vadd.f32 %v1137, %v1399
    %v1436 = vadd.f32 %v1138, %v1404
    %v1437 = vadd.f32 %v1139, %v1407
    %v1438 = vadd.f32 %v1140, %v1412
    %v1439 = vadd.f32 %v1141, %v1415
    %v1440 = vadd.f32 %v1142, %v1420
    %v1441 = vadd.f32 %v1143, %v1423
    %v1442 = vpack.c.bf16 %v1427, %v1426
    %v1443 = vpack.c.bf16 %v1429, %v1428
    %v1444 = vpack.c.bf16 %v1431, %v1430
    %v1445 = vpack.c.bf16 %v1433, %v1432
    %v1446 = vpack.c.bf16 %v1435, %v1434
    %v1447 = vpack.c.bf16 %v1437, %v1436
    %v1448 = vpack.c.bf16 %v1439, %v1438
    %v1449 = vpack.c.bf16 %v1441, %v1440
    %s1450 = scalar_lea.vmem [#allocation9], 64
    %v1451 = vld [vmem:[%s1450] sm:$0xf]
    %v1452 = vld [vmem:[%s1450 + $0x4] sm:$0xf]
    %v1453 = vld [vmem:[%s1450 + $0x8] sm:$0xf]
    %v1454 = vld [vmem:[%s1450 + $0xc] sm:$0xf]
    %v1455 = vld [vmem:[%s1450 + $0x10] sm:$0xf]
    %v1456 = vld [vmem:[%s1450 + $0x14] sm:$0xf]
    %v1457 = vld [vmem:[%s1450 + $0x18] sm:$0xf]
    %v1458 = vld [vmem:[%s1450 + $0x1c] sm:$0xf]
    %v1459 = vld [vmem:[%s1450 + $0x20] sm:$0xf]
    %v1460 = vld [vmem:[%s1450 + $0x24] sm:$0xf]
    %v1461 = vld [vmem:[%s1450 + $0x28] sm:$0xf]
    %v1462 = vld [vmem:[%s1450 + $0x2c] sm:$0xf]
    %v1463 = vld [vmem:[%s1450 + $0x30] sm:$0xf]
    %v1464 = vld [vmem:[%s1450 + $0x34] sm:$0xf]
    %v1465 = vld [vmem:[%s1450 + $0x38] sm:$0xf]
    %v1466 = vld [vmem:[%s1450 + $0x3c] sm:$0xf]
    %s1467 = scalar_lea.vmem %s9, 1
    %v1468 = vld [vmem:[%s1467] sm:$0x1]
    %v1470 = vlaneseq
    %v1471 = vshrl.u32 %v1470, 7
    %v1472 = vsub.s32 0, %v1471
    %v1473 = vrot.slane %v1468, %v1472
    %v1491 = vunpack.c.l.b16 %v1451
    %v1492 = vunpack.c.l.b16 %v1452
    %v1493 = vunpack.c.l.b16 %v1453
    %v1494 = vunpack.c.l.b16 %v1454
    %v1495 = vunpack.c.l.b16 %v1455
    %v1496 = vunpack.c.l.b16 %v1456
    %v1497 = vunpack.c.l.b16 %v1457
    %v1498 = vunpack.c.l.b16 %v1458
    %v1499 = vunpack.c.l.b16 %v1459
    %v1500 = vunpack.c.l.b16 %v1460
    %v1501 = vunpack.c.l.b16 %v1461
    %v1502 = vunpack.c.l.b16 %v1462
    %v1503 = vunpack.c.l.b16 %v1463
    %v1504 = vunpack.c.l.b16 %v1464
    %v1505 = vunpack.c.l.b16 %v1465
    %v1506 = vunpack.c.l.b16 %v1466
    %v1507 = vpack.c.b16 %v1492, %v1491
    %v1508 = vpack.c.b16 %v1494, %v1493
    %v1509 = vpack.c.b16 %v1496, %v1495
    %v1510 = vpack.c.b16 %v1498, %v1497
    %v1511 = vpack.c.b16 %v1500, %v1499
    %v1512 = vpack.c.b16 %v1502, %v1501
    %v1513 = vpack.c.b16 %v1504, %v1503
    %v1514 = vpack.c.b16 %v1506, %v1505
    %1523 = vmatprep.subr.bf16.mxu0 0
    %1524 = vmatpush1.bf16.msra.mxu0 %v1507
    %1525 = vmatprep.subr.bf16.mxu0 0
    %1526 = vmatpush1.bf16.msra.mxu0 %v1508
    %1527 = vmatprep.subr.bf16.mxu0 0
    %1528 = vmatpush1.bf16.msra.mxu0 %v1509
    %1529 = vmatprep.subr.bf16.mxu0 0
    %1530 = vmatpush1.bf16.msra.mxu0 %v1510
    %1531 = vmatprep.subr.bf16.mxu0 0
    %1532 = vmatpush1.bf16.msra.mxu0 %v1511
    %1533 = vmatprep.subr.bf16.mxu0 0
    %1534 = vmatpush1.bf16.msra.mxu0 %v1512
    %1535 = vmatprep.subr.bf16.mxu0 0
    %1536 = vmatpush1.bf16.msra.mxu0 %v1513
    %1537 = vmatprep.subr.bf16.mxu0 0
    %1538 = vmatpush1.bf16.msra.mxu0 %v1514
    %1539 = vmatprep.subr.bf16.mxu0 0
    %1540 = vmatpush1.bf16.msra.mxu0 0
    %1541 = vmatprep.subr.bf16.mxu0 0
    %1542 = vmatpush1.bf16.msra.mxu0 0
    %1543 = vmatprep.subr.bf16.mxu0 0
    %1544 = vmatpush1.bf16.msra.mxu0 0
    %1545 = vmatprep.subr.bf16.mxu0 0
    %1546 = vmatpush1.bf16.msra.mxu0 0
    %1547 = vmatprep.subr.bf16.mxu0 0
    %1548 = vmatpush1.bf16.msra.mxu0 0
    %1549 = vmatprep.subr.bf16.mxu0 0
    %1550 = vmatpush1.bf16.msra.mxu0 0
    %1551 = vmatprep.subr.bf16.mxu0 0
    %1552 = vmatpush1.bf16.msra.mxu0 0
    %1553 = vmatprep.subr.bf16.mxu0 0
    %1554 = vmatpush1.bf16.msra.mxu0 0
    %1555 = vmatprep.mubr.bf16.mxu0 0
    %1556 = vmatmul.mubr.bf16.gmra.mrb[0].mxu0 %v1442
    %v1557 = vpop.f32.mrb[0].mxu0
    %v1558 = vadd.f32 %v1473, %v1557
    %v1559 = vpop.f32.mrb[0].mxu0
    %v1560 = vpop.f32.mrb[0].mxu0
    %v1561 = vadd.f32 %v1473, %v1560
    %v1562 = vpop.f32.mrb[0].mxu0
    %1563 = vmatprep.mubr.bf16.mxu0 0
    %1564 = vmatmul.mubr.bf16.gmra.mrb[0].mxu0 %v1443
    %v1565 = vpop.f32.mrb[0].mxu0
    %v1566 = vadd.f32 %v1473, %v1565
    %v1567 = vpop.f32.mrb[0].mxu0
    %v1568 = vpop.f32.mrb[0].mxu0
    %v1569 = vadd.f32 %v1473, %v1568
    %v1570 = vpop.f32.mrb[0].mxu0
    %1571 = vmatprep.mubr.bf16.mxu0 0
    %1572 = vmatmul.mubr.bf16.gmra.mrb[0].mxu0 %v1444
    %v1573 = vpop.f32.mrb[0].mxu0
    %v1574 = vadd.f32 %v1473, %v1573
    %v1575 = vpop.f32.mrb[0].mxu0
    %v1576 = vpop.f32.mrb[0].mxu0
    %v1577 = vadd.f32 %v1473, %v1576
    %v1578 = vpop.f32.mrb[0].mxu0
    %1579 = vmatprep.mubr.bf16.mxu0 0
    %1580 = vmatmul.mubr.bf16.gmra.mrb[0].mxu0 %v1445
    %v1581 = vpop.f32.mrb[0].mxu0
    %v1582 = vadd.f32 %v1473, %v1581
    %v1583 = vpop.f32.mrb[0].mxu0
    %v1584 = vpop.f32.mrb[0].mxu0
    %v1585 = vadd.f32 %v1473, %v1584
    %v1586 = vpop.f32.mrb[0].mxu0
    %1587 = vmatprep.mubr.bf16.mxu0 0
    %1588 = vmatmul.mubr.bf16.gmra.mrb[0].mxu0 %v1446
    %v1589 = vpop.f32.mrb[0].mxu0
    %v1590 = vadd.f32 %v1473, %v1589
    %v1591 = vpop.f32.mrb[0].mxu0
    %v1592 = vpop.f32.mrb[0].mxu0
    %v1593 = vadd.f32 %v1473, %v1592
    %v1594 = vpop.f32.mrb[0].mxu0
    %1595 = vmatprep.mubr.bf16.mxu0 0
    %1596 = vmatmul.mubr.bf16.gmra.mrb[0].mxu0 %v1447
    %v1597 = vpop.f32.mrb[0].mxu0
    %v1598 = vadd.f32 %v1473, %v1597
    %v1599 = vpop.f32.mrb[0].mxu0
    %v1600 = vpop.f32.mrb[0].mxu0
    %v1601 = vadd.f32 %v1473, %v1600
    %v1602 = vpop.f32.mrb[0].mxu0
    %1603 = vmatprep.mubr.bf16.mxu0 0
    %1604 = vmatmul.mubr.bf16.gmra.mrb[0].mxu0 %v1448
    %v1605 = vpop.f32.mrb[0].mxu0
    %v1606 = vadd.f32 %v1473, %v1605
    %v1607 = vpop.f32.mrb[0].mxu0
    %v1608 = vpop.f32.mrb[0].mxu0
    %v1609 = vadd.f32 %v1473, %v1608
    %v1610 = vpop.f32.mrb[0].mxu0
    %1611 = vmatprep.mubr.bf16.mxu0 0
    %1612 = vmatmul.mubr.bf16.gmra.mrb[0].mxu0 %v1449
    %v1613 = vpop.f32.mrb[0].mxu0
    %v1614 = vadd.f32 %v1473, %v1613
    %v1615 = vpop.f32.mrb[0].mxu0
    %v1616 = vpop.f32.mrb[0].mxu0
    %v1617 = vadd.f32 %v1473, %v1616
    %v1618 = vpop.f32.mrb[0].mxu0
    %1619 = vdwg.mxu0
    %v1620 = vmul.f32 %v1558, %v260
    %v1621 = vmul.f32 %v1561, %v261
    %v1622 = vmul.f32 %v1566, %v262
    %v1623 = vmul.f32 %v1569, %v263
    %v1624 = vmul.f32 %v1574, %v264
    %v1625 = vmul.f32 %v1577, %v265
    %v1626 = vmul.f32 %v1582, %v266
    %v1627 = vmul.f32 %v1585, %v267
    %v1628 = vmul.f32 %v1590, %v268
    %v1629 = vmul.f32 %v1593, %v269
    %v1630 = vmul.f32 %v1598, %v270
    %v1631 = vmul.f32 %v1601, %v271
    %v1632 = vmul.f32 %v1606, %v272
    %v1633 = vmul.f32 %v1609, %v273
    %v1634 = vmul.f32 %v1614, %v274
    %v1635 = vmul.f32 %v1617, %v275
    %v1636 = vadd.f32 %v1620, %v1621
    %v1637 = vadd.f32 %v1636, %v1622
    %v1638 = vadd.f32 %v1637, %v1623
    %v1639 = vadd.f32 %v1638, %v1624
    %v1640 = vadd.f32 %v1639, %v1625
    %v1641 = vadd.f32 %v1640, %v1626
    %v1642 = vadd.f32 %v1641, %v1627
    %v1643 = vadd.f32 %v1642, %v1628
    %v1644 = vadd.f32 %v1643, %v1629
    %v1645 = vadd.f32 %v1644, %v1630
    %v1646 = vadd.f32 %v1645, %v1631
    %v1647 = vadd.f32 %v1646, %v1632
    %v1648 = vadd.f32 %v1647, %v1633
    %v1649 = vadd.f32 %v1648, %v1634
    %v1650 = vadd.f32 %v1649, %v1635
    %v1651 = vrot.slane %v1650, 4
    %v1652 = vadd.f32 %v1650, %v1651
    %v1653 = vrot.slane %v1652, 2
    %v1654 = vadd.f32 %v1652, %v1653
    %v1655 = vrot.slane %v1654, 1
    %v1656 = vadd.f32 %v1654, %v1655
    %v1657 = vmul.f32 %v1656, %v842
    %v1658 = vmul.f32 %v1620, %v1558
    %v1659 = vmul.f32 %v1621, %v1561
    %v1660 = vmul.f32 %v1622, %v1566
    %v1661 = vmul.f32 %v1623, %v1569
    %v1662 = vmul.f32 %v1624, %v1574
    %v1663 = vmul.f32 %v1625, %v1577
    %v1664 = vmul.f32 %v1626, %v1582
    %v1665 = vmul.f32 %v1627, %v1585
    %v1666 = vmul.f32 %v1628, %v1590
    %v1667 = vmul.f32 %v1629, %v1593
    %v1668 = vmul.f32 %v1630, %v1598
    %v1669 = vmul.f32 %v1631, %v1601
    %v1670 = vmul.f32 %v1632, %v1606
    %v1671 = vmul.f32 %v1633, %v1609
    %v1672 = vmul.f32 %v1634, %v1614
    %v1673 = vmul.f32 %v1635, %v1617
    %v1674 = vadd.f32 %v1658, %v1659
    %v1675 = vadd.f32 %v1674, %v1660
    %v1676 = vadd.f32 %v1675, %v1661
    %v1677 = vadd.f32 %v1676, %v1662
    %v1678 = vadd.f32 %v1677, %v1663
    %v1679 = vadd.f32 %v1678, %v1664
    %v1680 = vadd.f32 %v1679, %v1665
    %v1681 = vadd.f32 %v1680, %v1666
    %v1682 = vadd.f32 %v1681, %v1667
    %v1683 = vadd.f32 %v1682, %v1668
    %v1684 = vadd.f32 %v1683, %v1669
    %v1685 = vadd.f32 %v1684, %v1670
    %v1686 = vadd.f32 %v1685, %v1671
    %v1687 = vadd.f32 %v1686, %v1672
    %v1688 = vadd.f32 %v1687, %v1673
    %v1689 = vrot.slane %v1688, 4
    %v1690 = vadd.f32 %v1688, %v1689
    %v1691 = vrot.slane %v1690, 2
    %v1692 = vadd.f32 %v1690, %v1691
    %v1693 = vrot.slane %v1692, 1
    %v1694 = vadd.f32 %v1692, %v1693
    %v1695 = vmul.f32 %v1694, %v842
    %v1696 = vmul.f32 %v1657, %v1657
    %v1697 = vsub.f32 %v1695, %v1696
    %v1698 = vmax.f32 %v1697, 0.0
    %s1699 = scalar_lea.vmem %s10, 1
    %v1700 = vld [vmem:[%s1699] sm:$0x1]
    %v1701 = vadd.f32 %v1698, 1e-05
    %v1702 = vrsqrt.pop %v1701
    %v1703 = vmul.f32 %v1700, %v1702
    %s1704 = scalar_lea.vmem %s11, 1
    %v1705 = vld [vmem:[%s1704] sm:$0x1]
    %v1706 = vmul.f32 %v1657, %v1703
    %v1707 = vsub.f32 %v1705, %v1706
    %v1709 = vlaneseq
    %v1710 = vshrl.u32 %v1709, 7
    %v1711 = vsub.s32 0, %v1710
    %v1712 = vrot.slane %v1703, %v1711
    %v1714 = vmul.f32 %v1558, %v1712
    %v1715 = vmul.f32 %v1561, %v1712
    %v1716 = vmul.f32 %v1566, %v1712
    %v1717 = vmul.f32 %v1569, %v1712
    %v1718 = vmul.f32 %v1574, %v1712
    %v1719 = vmul.f32 %v1577, %v1712
    %v1720 = vmul.f32 %v1582, %v1712
    %v1721 = vmul.f32 %v1585, %v1712
    %v1722 = vmul.f32 %v1590, %v1712
    %v1723 = vmul.f32 %v1593, %v1712
    %v1724 = vmul.f32 %v1598, %v1712
    %v1725 = vmul.f32 %v1601, %v1712
    %v1726 = vmul.f32 %v1606, %v1712
    %v1727 = vmul.f32 %v1609, %v1712
    %v1728 = vmul.f32 %v1614, %v1712
    %v1729 = vmul.f32 %v1617, %v1712
    %v1731 = vlaneseq
    %v1732 = vshrl.u32 %v1731, 7
    %v1733 = vsub.s32 0, %v1732
    %v1734 = vrot.slane %v1707, %v1733
    %v1736 = vadd.f32 %v1714, %v1734
    %v1737 = vadd.f32 %v1715, %v1734
    %v1738 = vadd.f32 %v1716, %v1734
    %v1739 = vadd.f32 %v1717, %v1734
    %v1740 = vadd.f32 %v1718, %v1734
    %v1741 = vadd.f32 %v1719, %v1734
    %v1742 = vadd.f32 %v1720, %v1734
    %v1743 = vadd.f32 %v1721, %v1734
    %v1744 = vadd.f32 %v1722, %v1734
    %v1745 = vadd.f32 %v1723, %v1734
    %v1746 = vadd.f32 %v1724, %v1734
    %v1747 = vadd.f32 %v1725, %v1734
    %v1748 = vadd.f32 %v1726, %v1734
    %v1749 = vadd.f32 %v1727, %v1734
    %v1750 = vadd.f32 %v1728, %v1734
    %v1751 = vadd.f32 %v1729, %v1734
    %v1752 = vmax.f32 %v1736, 0.0
    %v1753 = vmax.f32 %v1737, 0.0
    %v1754 = vmax.f32 %v1738, 0.0
    %v1755 = vmax.f32 %v1739, 0.0
    %v1756 = vmax.f32 %v1740, 0.0
    %v1757 = vmax.f32 %v1741, 0.0
    %v1758 = vmax.f32 %v1742, 0.0
    %v1759 = vmax.f32 %v1743, 0.0
    %v1760 = vmax.f32 %v1744, 0.0
    %v1761 = vmax.f32 %v1745, 0.0
    %v1762 = vmax.f32 %v1746, 0.0
    %v1763 = vmax.f32 %v1747, 0.0
    %v1764 = vmax.f32 %v1748, 0.0
    %v1765 = vmax.f32 %v1749, 0.0
    %v1766 = vmax.f32 %v1750, 0.0
    %v1767 = vmax.f32 %v1751, 0.0
    %v1768 = vpack.c.bf16 %v1753, %v1752
    %v1769 = vpack.c.bf16 %v1755, %v1754
    %v1770 = vpack.c.bf16 %v1757, %v1756
    %v1771 = vpack.c.bf16 %v1759, %v1758
    %v1772 = vpack.c.bf16 %v1761, %v1760
    %v1773 = vpack.c.bf16 %v1763, %v1762
    %v1774 = vpack.c.bf16 %v1765, %v1764
    %v1775 = vpack.c.bf16 %v1767, %v1766
    %s1776 = scalar_lea.vmem [#allocation10], 64
    %v1777 = vld [vmem:[%s1776] sm:$0xf]
    %v1778 = vld [vmem:[%s1776 + $0x4] sm:$0xf]
    %v1779 = vld [vmem:[%s1776 + $0x8] sm:$0xf]
    %v1780 = vld [vmem:[%s1776 + $0xc] sm:$0xf]
    %v1781 = vld [vmem:[%s1776 + $0x10] sm:$0xf]
    %v1782 = vld [vmem:[%s1776 + $0x14] sm:$0xf]
    %v1783 = vld [vmem:[%s1776 + $0x18] sm:$0xf]
    %v1784 = vld [vmem:[%s1776 + $0x1c] sm:$0xf]
    %v1785 = vld [vmem:[%s1776 + $0x20] sm:$0xf]
    %v1786 = vld [vmem:[%s1776 + $0x24] sm:$0xf]
    %v1787 = vld [vmem:[%s1776 + $0x28] sm:$0xf]
    %v1788 = vld [vmem:[%s1776 + $0x2c] sm:$0xf]
    %v1789 = vld [vmem:[%s1776 + $0x30] sm:$0xf]
    %v1790 = vld [vmem:[%s1776 + $0x34] sm:$0xf]
    %v1791 = vld [vmem:[%s1776 + $0x38] sm:$0xf]
    %v1792 = vld [vmem:[%s1776 + $0x3c] sm:$0xf]
    %s1793 = scalar_lea.vmem %s13, 1
    %v1794 = vld [vmem:[%s1793] sm:$0x1]
    %v1796 = vlaneseq
    %v1797 = vshrl.u32 %v1796, 7
    %v1798 = vsub.s32 0, %v1797
    %v1799 = vrot.slane %v1794, %v1798
    %v1817 = vunpack.c.l.b16 %v1777
    %v1818 = vunpack.c.l.b16 %v1778
    %v1819 = vunpack.c.l.b16 %v1779
    %v1820 = vunpack.c.l.b16 %v1780
    %v1821 = vunpack.c.l.b16 %v1781
    %v1822 = vunpack.c.l.b16 %v1782
    %v1823 = vunpack.c.l.b16 %v1783
    %v1824 = vunpack.c.l.b16 %v1784
    %v1825 = vunpack.c.l.b16 %v1785
    %v1826 = vunpack.c.l.b16 %v1786
    %v1827 = vunpack.c.l.b16 %v1787
    %v1828 = vunpack.c.l.b16 %v1788
    %v1829 = vunpack.c.l.b16 %v1789
    %v1830 = vunpack.c.l.b16 %v1790
    %v1831 = vunpack.c.l.b16 %v1791
    %v1832 = vunpack.c.l.b16 %v1792
    %v1833 = vpack.c.b16 %v1818, %v1817
    %v1834 = vpack.c.b16 %v1820, %v1819
    %v1835 = vpack.c.b16 %v1822, %v1821
    %v1836 = vpack.c.b16 %v1824, %v1823
    %v1837 = vpack.c.b16 %v1826, %v1825
    %v1838 = vpack.c.b16 %v1828, %v1827
    %v1839 = vpack.c.b16 %v1830, %v1829
    %v1840 = vpack.c.b16 %v1832, %v1831
    %1849 = vmatprep.subr.bf16.mxu0 0
    %1850 = vmatpush1.bf16.msra.mxu0 %v1833
    %1851 = vmatprep.subr.bf16.mxu0 0
    %1852 = vmatpush1.bf16.msra.mxu0 %v1834
    %1853 = vmatprep.subr.bf16.mxu0 0
    %1854 = vmatpush1.bf16.msra.mxu0 %v1835
    %1855 = vmatprep.subr.bf16.mxu0 0
    %1856 = vmatpush1.bf16.msra.mxu0 %v1836
    %1857 = vmatprep.subr.bf16.mxu0 0
    %1858 = vmatpush1.bf16.msra.mxu0 %v1837
    %1859 = vmatprep.subr.bf16.mxu0 0
    %1860 = vmatpush1.bf16.msra.mxu0 %v1838
    %1861 = vmatprep.subr.bf16.mxu0 0
    %1862 = vmatpush1.bf16.msra.mxu0 %v1839
    %1863 = vmatprep.subr.bf16.mxu0 0
    %1864 = vmatpush1.bf16.msra.mxu0 %v1840
    %1865 = vmatprep.subr.bf16.mxu0 0
    %1866 = vmatpush1.bf16.msra.mxu0 0
    %1867 = vmatprep.subr.bf16.mxu0 0
    %1868 = vmatpush1.bf16.msra.mxu0 0
    %1869 = vmatprep.subr.bf16.mxu0 0
    %1870 = vmatpush1.bf16.msra.mxu0 0
    %1871 = vmatprep.subr.bf16.mxu0 0
    %1872 = vmatpush1.bf16.msra.mxu0 0
    %1873 = vmatprep.subr.bf16.mxu0 0
    %1874 = vmatpush1.bf16.msra.mxu0 0
    %1875 = vmatprep.subr.bf16.mxu0 0
    %1876 = vmatpush1.bf16.msra.mxu0 0
    %1877 = vmatprep.subr.bf16.mxu0 0
    %1878 = vmatpush1.bf16.msra.mxu0 0
    %1879 = vmatprep.subr.bf16.mxu0 0
    %1880 = vmatpush1.bf16.msra.mxu0 0
    %1881 = vmatprep.mubr.bf16.mxu0 0
    %1882 = vmatmul.mubr.bf16.gmra.mrb[0].mxu0 %v1768
    %v1883 = vpop.f32.mrb[0].mxu0
    %v1884 = vadd.f32 %v1799, %v1883
    %v1885 = vpop.f32.mrb[0].mxu0
    %v1886 = vpop.f32.mrb[0].mxu0
    %v1887 = vadd.f32 %v1799, %v1886
    %v1888 = vpop.f32.mrb[0].mxu0
    %1889 = vmatprep.mubr.bf16.mxu0 0
    %1890 = vmatmul.mubr.bf16.gmra.mrb[0].mxu0 %v1769
    %v1891 = vpop.f32.mrb[0].mxu0
    %v1892 = vadd.f32 %v1799, %v1891
    %v1893 = vpop.f32.mrb[0].mxu0
    %v1894 = vpop.f32.mrb[0].mxu0
    %v1895 = vadd.f32 %v1799, %v1894
    %v1896 = vpop.f32.mrb[0].mxu0
    %1897 = vmatprep.mubr.bf16.mxu0 0
    %1898 = vmatmul.mubr.bf16.gmra.mrb[0].mxu0 %v1770
    %v1899 = vpop.f32.mrb[0].mxu0
    %v1900 = vadd.f32 %v1799, %v1899
    %v1901 = vpop.f32.mrb[0].mxu0
    %v1902 = vpop.f32.mrb[0].mxu0
    %v1903 = vadd.f32 %v1799, %v1902
    %v1904 = vpop.f32.mrb[0].mxu0
    %1905 = vmatprep.mubr.bf16.mxu0 0
    %1906 = vmatmul.mubr.bf16.gmra.mrb[0].mxu0 %v1771
    %v1907 = vpop.f32.mrb[0].mxu0
    %v1908 = vadd.f32 %v1799, %v1907
    %v1909 = vpop.f32.mrb[0].mxu0
    %v1910 = vpop.f32.mrb[0].mxu0
    %v1911 = vadd.f32 %v1799, %v1910
    %v1912 = vpop.f32.mrb[0].mxu0
    %1913 = vmatprep.mubr.bf16.mxu0 0
    %1914 = vmatmul.mubr.bf16.gmra.mrb[0].mxu0 %v1772
    %v1915 = vpop.f32.mrb[0].mxu0
    %v1916 = vadd.f32 %v1799, %v1915
    %v1917 = vpop.f32.mrb[0].mxu0
    %v1918 = vpop.f32.mrb[0].mxu0
    %v1919 = vadd.f32 %v1799, %v1918
    %v1920 = vpop.f32.mrb[0].mxu0
    %1921 = vmatprep.mubr.bf16.mxu0 0
    %1922 = vmatmul.mubr.bf16.gmra.mrb[0].mxu0 %v1773
    %v1923 = vpop.f32.mrb[0].mxu0
    %v1924 = vadd.f32 %v1799, %v1923
    %v1925 = vpop.f32.mrb[0].mxu0
    %v1926 = vpop.f32.mrb[0].mxu0
    %v1927 = vadd.f32 %v1799, %v1926
    %v1928 = vpop.f32.mrb[0].mxu0
    %1929 = vmatprep.mubr.bf16.mxu0 0
    %1930 = vmatmul.mubr.bf16.gmra.mrb[0].mxu0 %v1774
    %v1931 = vpop.f32.mrb[0].mxu0
    %v1932 = vadd.f32 %v1799, %v1931
    %v1933 = vpop.f32.mrb[0].mxu0
    %v1934 = vpop.f32.mrb[0].mxu0
    %v1935 = vadd.f32 %v1799, %v1934
    %v1936 = vpop.f32.mrb[0].mxu0
    %1937 = vmatprep.mubr.bf16.mxu0 0
    %1938 = vmatmul.mubr.bf16.gmra.mrb[0].mxu0 %v1775
    %v1939 = vpop.f32.mrb[0].mxu0
    %v1940 = vadd.f32 %v1799, %v1939
    %v1941 = vpop.f32.mrb[0].mxu0
    %v1942 = vpop.f32.mrb[0].mxu0
    %v1943 = vadd.f32 %v1799, %v1942
    %v1944 = vpop.f32.mrb[0].mxu0
    %1945 = vdwg.mxu0
    %v1946 = vmax.f32 %v1884, 0.0
    %v1947 = vmax.f32 %v1887, 0.0
    %v1948 = vmax.f32 %v1892, 0.0
    %v1949 = vmax.f32 %v1895, 0.0
    %v1950 = vmax.f32 %v1900, 0.0
    %v1951 = vmax.f32 %v1903, 0.0
    %v1952 = vmax.f32 %v1908, 0.0
    %v1953 = vmax.f32 %v1911, 0.0
    %v1954 = vmax.f32 %v1916, 0.0
    %v1955 = vmax.f32 %v1919, 0.0
    %v1956 = vmax.f32 %v1924, 0.0
    %v1957 = vmax.f32 %v1927, 0.0
    %v1958 = vmax.f32 %v1932, 0.0
    %v1959 = vmax.f32 %v1935, 0.0
    %v1960 = vmax.f32 %v1940, 0.0
    %v1961 = vmax.f32 %v1943, 0.0
    %v1962 = vpack.c.bf16 %v1947, %v1946
    %v1963 = vpack.c.bf16 %v1949, %v1948
    %v1964 = vpack.c.bf16 %v1951, %v1950
    %v1965 = vpack.c.bf16 %v1953, %v1952
    %v1966 = vpack.c.bf16 %v1955, %v1954
    %v1967 = vpack.c.bf16 %v1957, %v1956
    %v1968 = vpack.c.bf16 %v1959, %v1958
    %v1969 = vpack.c.bf16 %v1961, %v1960
    %v1970 = vld [vmem:[%s14] sm:$0xf]
    %v1971 = vld [vmem:[%s14 + $0x4] sm:$0xf]
    %v1972 = vld [vmem:[%s14 + $0x8] sm:$0xf]
    %v1973 = vld [vmem:[%s14 + $0xc] sm:$0xf]
    %v1974 = vld [vmem:[%s14 + $0x10] sm:$0xf]
    %v1975 = vld [vmem:[%s14 + $0x14] sm:$0xf]
    %v1976 = vld [vmem:[%s14 + $0x18] sm:$0xf]
    %v1977 = vld [vmem:[%s14 + $0x1c] sm:$0xf]
    %v1978 = vld [vmem:[%s14 + $0x20] sm:$0xf]
    %v1979 = vld [vmem:[%s14 + $0x24] sm:$0xf]
    %v1980 = vld [vmem:[%s14 + $0x28] sm:$0xf]
    %v1981 = vld [vmem:[%s14 + $0x2c] sm:$0xf]
    %v1982 = vld [vmem:[%s14 + $0x30] sm:$0xf]
    %v1983 = vld [vmem:[%s14 + $0x34] sm:$0xf]
    %v1984 = vld [vmem:[%s14 + $0x38] sm:$0xf]
    %v1985 = vld [vmem:[%s14 + $0x3c] sm:$0xf]
    %v2002 = vunpack.c.l.b16 %v1970
    %v2003 = vunpack.c.l.b16 %v1971
    %v2004 = vunpack.c.l.b16 %v1972
    %v2005 = vunpack.c.l.b16 %v1973
    %v2006 = vunpack.c.l.b16 %v1974
    %v2007 = vunpack.c.l.b16 %v1975
    %v2008 = vunpack.c.l.b16 %v1976
    %v2009 = vunpack.c.l.b16 %v1977
    %v2010 = vunpack.c.l.b16 %v1978
    %v2011 = vunpack.c.l.b16 %v1979
    %v2012 = vunpack.c.l.b16 %v1980
    %v2013 = vunpack.c.l.b16 %v1981
    %v2014 = vunpack.c.l.b16 %v1982
    %v2015 = vunpack.c.l.b16 %v1983
    %v2016 = vunpack.c.l.b16 %v1984
    %v2017 = vunpack.c.l.b16 %v1985
    %v2018 = vpack.c.b16 %v2003, %v2002
    %v2019 = vpack.c.b16 %v2005, %v2004
    %v2020 = vpack.c.b16 %v2007, %v2006
    %v2021 = vpack.c.b16 %v2009, %v2008
    %v2022 = vpack.c.b16 %v2011, %v2010
    %v2023 = vpack.c.b16 %v2013, %v2012
    %v2024 = vpack.c.b16 %v2015, %v2014
    %v2025 = vpack.c.b16 %v2017, %v2016
    %2034 = vmatprep.subr.bf16.mxu0 0
    %2035 = vmatpush1.bf16.msra.mxu0 %v2018
    %2036 = vmatprep.subr.bf16.mxu0 0
    %2037 = vmatpush1.bf16.msra.mxu0 %v2019
    %2038 = vmatprep.subr.bf16.mxu0 0
    %2039 = vmatpush1.bf16.msra.mxu0 %v2020
    %2040 = vmatprep.subr.bf16.mxu0 0
    %2041 = vmatpush1.bf16.msra.mxu0 %v2021
    %2042 = vmatprep.subr.bf16.mxu0 0
    %2043 = vmatpush1.bf16.msra.mxu0 %v2022
    %2044 = vmatprep.subr.bf16.mxu0 0
    %2045 = vmatpush1.bf16.msra.mxu0 %v2023
    %2046 = vmatprep.subr.bf16.mxu0 0
    %2047 = vmatpush1.bf16.msra.mxu0 %v2024
    %2048 = vmatprep.subr.bf16.mxu0 0
    %2049 = vmatpush1.bf16.msra.mxu0 %v2025
    %2050 = vmatprep.subr.bf16.mxu0 0
    %2051 = vmatpush1.bf16.msra.mxu0 0
    %2052 = vmatprep.subr.bf16.mxu0 0
    %2053 = vmatpush1.bf16.msra.mxu0 0
    %2054 = vmatprep.subr.bf16.mxu0 0
    %2055 = vmatpush1.bf16.msra.mxu0 0
    %2056 = vmatprep.subr.bf16.mxu0 0
    %2057 = vmatpush1.bf16.msra.mxu0 0
    %2058 = vmatprep.subr.bf16.mxu0 0
    %2059 = vmatpush1.bf16.msra.mxu0 0
    %2060 = vmatprep.subr.bf16.mxu0 0
    %2061 = vmatpush1.bf16.msra.mxu0 0
    %2062 = vmatprep.subr.bf16.mxu0 0
    %2063 = vmatpush1.bf16.msra.mxu0 0
    %2064 = vmatprep.subr.bf16.mxu0 0
    %2065 = vmatpush1.bf16.msra.mxu0 0
    %2066 = vmatprep.mubr.bf16.mxu0 0
    %2067 = vmatmul.mubr.bf16.gmra.mrb[0].mxu0 %v1962
    %v2068 = vpop.f32.mrb[0].mxu0
    %v2069 = vadd.f32 0.0, %v2068
    %v2070 = vpop.f32.mrb[0].mxu0
    %v2071 = vpop.f32.mrb[0].mxu0
    %v2072 = vadd.f32 0.0, %v2071
    %v2073 = vpop.f32.mrb[0].mxu0
    %2074 = vmatprep.mubr.bf16.mxu0 0
    %2075 = vmatmul.mubr.bf16.gmra.mrb[0].mxu0 %v1963
    %v2076 = vpop.f32.mrb[0].mxu0
    %v2077 = vadd.f32 0.0, %v2076
    %v2078 = vpop.f32.mrb[0].mxu0
    %v2079 = vpop.f32.mrb[0].mxu0
    %v2080 = vadd.f32 0.0, %v2079
    %v2081 = vpop.f32.mrb[0].mxu0
    %2082 = vmatprep.mubr.bf16.mxu0 0
    %2083 = vmatmul.mubr.bf16.gmra.mrb[0].mxu0 %v1964
    %v2084 = vpop.f32.mrb[0].mxu0
    %v2085 = vadd.f32 0.0, %v2084
    %v2086 = vpop.f32.mrb[0].mxu0
    %v2087 = vpop.f32.mrb[0].mxu0
    %v2088 = vadd.f32 0.0, %v2087
    %v2089 = vpop.f32.mrb[0].mxu0
    %2090 = vmatprep.mubr.bf16.mxu0 0
    %2091 = vmatmul.mubr.bf16.gmra.mrb[0].mxu0 %v1965
    %v2092 = vpop.f32.mrb[0].mxu0
    %v2093 = vadd.f32 0.0, %v2092
    %v2094 = vpop.f32.mrb[0].mxu0
    %v2095 = vpop.f32.mrb[0].mxu0
    %v2096 = vadd.f32 0.0, %v2095
    %v2097 = vpop.f32.mrb[0].mxu0
    %2098 = vmatprep.mubr.bf16.mxu0 0
    %2099 = vmatmul.mubr.bf16.gmra.mrb[0].mxu0 %v1966
    %v2100 = vpop.f32.mrb[0].mxu0
    %v2101 = vadd.f32 0.0, %v2100
    %v2102 = vpop.f32.mrb[0].mxu0
    %v2103 = vpop.f32.mrb[0].mxu0
    %v2104 = vadd.f32 0.0, %v2103
    %v2105 = vpop.f32.mrb[0].mxu0
    %2106 = vmatprep.mubr.bf16.mxu0 0
    %2107 = vmatmul.mubr.bf16.gmra.mrb[0].mxu0 %v1967
    %v2108 = vpop.f32.mrb[0].mxu0
    %v2109 = vadd.f32 0.0, %v2108
    %v2110 = vpop.f32.mrb[0].mxu0
    %v2111 = vpop.f32.mrb[0].mxu0
    %v2112 = vadd.f32 0.0, %v2111
    %v2113 = vpop.f32.mrb[0].mxu0
    %2114 = vmatprep.mubr.bf16.mxu0 0
    %2115 = vmatmul.mubr.bf16.gmra.mrb[0].mxu0 %v1968
    %v2116 = vpop.f32.mrb[0].mxu0
    %v2117 = vadd.f32 0.0, %v2116
    %v2118 = vpop.f32.mrb[0].mxu0
    %v2119 = vpop.f32.mrb[0].mxu0
    %v2120 = vadd.f32 0.0, %v2119
    %v2121 = vpop.f32.mrb[0].mxu0
    %2122 = vmatprep.mubr.bf16.mxu0 0
    %2123 = vmatmul.mubr.bf16.gmra.mrb[0].mxu0 %v1969
    %v2124 = vpop.f32.mrb[0].mxu0
    %v2125 = vadd.f32 0.0, %v2124
    %v2126 = vpop.f32.mrb[0].mxu0
    %v2127 = vpop.f32.mrb[0].mxu0
    %v2128 = vadd.f32 0.0, %v2127
    %v2129 = vpop.f32.mrb[0].mxu0
    %2130 = vdwg.mxu0
    %v2131 = vmax.f32 %v2069, 0.0
    %v2132 = vmax.f32 %v2072, 0.0
    %v2133 = vmax.f32 %v2077, 0.0
    %v2134 = vmax.f32 %v2080, 0.0
    %v2135 = vmax.f32 %v2085, 0.0
    %v2136 = vmax.f32 %v2088, 0.0
    %v2137 = vmax.f32 %v2093, 0.0
    %v2138 = vmax.f32 %v2096, 0.0
    %v2139 = vmax.f32 %v2101, 0.0
    %v2140 = vmax.f32 %v2104, 0.0
    %v2141 = vmax.f32 %v2109, 0.0
    %v2142 = vmax.f32 %v2112, 0.0
    %v2143 = vmax.f32 %v2117, 0.0
    %v2144 = vmax.f32 %v2120, 0.0
    %v2145 = vmax.f32 %v2125, 0.0
    %v2146 = vmax.f32 %v2128, 0.0
    %v2147 = vpack.c.bf16 %v2132, %v2131
    %v2148 = vpack.c.bf16 %v2134, %v2133
    %v2149 = vpack.c.bf16 %v2136, %v2135
    %v2150 = vpack.c.bf16 %v2138, %v2137
    %v2151 = vpack.c.bf16 %v2140, %v2139
    %v2152 = vpack.c.bf16 %v2142, %v2141
    %v2153 = vpack.c.bf16 %v2144, %v2143
    %v2154 = vpack.c.bf16 %v2146, %v2145
    %v2155 = vld [vmem:[#allocation12] sm:$0xf]
    %v2156 = vld [vmem:[#allocation12 + $0x4] sm:$0xf]
    %v2157 = vld [vmem:[#allocation12 + $0x8] sm:$0xf]
    %v2158 = vld [vmem:[#allocation12 + $0xc] sm:$0xf]
    %v2159 = vld [vmem:[#allocation12 + $0x10] sm:$0xf]
    %v2160 = vld [vmem:[#allocation12 + $0x14] sm:$0xf]
    %v2161 = vld [vmem:[#allocation12 + $0x18] sm:$0xf]
    %v2162 = vld [vmem:[#allocation12 + $0x1c] sm:$0xf]
    %v2163 = vld [vmem:[#allocation12 + $0x20] sm:$0xf]
    %v2164 = vld [vmem:[#allocation12 + $0x24] sm:$0xf]
    %v2165 = vld [vmem:[#allocation12 + $0x28] sm:$0xf]
    %v2166 = vld [vmem:[#allocation12 + $0x2c] sm:$0xf]
    %v2167 = vld [vmem:[#allocation12 + $0x30] sm:$0xf]
    %v2168 = vld [vmem:[#allocation12 + $0x34] sm:$0xf]
    %v2169 = vld [vmem:[#allocation12 + $0x38] sm:$0xf]
    %v2170 = vld [vmem:[#allocation12 + $0x3c] sm:$0xf]
    %v2187 = vunpack.c.l.b16 %v2155
    %v2188 = vunpack.c.l.b16 %v2156
    %v2189 = vunpack.c.l.b16 %v2157
    %v2190 = vunpack.c.l.b16 %v2158
    %v2191 = vunpack.c.l.b16 %v2159
    %v2192 = vunpack.c.l.b16 %v2160
    %v2193 = vunpack.c.l.b16 %v2161
    %v2194 = vunpack.c.l.b16 %v2162
    %v2195 = vunpack.c.l.b16 %v2163
    %v2196 = vunpack.c.l.b16 %v2164
    %v2197 = vunpack.c.l.b16 %v2165
    %v2198 = vunpack.c.l.b16 %v2166
    %v2199 = vunpack.c.l.b16 %v2167
    %v2200 = vunpack.c.l.b16 %v2168
    %v2201 = vunpack.c.l.b16 %v2169
    %v2202 = vunpack.c.l.b16 %v2170
    %v2203 = vpack.c.b16 %v2188, %v2187
    %v2204 = vpack.c.b16 %v2190, %v2189
    %v2205 = vpack.c.b16 %v2192, %v2191
    %v2206 = vpack.c.b16 %v2194, %v2193
    %v2207 = vpack.c.b16 %v2196, %v2195
    %v2208 = vpack.c.b16 %v2198, %v2197
    %v2209 = vpack.c.b16 %v2200, %v2199
    %v2210 = vpack.c.b16 %v2202, %v2201
    %2219 = vmatprep.subr.bf16.mxu0 0
    %2220 = vmatpush1.bf16.msra.mxu0 %v2203
    %2221 = vmatprep.subr.bf16.mxu0 0
    %2222 = vmatpush1.bf16.msra.mxu0 %v2204
    %2223 = vmatprep.subr.bf16.mxu0 0
    %2224 = vmatpush1.bf16.msra.mxu0 %v2205
    %2225 = vmatprep.subr.bf16.mxu0 0
    %2226 = vmatpush1.bf16.msra.mxu0 %v2206
    %2227 = vmatprep.subr.bf16.mxu0 0
    %2228 = vmatpush1.bf16.msra.mxu0 %v2207
    %2229 = vmatprep.subr.bf16.mxu0 0
    %2230 = vmatpush1.bf16.msra.mxu0 %v2208
    %2231 = vmatprep.subr.bf16.mxu0 0
    %2232 = vmatpush1.bf16.msra.mxu0 %v2209
    %2233 = vmatprep.subr.bf16.mxu0 0
    %2234 = vmatpush1.bf16.msra.mxu0 %v2210
    %2235 = vmatprep.subr.bf16.mxu0 0
    %2236 = vmatpush1.bf16.msra.mxu0 0
    %2237 = vmatprep.subr.bf16.mxu0 0
    %2238 = vmatpush1.bf16.msra.mxu0 0
    %2239 = vmatprep.subr.bf16.mxu0 0
    %2240 = vmatpush1.bf16.msra.mxu0 0
    %2241 = vmatprep.subr.bf16.mxu0 0
    %2242 = vmatpush1.bf16.msra.mxu0 0
    %2243 = vmatprep.subr.bf16.mxu0 0
    %2244 = vmatpush1.bf16.msra.mxu0 0
    %2245 = vmatprep.subr.bf16.mxu0 0
    %2246 = vmatpush1.bf16.msra.mxu0 0
    %2247 = vmatprep.subr.bf16.mxu0 0
    %2248 = vmatpush1.bf16.msra.mxu0 0
    %2249 = vmatprep.subr.bf16.mxu0 0
    %2250 = vmatpush1.bf16.msra.mxu0 0
    %2251 = vmatprep.mubr.bf16.mxu0 0
    %2252 = vmatmul.mubr.bf16.gmra.mrb[0].mxu0 %v2147
    %v2253 = vpop.f32.mrb[0].mxu0
    %v2254 = vadd.f32 0.0, %v2253
    %v2255 = vpop.f32.mrb[0].mxu0
    %v2256 = vpop.f32.mrb[0].mxu0
    %v2257 = vadd.f32 0.0, %v2256
    %v2258 = vpop.f32.mrb[0].mxu0
    %2259 = vmatprep.mubr.bf16.mxu0 0
    %2260 = vmatmul.mubr.bf16.gmra.mrb[0].mxu0 %v2148
    %v2261 = vpop.f32.mrb[0].mxu0
    %v2262 = vadd.f32 0.0, %v2261
    %v2263 = vpop.f32.mrb[0].mxu0
    %v2264 = vpop.f32.mrb[0].mxu0
    %v2265 = vadd.f32 0.0, %v2264
    %v2266 = vpop.f32.mrb[0].mxu0
    %2267 = vmatprep.mubr.bf16.mxu0 0
    %2268 = vmatmul.mubr.bf16.gmra.mrb[0].mxu0 %v2149
    %v2269 = vpop.f32.mrb[0].mxu0
    %v2270 = vadd.f32 0.0, %v2269
    %v2271 = vpop.f32.mrb[0].mxu0
    %v2272 = vpop.f32.mrb[0].mxu0
    %v2273 = vadd.f32 0.0, %v2272
    %v2274 = vpop.f32.mrb[0].mxu0
    %2275 = vmatprep.mubr.bf16.mxu0 0
    %2276 = vmatmul.mubr.bf16.gmra.mrb[0].mxu0 %v2150
    %v2277 = vpop.f32.mrb[0].mxu0
    %v2278 = vadd.f32 0.0, %v2277
    %v2279 = vpop.f32.mrb[0].mxu0
    %v2280 = vpop.f32.mrb[0].mxu0
    %v2281 = vadd.f32 0.0, %v2280
    %v2282 = vpop.f32.mrb[0].mxu0
    %2283 = vmatprep.mubr.bf16.mxu0 0
    %2284 = vmatmul.mubr.bf16.gmra.mrb[0].mxu0 %v2151
    %v2285 = vpop.f32.mrb[0].mxu0
    %v2286 = vadd.f32 0.0, %v2285
    %v2287 = vpop.f32.mrb[0].mxu0
    %v2288 = vpop.f32.mrb[0].mxu0
    %v2289 = vadd.f32 0.0, %v2288
    %v2290 = vpop.f32.mrb[0].mxu0
    %2291 = vmatprep.mubr.bf16.mxu0 0
    %2292 = vmatmul.mubr.bf16.gmra.mrb[0].mxu0 %v2152
    %v2293 = vpop.f32.mrb[0].mxu0
    %v2294 = vadd.f32 0.0, %v2293
    %v2295 = vpop.f32.mrb[0].mxu0
    %v2296 = vpop.f32.mrb[0].mxu0
    %v2297 = vadd.f32 0.0, %v2296
    %v2298 = vpop.f32.mrb[0].mxu0
    %2299 = vmatprep.mubr.bf16.mxu0 0
    %2300 = vmatmul.mubr.bf16.gmra.mrb[0].mxu0 %v2153
    %v2301 = vpop.f32.mrb[0].mxu0
    %v2302 = vadd.f32 0.0, %v2301
    %v2303 = vpop.f32.mrb[0].mxu0
    %v2304 = vpop.f32.mrb[0].mxu0
    %v2305 = vadd.f32 0.0, %v2304
    %v2306 = vpop.f32.mrb[0].mxu0
    %2307 = vmatprep.mubr.bf16.mxu0 0
    %2308 = vmatmul.mubr.bf16.gmra.mrb[0].mxu0 %v2154
    %v2309 = vpop.f32.mrb[0].mxu0
    %v2310 = vadd.f32 0.0, %v2309
    %v2311 = vpop.f32.mrb[0].mxu0
    %v2312 = vpop.f32.mrb[0].mxu0
    %v2313 = vadd.f32 0.0, %v2312
    %v2314 = vpop.f32.mrb[0].mxu0
    %2315 = vdwg.mxu0
    %v2316 = vmax.f32 %v2254, 0.0
    %v2317 = vmax.f32 %v2257, 0.0
    %v2318 = vmax.f32 %v2262, 0.0
    %v2319 = vmax.f32 %v2265, 0.0
    %v2320 = vmax.f32 %v2270, 0.0
    %v2321 = vmax.f32 %v2273, 0.0
    %v2322 = vmax.f32 %v2278, 0.0
    %v2323 = vmax.f32 %v2281, 0.0
    %v2324 = vmax.f32 %v2286, 0.0
    %v2325 = vmax.f32 %v2289, 0.0
    %v2326 = vmax.f32 %v2294, 0.0
    %v2327 = vmax.f32 %v2297, 0.0
    %v2328 = vmax.f32 %v2302, 0.0
    %v2329 = vmax.f32 %v2305, 0.0
    %v2330 = vmax.f32 %v2310, 0.0
    %v2331 = vmax.f32 %v2313, 0.0
    %v2332 = vstv %s135
    %vm2333 = vcmp.lt.s32.totalorder %v157, %v2332
    %v2334 = vsel %vm2333, 1, 0
    %v2335 = vcvt.s32.f32 %v2334
    %v2336 = vld [vmem:[%s5] sm:$0xff]
    %v2337 = vld [vmem:[%s5 + $0x8] sm:$0xff]
    %v2338 = vld [vmem:[%s5 + $0x10] sm:$0xff]
    %v2339 = vld [vmem:[%s5 + $0x18] sm:$0xff]
    %v2340 = vld [vmem:[%s5 + $0x20] sm:$0xff]
    %v2341 = vld [vmem:[%s5 + $0x28] sm:$0xff]
    %v2342 = vld [vmem:[%s5 + $0x30] sm:$0xff]
    %v2343 = vld [vmem:[%s5 + $0x38] sm:$0xff]
    %v2344 = vld [vmem:[%s5 + $0x40] sm:$0xff]
    %v2345 = vld [vmem:[%s5 + $0x48] sm:$0xff]
    %v2346 = vld [vmem:[%s5 + $0x50] sm:$0xff]
    %v2347 = vld [vmem:[%s5 + $0x58] sm:$0xff]
    %v2348 = vld [vmem:[%s5 + $0x60] sm:$0xff]
    %v2349 = vld [vmem:[%s5 + $0x68] sm:$0xff]
    %v2350 = vld [vmem:[%s5 + $0x70] sm:$0xff]
    %v2351 = vld [vmem:[%s5 + $0x78] sm:$0xff]
    %2352 = vset.pattern.permute.xlu0 0
    %2353 = vperm.xlu0 %2352, %v2336
    %v2354 = vpop.permute.xlu0 %2353
    %2355 = vset.pattern.permute.xlu0 0
    %2356 = vperm.xlu0 %2355, %v2337
    %v2357 = vpop.permute.xlu0 %2356
    %2358 = vset.pattern.permute.xlu0 0
    %2359 = vperm.xlu0 %2358, %v2338
    %v2360 = vpop.permute.xlu0 %2359
    %2361 = vset.pattern.permute.xlu0 0
    %2362 = vperm.xlu0 %2361, %v2339
    %v2363 = vpop.permute.xlu0 %2362
    %2364 = vset.pattern.permute.xlu0 0
    %2365 = vperm.xlu0 %2364, %v2340
    %v2366 = vpop.permute.xlu0 %2365
    %2367 = vset.pattern.permute.xlu0 0
    %2368 = vperm.xlu0 %2367, %v2341
    %v2369 = vpop.permute.xlu0 %2368
    %2370 = vset.pattern.permute.xlu0 0
    %2371 = vperm.xlu0 %2370, %v2342
    %v2372 = vpop.permute.xlu0 %2371
    %2373 = vset.pattern.permute.xlu0 0
    %2374 = vperm.xlu0 %2373, %v2343
    %v2375 = vpop.permute.xlu0 %2374
    %2376 = vset.pattern.permute.xlu0 0
    %2377 = vperm.xlu0 %2376, %v2344
    %v2378 = vpop.permute.xlu0 %2377
    %2379 = vset.pattern.permute.xlu0 0
    %2380 = vperm.xlu0 %2379, %v2345
    %v2381 = vpop.permute.xlu0 %2380
    %2382 = vset.pattern.permute.xlu0 0
    %2383 = vperm.xlu0 %2382, %v2346
    %v2384 = vpop.permute.xlu0 %2383
    %2385 = vset.pattern.permute.xlu0 0
    %2386 = vperm.xlu0 %2385, %v2347
    %v2387 = vpop.permute.xlu0 %2386
    %2388 = vset.pattern.permute.xlu0 0
    %2389 = vperm.xlu0 %2388, %v2348
    %v2390 = vpop.permute.xlu0 %2389
    %2391 = vset.pattern.permute.xlu0 0
    %2392 = vperm.xlu0 %2391, %v2349
    %v2393 = vpop.permute.xlu0 %2392
    %2394 = vset.pattern.permute.xlu0 0
    %2395 = vperm.xlu0 %2394, %v2350
    %v2396 = vpop.permute.xlu0 %2395
    %2397 = vset.pattern.permute.xlu0 0
    %2398 = vperm.xlu0 %2397, %v2351
    %v2399 = vpop.permute.xlu0 %2398
    %vm2400 = vcmp.eq.s32.totalorder %v157, %v2354
    %vm2401 = vcmp.eq.s32.totalorder %v157, %v2357
    %vm2402 = vcmp.eq.s32.totalorder %v157, %v2360
    %vm2403 = vcmp.eq.s32.totalorder %v157, %v2363
    %vm2404 = vcmp.eq.s32.totalorder %v157, %v2366
    %vm2405 = vcmp.eq.s32.totalorder %v157, %v2369
    %vm2406 = vcmp.eq.s32.totalorder %v157, %v2372
    %vm2407 = vcmp.eq.s32.totalorder %v157, %v2375
    %vm2408 = vcmp.eq.s32.totalorder %v157, %v2378
    %vm2409 = vcmp.eq.s32.totalorder %v157, %v2381
    %vm2410 = vcmp.eq.s32.totalorder %v157, %v2384
    %vm2411 = vcmp.eq.s32.totalorder %v157, %v2387
    %vm2412 = vcmp.eq.s32.totalorder %v157, %v2390
    %vm2413 = vcmp.eq.s32.totalorder %v157, %v2393
    %vm2414 = vcmp.eq.s32.totalorder %v157, %v2396
    %vm2415 = vcmp.eq.s32.totalorder %v157, %v2399
    %v2416 = vsel %vm2400, 1.0, 0.0
    %v2417 = vsel %vm2401, 1.0, 0.0
    %v2418 = vsel %vm2402, 1.0, 0.0
    %v2419 = vsel %vm2403, 1.0, 0.0
    %v2420 = vsel %vm2404, 1.0, 0.0
    %v2421 = vsel %vm2405, 1.0, 0.0
    %v2422 = vsel %vm2406, 1.0, 0.0
    %v2423 = vsel %vm2407, 1.0, 0.0
    %v2424 = vsel %vm2408, 1.0, 0.0
    %v2425 = vsel %vm2409, 1.0, 0.0
    %v2426 = vsel %vm2410, 1.0, 0.0
    %v2427 = vsel %vm2411, 1.0, 0.0
    %v2428 = vsel %vm2412, 1.0, 0.0
    %v2429 = vsel %vm2413, 1.0, 0.0
    %v2430 = vsel %vm2414, 1.0, 0.0
    %v2431 = vsel %vm2415, 1.0, 0.0
    %2432 = vmax.xlane.f32.xlu0 %v2316
    %v2433 = vpop.xlane.xlu0 %2432
    %2434 = vmax.xlane.f32.xlu0 %v2317
    %v2435 = vpop.xlane.xlu0 %2434
    %2436 = vmax.xlane.f32.xlu0 %v2318
    %v2437 = vpop.xlane.xlu0 %2436
    %2438 = vmax.xlane.f32.xlu0 %v2319
    %v2439 = vpop.xlane.xlu0 %2438
    %2440 = vmax.xlane.f32.xlu0 %v2320
    %v2441 = vpop.xlane.xlu0 %2440
    %2442 = vmax.xlane.f32.xlu0 %v2321
    %v2443 = vpop.xlane.xlu0 %2442
    %2444 = vmax.xlane.f32.xlu0 %v2322
    %v2445 = vpop.xlane.xlu0 %2444
    %2446 = vmax.xlane.f32.xlu0 %v2323
    %v2447 = vpop.xlane.xlu0 %2446
    %2448 = vmax.xlane.f32.xlu0 %v2324
    %v2449 = vpop.xlane.xlu0 %2448
    %2450 = vmax.xlane.f32.xlu0 %v2325
    %v2451 = vpop.xlane.xlu0 %2450
    %2452 = vmax.xlane.f32.xlu0 %v2326
    %v2453 = vpop.xlane.xlu0 %2452
    %2454 = vmax.xlane.f32.xlu0 %v2327
    %v2455 = vpop.xlane.xlu0 %2454
    %2456 = vmax.xlane.f32.xlu0 %v2328
    %v2457 = vpop.xlane.xlu0 %2456
    %2458 = vmax.xlane.f32.xlu0 %v2329
    %v2459 = vpop.xlane.xlu0 %2458
    %2460 = vmax.xlane.f32.xlu0 %v2330
    %v2461 = vpop.xlane.xlu0 %2460
    %2462 = vmax.xlane.f32.xlu0 %v2331
    %v2463 = vpop.xlane.xlu0 %2462
    %v2464 = vmul.f32 %v2416, %v2433
    %v2465 = vmul.f32 %v2417, %v2435
    %v2466 = vmul.f32 %v2418, %v2437
    %v2467 = vmul.f32 %v2419, %v2439
    %v2468 = vmul.f32 %v2420, %v2441
    %v2469 = vmul.f32 %v2421, %v2443
    %v2470 = vmul.f32 %v2422, %v2445
    %v2471 = vmul.f32 %v2423, %v2447
    %v2472 = vmul.f32 %v2424, %v2449
    %v2473 = vmul.f32 %v2425, %v2451
    %v2474 = vmul.f32 %v2426, %v2453
    %v2475 = vmul.f32 %v2427, %v2455
    %v2476 = vmul.f32 %v2428, %v2457
    %v2477 = vmul.f32 %v2429, %v2459
    %v2478 = vmul.f32 %v2430, %v2461
    %v2479 = vmul.f32 %v2431, %v2463
    %v2480 = vmax.f32 %v2464, %v2468
    %v2481 = vmax.f32 %v2465, %v2469
    %v2482 = vmax.f32 %v2466, %v2470
    %v2483 = vmax.f32 %v2467, %v2471
    %v2484 = vmax.f32 %v2480, %v2472
    %v2485 = vmax.f32 %v2481, %v2473
    %v2486 = vmax.f32 %v2482, %v2474
    %v2487 = vmax.f32 %v2483, %v2475
    %v2488 = vmax.f32 %v2484, %v2476
    %v2489 = vmax.f32 %v2485, %v2477
    %v2490 = vmax.f32 %v2486, %v2478
    %v2491 = vmax.f32 %v2487, %v2479
    %v2492 = vmax.f32 %v2488, %v2489
    %v2493 = vmax.f32 %v2490, %v2491
    %v2494 = vmax.f32 %v2492, %v2493
    %v2495 = vrot.slane %v2494, 4
    %v2496 = vmax.f32 %v2494, %v2495
    %v2497 = vrot.slane %v2496, 2
    %v2498 = vmax.f32 %v2496, %v2497
    %v2499 = vrot.slane %v2498, 1
    %v2500 = vmax.f32 %v2498, %v2499
    %v2501 = vmul.f32 %v2416, %v2500
    %v2502 = vmul.f32 %v2417, %v2500
    %v2503 = vmul.f32 %v2418, %v2500
    %v2504 = vmul.f32 %v2419, %v2500
    %v2505 = vmul.f32 %v2420, %v2500
    %v2506 = vmul.f32 %v2421, %v2500
    %v2507 = vmul.f32 %v2422, %v2500
    %v2508 = vmul.f32 %v2423, %v2500
    %v2509 = vmul.f32 %v2424, %v2500
    %v2510 = vmul.f32 %v2425, %v2500
    %v2511 = vmul.f32 %v2426, %v2500
    %v2512 = vmul.f32 %v2427, %v2500
    %v2513 = vmul.f32 %v2428, %v2500
    %v2514 = vmul.f32 %v2429, %v2500
    %v2515 = vmul.f32 %v2430, %v2500
    %v2516 = vmul.f32 %v2431, %v2500
    %2517 = vadd.xlane.f32.xlu0 %v2501
    %v2518 = vpop.xlane.xlu0 %2517
    %2519 = vadd.xlane.f32.xlu0 %v2502
    %v2520 = vpop.xlane.xlu0 %2519
    %2521 = vadd.xlane.f32.xlu0 %v2503
    %v2522 = vpop.xlane.xlu0 %2521
    %2523 = vadd.xlane.f32.xlu0 %v2504
    %v2524 = vpop.xlane.xlu0 %2523
    %2525 = vadd.xlane.f32.xlu0 %v2505
    %v2526 = vpop.xlane.xlu0 %2525
    %2527 = vadd.xlane.f32.xlu0 %v2506
    %v2528 = vpop.xlane.xlu0 %2527
    %2529 = vadd.xlane.f32.xlu0 %v2507
    %v2530 = vpop.xlane.xlu0 %2529
    %2531 = vadd.xlane.f32.xlu0 %v2508
    %v2532 = vpop.xlane.xlu0 %2531
    %2533 = vadd.xlane.f32.xlu0 %v2509
    %v2534 = vpop.xlane.xlu0 %2533
    %2535 = vadd.xlane.f32.xlu0 %v2510
    %v2536 = vpop.xlane.xlu0 %2535
    %2537 = vadd.xlane.f32.xlu0 %v2511
    %v2538 = vpop.xlane.xlu0 %2537
    %2539 = vadd.xlane.f32.xlu0 %v2512
    %v2540 = vpop.xlane.xlu0 %2539
    %2541 = vadd.xlane.f32.xlu0 %v2513
    %v2542 = vpop.xlane.xlu0 %2541
    %2543 = vadd.xlane.f32.xlu0 %v2514
    %v2544 = vpop.xlane.xlu0 %2543
    %2545 = vadd.xlane.f32.xlu0 %v2515
    %v2546 = vpop.xlane.xlu0 %2545
    %2547 = vadd.xlane.f32.xlu0 %v2516
    %v2548 = vpop.xlane.xlu0 %2547
    %v2549 = vsub.f32 %v2316, %v2518
    %v2550 = vsub.f32 %v2317, %v2520
    %v2551 = vsub.f32 %v2318, %v2522
    %v2552 = vsub.f32 %v2319, %v2524
    %v2553 = vsub.f32 %v2320, %v2526
    %v2554 = vsub.f32 %v2321, %v2528
    %v2555 = vsub.f32 %v2322, %v2530
    %v2556 = vsub.f32 %v2323, %v2532
    %v2557 = vsub.f32 %v2324, %v2534
    %v2558 = vsub.f32 %v2325, %v2536
    %v2559 = vsub.f32 %v2326, %v2538
    %v2560 = vsub.f32 %v2327, %v2540
    %v2561 = vsub.f32 %v2328, %v2542
    %v2562 = vsub.f32 %v2329, %v2544
    %v2563 = vsub.f32 %v2330, %v2546
    %v2564 = vsub.f32 %v2331, %v2548
    %v2565 = vmin.f32 %v2549, 0.0
    %v2566 = vmin.f32 %v2550, 0.0
    %v2567 = vmin.f32 %v2551, 0.0
    %v2568 = vmin.f32 %v2552, 0.0
    %v2569 = vmin.f32 %v2553, 0.0
    %v2570 = vmin.f32 %v2554, 0.0
    %v2571 = vmin.f32 %v2555, 0.0
    %v2572 = vmin.f32 %v2556, 0.0
    %v2573 = vmin.f32 %v2557, 0.0
    %v2574 = vmin.f32 %v2558, 0.0
    %v2575 = vmin.f32 %v2559, 0.0
    %v2576 = vmin.f32 %v2560, 0.0
    %v2577 = vmin.f32 %v2561, 0.0
    %v2578 = vmin.f32 %v2562, 0.0
    %v2579 = vmin.f32 %v2563, 0.0
    %v2580 = vmin.f32 %v2564, 0.0
    %v2581 = vmul.f32 %v2565, 1.442695
    %v2582 = vpow.pop %v2581
    %v2583 = vmul.f32 %v2566, 1.442695
    %v2584 = vpow.pop %v2583
    %v2585 = vmul.f32 %v2567, 1.442695
    %v2586 = vpow.pop %v2585
    %v2587 = vmul.f32 %v2568, 1.442695
    %v2588 = vpow.pop %v2587
    %v2589 = vmul.f32 %v2569, 1.442695
    %v2590 = vpow.pop %v2589
    %v2591 = vmul.f32 %v2570, 1.442695
    %v2592 = vpow.pop %v2591
    %v2593 = vmul.f32 %v2571, 1.442695
    %v2594 = vpow.pop %v2593
    %v2595 = vmul.f32 %v2572, 1.442695
    %v2596 = vpow.pop %v2595
    %v2597 = vmul.f32 %v2573, 1.442695
    %v2598 = vpow.pop %v2597
    %v2599 = vmul.f32 %v2574, 1.442695
    %v2600 = vpow.pop %v2599
    %v2601 = vmul.f32 %v2575, 1.442695
    %v2602 = vpow.pop %v2601
    %v2603 = vmul.f32 %v2576, 1.442695
    %v2604 = vpow.pop %v2603
    %v2605 = vmul.f32 %v2577, 1.442695
    %v2606 = vpow.pop %v2605
    %v2607 = vmul.f32 %v2578, 1.442695
    %v2608 = vpow.pop %v2607
    %v2609 = vmul.f32 %v2579, 1.442695
    %v2610 = vpow.pop %v2609
    %v2611 = vmul.f32 %v2580, 1.442695
    %v2612 = vpow.pop %v2611
    %v2613 = vmul.f32 %v2582, %v2335
    %v2614 = vmul.f32 %v2584, %v2335
    %v2615 = vmul.f32 %v2586, %v2335
    %v2616 = vmul.f32 %v2588, %v2335
    %v2617 = vmul.f32 %v2590, %v2335
    %v2618 = vmul.f32 %v2592, %v2335
    %v2619 = vmul.f32 %v2594, %v2335
    %v2620 = vmul.f32 %v2596, %v2335
    %v2621 = vmul.f32 %v2598, %v2335
    %v2622 = vmul.f32 %v2600, %v2335
    %v2623 = vmul.f32 %v2602, %v2335
    %v2624 = vmul.f32 %v2604, %v2335
    %v2625 = vmul.f32 %v2606, %v2335
    %v2626 = vmul.f32 %v2608, %v2335
    %v2627 = vmul.f32 %v2610, %v2335
    %v2628 = vmul.f32 %v2612, %v2335
    %2629 = vadd.xlane.f32.xlu0 %v2613
    %v2630 = vpop.xlane.xlu0 %2629
    %2631 = vadd.xlane.f32.xlu0 %v2614
    %v2632 = vpop.xlane.xlu0 %2631
    %2633 = vadd.xlane.f32.xlu0 %v2615
    %v2634 = vpop.xlane.xlu0 %2633
    %2635 = vadd.xlane.f32.xlu0 %v2616
    %v2636 = vpop.xlane.xlu0 %2635
    %2637 = vadd.xlane.f32.xlu0 %v2617
    %v2638 = vpop.xlane.xlu0 %2637
    %2639 = vadd.xlane.f32.xlu0 %v2618
    %v2640 = vpop.xlane.xlu0 %2639
    %2641 = vadd.xlane.f32.xlu0 %v2619
    %v2642 = vpop.xlane.xlu0 %2641
    %2643 = vadd.xlane.f32.xlu0 %v2620
    %v2644 = vpop.xlane.xlu0 %2643
    %2645 = vadd.xlane.f32.xlu0 %v2621
    %v2646 = vpop.xlane.xlu0 %2645
    %2647 = vadd.xlane.f32.xlu0 %v2622
    %v2648 = vpop.xlane.xlu0 %2647
    %2649 = vadd.xlane.f32.xlu0 %v2623
    %v2650 = vpop.xlane.xlu0 %2649
    %2651 = vadd.xlane.f32.xlu0 %v2624
    %v2652 = vpop.xlane.xlu0 %2651
    %2653 = vadd.xlane.f32.xlu0 %v2625
    %v2654 = vpop.xlane.xlu0 %2653
    %2655 = vadd.xlane.f32.xlu0 %v2626
    %v2656 = vpop.xlane.xlu0 %2655
    %2657 = vadd.xlane.f32.xlu0 %v2627
    %v2658 = vpop.xlane.xlu0 %2657
    %2659 = vadd.xlane.f32.xlu0 %v2628
    %v2660 = vpop.xlane.xlu0 %2659
    %v2661 = vmul.f32 %v2416, %v2630
    %v2662 = vmul.f32 %v2417, %v2632
    %v2663 = vmul.f32 %v2418, %v2634
    %v2664 = vmul.f32 %v2419, %v2636
    %v2665 = vmul.f32 %v2420, %v2638
    %v2666 = vmul.f32 %v2421, %v2640
    %v2667 = vmul.f32 %v2422, %v2642
    %v2668 = vmul.f32 %v2423, %v2644
    %v2669 = vmul.f32 %v2424, %v2646
    %v2670 = vmul.f32 %v2425, %v2648
    %v2671 = vmul.f32 %v2426, %v2650
    %v2672 = vmul.f32 %v2427, %v2652
    %v2673 = vmul.f32 %v2428, %v2654
    %v2674 = vmul.f32 %v2429, %v2656
    %v2675 = vmul.f32 %v2430, %v2658
    %v2676 = vmul.f32 %v2431, %v2660
    %v2677 = vadd.f32 %v2661, %v2662
    %v2678 = vadd.f32 %v2677, %v2663
    %v2679 = vadd.f32 %v2678, %v2664
    %v2680 = vadd.f32 %v2679, %v2665
    %v2681 = vadd.f32 %v2680, %v2666
    %v2682 = vadd.f32 %v2681, %v2667
    %v2683 = vadd.f32 %v2682, %v2668
    %v2684 = vadd.f32 %v2683, %v2669
    %v2685 = vadd.f32 %v2684, %v2670
    %v2686 = vadd.f32 %v2685, %v2671
    %v2687 = vadd.f32 %v2686, %v2672
    %v2688 = vadd.f32 %v2687, %v2673
    %v2689 = vadd.f32 %v2688, %v2674
    %v2690 = vadd.f32 %v2689, %v2675
    %v2691 = vadd.f32 %v2690, %v2676
    %v2692 = vrot.slane %v2691, 4
    %v2693 = vadd.f32 %v2691, %v2692
    %v2694 = vrot.slane %v2693, 2
    %v2695 = vadd.f32 %v2693, %v2694
    %v2696 = vrot.slane %v2695, 1
    %v2697 = vadd.f32 %v2695, %v2696
    %v2698 = vmul.f32 %v2416, %v2697
    %v2699 = vmul.f32 %v2417, %v2697
    %v2700 = vmul.f32 %v2418, %v2697
    %v2701 = vmul.f32 %v2419, %v2697
    %v2702 = vmul.f32 %v2420, %v2697
    %v2703 = vmul.f32 %v2421, %v2697
    %v2704 = vmul.f32 %v2422, %v2697
    %v2705 = vmul.f32 %v2423, %v2697
    %v2706 = vmul.f32 %v2424, %v2697
    %v2707 = vmul.f32 %v2425, %v2697
    %v2708 = vmul.f32 %v2426, %v2697
    %v2709 = vmul.f32 %v2427, %v2697
    %v2710 = vmul.f32 %v2428, %v2697
    %v2711 = vmul.f32 %v2429, %v2697
    %v2712 = vmul.f32 %v2430, %v2697
    %v2713 = vmul.f32 %v2431, %v2697
    %2714 = vadd.xlane.f32.xlu0 %v2698
    %v2715 = vpop.xlane.xlu0 %2714
    %2716 = vadd.xlane.f32.xlu0 %v2699
    %v2717 = vpop.xlane.xlu0 %2716
    %2718 = vadd.xlane.f32.xlu0 %v2700
    %v2719 = vpop.xlane.xlu0 %2718
    %2720 = vadd.xlane.f32.xlu0 %v2701
    %v2721 = vpop.xlane.xlu0 %2720
    %2722 = vadd.xlane.f32.xlu0 %v2702
    %v2723 = vpop.xlane.xlu0 %2722
    %2724 = vadd.xlane.f32.xlu0 %v2703
    %v2725 = vpop.xlane.xlu0 %2724
    %2726 = vadd.xlane.f32.xlu0 %v2704
    %v2727 = vpop.xlane.xlu0 %2726
    %2728 = vadd.xlane.f32.xlu0 %v2705
    %v2729 = vpop.xlane.xlu0 %2728
    %2730 = vadd.xlane.f32.xlu0 %v2706
    %v2731 = vpop.xlane.xlu0 %2730
    %2732 = vadd.xlane.f32.xlu0 %v2707
    %v2733 = vpop.xlane.xlu0 %2732
    %2734 = vadd.xlane.f32.xlu0 %v2708
    %v2735 = vpop.xlane.xlu0 %2734
    %2736 = vadd.xlane.f32.xlu0 %v2709
    %v2737 = vpop.xlane.xlu0 %2736
    %2738 = vadd.xlane.f32.xlu0 %v2710
    %v2739 = vpop.xlane.xlu0 %2738
    %2740 = vadd.xlane.f32.xlu0 %v2711
    %v2741 = vpop.xlane.xlu0 %2740
    %2742 = vadd.xlane.f32.xlu0 %v2712
    %v2743 = vpop.xlane.xlu0 %2742
    %2744 = vadd.xlane.f32.xlu0 %v2713
    %v2745 = vpop.xlane.xlu0 %2744
    %vm2746 = vcmp.gt.f32.partialorder %v2715, 0.0
    %vm2747 = vcmp.gt.f32.partialorder %v2717, 0.0
    %vm2748 = vcmp.gt.f32.partialorder %v2719, 0.0
    %vm2749 = vcmp.gt.f32.partialorder %v2721, 0.0
    %vm2750 = vcmp.gt.f32.partialorder %v2723, 0.0
    %vm2751 = vcmp.gt.f32.partialorder %v2725, 0.0
    %vm2752 = vcmp.gt.f32.partialorder %v2727, 0.0
    %vm2753 = vcmp.gt.f32.partialorder %v2729, 0.0
    %vm2754 = vcmp.gt.f32.partialorder %v2731, 0.0
    %vm2755 = vcmp.gt.f32.partialorder %v2733, 0.0
    %vm2756 = vcmp.gt.f32.partialorder %v2735, 0.0
    %vm2757 = vcmp.gt.f32.partialorder %v2737, 0.0
    %vm2758 = vcmp.gt.f32.partialorder %v2739, 0.0
    %vm2759 = vcmp.gt.f32.partialorder %v2741, 0.0
    %vm2760 = vcmp.gt.f32.partialorder %v2743, 0.0
    %vm2761 = vcmp.gt.f32.partialorder %v2745, 0.0
    %v2762 = vsel %vm2746, %v2715, 1.0
    %v2763 = vsel %vm2747, %v2717, 1.0
    %v2764 = vsel %vm2748, %v2719, 1.0
    %v2765 = vsel %vm2749, %v2721, 1.0
    %v2766 = vsel %vm2750, %v2723, 1.0
    %v2767 = vsel %vm2751, %v2725, 1.0
    %v2768 = vsel %vm2752, %v2727, 1.0
    %v2769 = vsel %vm2753, %v2729, 1.0
    %v2770 = vsel %vm2754, %v2731, 1.0
    %v2771 = vsel %vm2755, %v2733, 1.0
    %v2772 = vsel %vm2756, %v2735, 1.0
    %v2773 = vsel %vm2757, %v2737, 1.0
    %v2774 = vsel %vm2758, %v2739, 1.0
    %v2775 = vsel %vm2759, %v2741, 1.0
    %v2776 = vsel %vm2760, %v2743, 1.0
    %v2777 = vsel %vm2761, %v2745, 1.0
    %v2778 = vrcp.pop %v2762
    %v2779 = vmul.f32 %v2613, %v2778
    %v2780 = vrcp.pop %v2763
    %v2781 = vmul.f32 %v2614, %v2780
    %v2782 = vrcp.pop %v2764
    %v2783 = vmul.f32 %v2615, %v2782
    %v2784 = vrcp.pop %v2765
    %v2785 = vmul.f32 %v2616, %v2784
    %v2786 = vrcp.pop %v2766
    %v2787 = vmul.f32 %v2617, %v2786
    %v2788 = vrcp.pop %v2767
    %v2789 = vmul.f32 %v2618, %v2788
    %v2790 = vrcp.pop %v2768
    %v2791 = vmul.f32 %v2619, %v2790
    %v2792 = vrcp.pop %v2769
    %v2793 = vmul.f32 %v2620, %v2792
    %v2794 = vrcp.pop %v2770
    %v2795 = vmul.f32 %v2621, %v2794
    %v2796 = vrcp.pop %v2771
    %v2797 = vmul.f32 %v2622, %v2796
    %v2798 = vrcp.pop %v2772
    %v2799 = vmul.f32 %v2623, %v2798
    %v2800 = vrcp.pop %v2773
    %v2801 = vmul.f32 %v2624, %v2800
    %v2802 = vrcp.pop %v2774
    %v2803 = vmul.f32 %v2625, %v2802
    %v2804 = vrcp.pop %v2775
    %v2805 = vmul.f32 %v2626, %v2804
    %v2806 = vrcp.pop %v2776
    %v2807 = vmul.f32 %v2627, %v2806
    %v2808 = vrcp.pop %v2777
    %v2809 = vmul.f32 %v2628, %v2808
    %2810 = vst [vmem:[#allocation13] sm:$0xff] %v2779
    %2811 = vst [vmem:[#allocation13 + $0x8] sm:$0xff] %v2781
    %2812 = vst [vmem:[#allocation13 + $0x10] sm:$0xff] %v2783
    %2813 = vst [vmem:[#allocation13 + $0x18] sm:$0xff] %v2785
    %2814 = vst [vmem:[#allocation13 + $0x20] sm:$0xff] %v2787
    %2815 = vst [vmem:[#allocation13 + $0x28] sm:$0xff] %v2789
    %2816 = vst [vmem:[#allocation13 + $0x30] sm:$0xff] %v2791
    %2817 = vst [vmem:[#allocation13 + $0x38] sm:$0xff] %v2793
    %2818 = vst [vmem:[#allocation13 + $0x40] sm:$0xff] %v2795
    %2819 = vst [vmem:[#allocation13 + $0x48] sm:$0xff] %v2797
    %2820 = vst [vmem:[#allocation13 + $0x50] sm:$0xff] %v2799
    %2821 = vst [vmem:[#allocation13 + $0x58] sm:$0xff] %v2801
    %2822 = vst [vmem:[#allocation13 + $0x60] sm:$0xff] %v2803
    %2823 = vst [vmem:[#allocation13 + $0x68] sm:$0xff] %v2805
    %2824 = vst [vmem:[#allocation13 + $0x70] sm:$0xff] %v2807
    %2825 = vst [vmem:[#allocation13 + $0x78] sm:$0xff] %v2809
    // Predicated region
    $region90: #{tpu_custom_call.1} parent=1 // pred_check
      _
    $region91: #{tpu_custom_call.1} parent=1 // pred_check_branch
      %2827 = sbr.rel (0) target = $region93
    $region92: #{tpu_custom_call.1} parent=1 // pred_region
      %s2829 = ssub.s32 2048, 2048
      %2830 = vsyncadd [#allocation4], %s2829
      %s2831 = sshll.u32 [#allocation13], 4
      %s2832 = int_to_ptr.vmem [resolvable:$true] %s2831
      %2837 = dma.vmem_to_hbm [thread:$0]  %s2832, 2048, %s16, [#allocation4], 128, 128, 8
    $region93: #{tpu_custom_call.1} parent=1 // pred_fallthru
      _
    // Predicated region
    $region94: #{tpu_custom_call.1} parent=1 // pred_check
      _
    $region95: #{tpu_custom_call.1} parent=1 // pred_check_branch
      %2839 = sbr.rel (0) target = $region97
    $region96: #{tpu_custom_call.1} parent=1 // pred_region
      %2840 = dma.done [#allocation4], 2048
    $region97: #{tpu_custom_call.1} parent=1 // pred_fallthru
      _
    %2841 = vsyncpa [#allocation3], 1
    %2842 = vsyncpa [#allocation8], 1
    %2843 = vsyncpa [#allocation11], 1
    %2844 = vsyncpa [#allocation4], 1
    %2845 = vsyncpa [#allocation5], 1

</llo_original>
